<compile_context>
chip_gen: v6e
topology: v6e:2x2x1
jax: 0.10.0
libtpu: 0.0.40
codegen_flags: <defaults>
</compile_context>

<pallas_src>
import functools

import jax
import jax.numpy as jnp
from jax import lax
from jax.experimental import pallas as pl
from jax.experimental.pallas import tpu as pltpu


def double_conv_kernel(col1_ref, w1_ref, s1_ref, b1_ref, w2_ref, s2_ref, b2_ref,
                       o_ref, y1pad_ref, stage_ref, *, H, W, Cp, Co_pad):
    """Fused (conv3x3 pad=1 => folded-BN => ReLU) x 2 for one batch element.

    col1_ref:  (1, H*W, K1p)    stage-1 im2col (bf16, K zero-padded to 128)
    w1_ref:    (K1p, Cp)        stage-1 weights, im2col layout (bf16)
    s1_ref:    (1, Cp)          stage-1 folded BN scale (f32, zero-padded)
    b1_ref:    (1, Cp)          stage-1 folded BN bias  (f32, zero-padded)
    w2_ref:    (9*Cp, Cp)       stage-2 weights, im2col layout (bf16)
    s2_ref:    (1, Cp)
    b2_ref:    (1, Cp)
    o_ref:     (1, Co_pad, H*W) channel-compact, NCHW-friendly output slab (f32)
    y1pad_ref: (H+2, Wp, Cp)    VMEM scratch: bf16 stage-1 activation w/ halo
    stage_ref: (H*W, 3*Cp)      VMEM scratch: bf16 per-kernel-row tap staging
    """
    # ---------------- stage 1: conv3x3 (single im2col matmul) -> BN -> ReLU --
    acc1 = jnp.dot(col1_ref[0], w1_ref[...],
                   preferred_element_type=jnp.float32)            # (H*W, Cp) f32
    y1 = jnp.maximum(acc1 * s1_ref[0] + b1_ref[0], 0.0)

    # Stage-1 activation stays in VMEM (bf16, 1-pixel halo).  Zero ONLY the
    # border slabs each step (interior fully overwritten; scratch persists
    # across grid steps, so per-step border zeroing is the core-sharding-safe
    # form).
    Wp = y1pad_ref.shape[1]
    y1pad_ref[pl.ds(0, 1), :, :] = jnp.zeros((1, Wp, Cp), jnp.bfloat16)
    y1pad_ref[pl.ds(H + 1, 1), :, :] = jnp.zeros((1, Wp, Cp), jnp.bfloat16)
    y1pad_ref[pl.ds(1, H), pl.ds(0, 1), :] = jnp.zeros((H, 1, Cp), jnp.bfloat16)
    y1pad_ref[pl.ds(1, H), pl.ds(W + 1, 1), :] = jnp.zeros((H, 1, Cp), jnp.bfloat16)
    y1pad_ref[pl.ds(1, H), pl.ds(1, W), :] = (
        y1.astype(jnp.bfloat16).reshape(H, W, Cp))

    # ---------------- stage 2: conv3x3 -> BN -> ReLU -------------------------
    # No (H*W, 9*Cp) im2col: per kernel row dy, stage the 3 taps side by side
    # (K = 3*Cp) and accumulate three MXU matmuls into an f32 accumulator.
    acc2 = None
    for dy in range(3):
        for dx in range(3):
            stage_ref[:, pl.ds(dx * Cp, Cp)] = (
                y1pad_ref[pl.ds(dy, H), pl.ds(dx, W), :].reshape(H * W, Cp))
        part = jnp.dot(stage_ref[...],
                       w2_ref[pl.ds(dy * 3 * Cp, 3 * Cp), :],
                       preferred_element_type=jnp.float32)        # (H*W, Cp)
        acc2 = part if acc2 is None else acc2 + part
    y2 = jnp.maximum(acc2 * s2_ref[0] + b2_ref[0], 0.0)           # (H*W, Cp) f32

    # Channel-compact, NCHW-friendly store: transpose to (Cp, H*W) on the XLU
    # and write only the (8-aligned) real channels -> HBM writeback is
    # Cout-sized, wrapper only needs a free reshape (no slice/transpose pass).
    o_ref[0] = jnp.transpose(y2)[:Co_pad, :].astype(o_ref.dtype)


def _round_up(n, m):
    return (n + m - 1) // m * m


def _im2col_3x3_nchw(x):
    """(B, C, H, W) -> (B, H*W, 9*C) im2col for a 3x3, pad=1 conv (tap-major)."""
    B, C, H, W = x.shape
    xp = jnp.pad(x, ((0, 0), (0, 0), (1, 1), (1, 1)))
    taps = [xp[:, :, dy:dy + H, dx:dx + W]
            for dy in range(3) for dx in range(3)]                # 9 x (B,C,H,W)
    col = jnp.stack(taps, axis=1).reshape(B, 9 * C, H * W)
    return jnp.transpose(col, (0, 2, 1))                          # (B, H*W, 9*C)


def double_conv_pallas(x_nchw, w1, w2, scale1, bias1, scale2, bias2):
    """Fused (conv3x3 pad=1 => folded BN => ReLU) x 2.

    x_nchw: (B, Cin, H, W) f32.  Returns (B, Cout, H, W) f32 (NCHW like torch).
    """
    B, Cin, H, W = x_nchw.shape
    Cout = w1.shape[-1]
    Cp = _round_up(Cout, 128)        # lane-dense padded channels (matmul N / K2)
    Co_pad = _round_up(Cout, 8)      # sublane-aligned channels actually stored
    K1 = 9 * Cin
    K1p = _round_up(K1, 128)         # lane-dense stage-1 contraction dim
    Wp = _round_up(W + 2, 8)         # sublane-aligned halo width

    # Stage-1 im2col built by XLA (tiny HBM cost at small Cin), bf16, K padded.
    col1 = _im2col_3x3_nchw(x_nchw.astype(jnp.float32))
    col1 = jnp.pad(col1, ((0, 0), (0, 0), (0, K1p - K1))).astype(jnp.bfloat16)

    # Weights in im2col layout (tap-major, in-channel-minor), zero-padded
    # channels, bf16 for the MXU.  Zero-padded scale/bias keep padded channels
    # exactly 0 through ReLU, so they cannot leak into stage 2 or the output.
    w1p = jnp.zeros((3, 3, Cin, Cp), jnp.float32).at[..., :Cout].set(w1)
    w1r = jnp.pad(w1p.reshape(K1, Cp), ((0, K1p - K1), (0, 0))).astype(jnp.bfloat16)
    w2p = jnp.zeros((3, 3, Cp, Cp), jnp.float32).at[:, :, :Cout, :Cout].set(w2)
    w2r = w2p.reshape(9 * Cp, Cp).astype(jnp.bfloat16)

    def pad_vec(v):
        return jnp.zeros((1, Cp), jnp.float32).at[0, :Cout].set(v)

    s1p, b1p = pad_vec(scale1), pad_vec(bias1)
    s2p, b2p = pad_vec(scale2), pad_vec(bias2)

    kernel = functools.partial(double_conv_kernel, H=H, W=W, Cp=Cp, Co_pad=Co_pad)

    out = pl.pallas_call(
        kernel,
        out_shape=jax.ShapeDtypeStruct((B, Co_pad, H * W), jnp.float32),
        grid=(B,),
        in_specs=[
            pl.BlockSpec((1, H * W, K1p), lambda b: (b, 0, 0)),   # stage-1 im2col
            pl.BlockSpec((K1p, Cp), lambda b: (0, 0)),            # w1 (bf16)
            pl.BlockSpec((1, Cp), lambda b: (0, 0)),              # s1
            pl.BlockSpec((1, Cp), lambda b: (0, 0)),              # b1
            pl.BlockSpec((9 * Cp, Cp), lambda b: (0, 0)),         # w2 (bf16)
            pl.BlockSpec((1, Cp), lambda b: (0, 0)),              # s2
            pl.BlockSpec((1, Cp), lambda b: (0, 0)),              # b2
        ],
        out_specs=pl.BlockSpec((1, Co_pad, H * W), lambda b: (b, 0, 0)),
        scratch_shapes=[
            pltpu.VMEM((H + 2, Wp, Cp), jnp.bfloat16),    # haloed stage-1 act
            pltpu.VMEM((H * W, 3 * Cp), jnp.bfloat16),    # per-row tap staging
        ],
        compiler_params=pltpu.CompilerParams(
            dimension_semantics=("parallel",),            # megacore / v7x 2 TCs
            vmem_limit_bytes=48 * 1024 * 1024),
    )(col1, w1r, s1p, b1p, w2r, s2p, b2p)

    # Only a free reshape remains (channels already leading and Cout-compact;
    # the slice is a no-op when Cout % 8 == 0).
    return out[:, :Cout, :].reshape(B, Cout, H, W)


def fold_bn(conv_bias, gamma, beta, running_mean, running_var, eps=1e-5):
    """Fold inference BatchNorm into per-channel scale/bias (conv bias included)."""
    scale = gamma / jnp.sqrt(running_var + eps)
    bias = beta + (conv_bias - running_mean) * scale
    return scale, bias


def init_params(key, in_ch, out_ch):
    """Deterministic parameters for double_conv(in_ch, out_ch)."""
    ks = jax.random.split(key, 8)
    p = {}
    # conv1: in_ch -> out_ch, conv2: out_ch -> out_ch (HWIO)
    p["w1"] = 0.1 * jax.random.normal(ks[0], (3, 3, in_ch, out_ch), jnp.float32)
    p["b1"] = 0.1 * jax.random.normal(ks[1], (out_ch,), jnp.float32)
    p["w2"] = 0.1 * jax.random.normal(ks[2], (3, 3, out_ch, out_ch), jnp.float32)
    p["b2"] = 0.1 * jax.random.normal(ks[3], (out_ch,), jnp.float32)
    # BN parameters / running stats (deterministic, non-trivial)
    p["g1"] = 1.0 + 0.1 * jax.random.normal(ks[4], (out_ch,), jnp.float32)
    p["beta1"] = 0.1 * jax.random.normal(ks[5], (out_ch,), jnp.float32)
    p["mean1"] = 0.05 * jax.random.normal(ks[6], (out_ch,), jnp.float32)
    p["var1"] = jnp.abs(1.0 + 0.1 * jax.random.normal(ks[7], (out_ch,), jnp.float32))
    ks2 = jax.random.split(ks[7], 4)
    p["g2"] = 1.0 + 0.1 * jax.random.normal(ks2[0], (out_ch,), jnp.float32)
    p["beta2"] = 0.1 * jax.random.normal(ks2[1], (out_ch,), jnp.float32)
    p["mean2"] = 0.05 * jax.random.normal(ks2[2], (out_ch,), jnp.float32)
    p["var2"] = jnp.abs(1.0 + 0.1 * jax.random.normal(ks2[3], (out_ch,), jnp.float32))
    return p


@jax.jit
def inconv_forward(x_nchw, params):
    """inconv.forward: x (B, Cin, H, W) -> (B, Cout, H, W), via the fused kernel."""
    s1, b1 = fold_bn(params["b1"], params["g1"], params["beta1"],
                     params["mean1"], params["var1"])
    s2, b2 = fold_bn(params["b2"], params["g2"], params["beta2"],
                     params["mean2"], params["var2"])
    return double_conv_pallas(x_nchw.astype(jnp.float32),
                              params["w1"], params["w2"], s1, b1, s2, b2)


def _bf16_round(x):
    return x.astype(jnp.bfloat16).astype(jnp.float32)


def _reference(x_nchw, params):
    """Pure-JAX reference (lax conv).  Matmul operands are rounded to bf16 at
    the same points as the kernel, so the comparison stays tight."""
    x = jnp.transpose(x_nchw, (0, 2, 3, 1)).astype(jnp.float32)

    def stage(x, w, cb, g, beta, mean, var):
        y = lax.conv_general_dilated(
            _bf16_round(x), _bf16_round(w), window_strides=(1, 1), padding="SAME",
            dimension_numbers=("NHWC", "HWIO", "NHWC"))
        y = y + cb
        y = (y - mean) / jnp.sqrt(var + 1e-5) * g + beta
        return jnp.maximum(y, 0.0)

    y = stage(x, params["w1"], params["b1"], params["g1"], params["beta1"],
              params["mean1"], params["var1"])
    y = stage(y, params["w2"], params["b2"], params["g2"], params["beta2"],
              params["mean2"], params["var2"])
    return jnp.transpose(y, (0, 3, 1, 2))


if __name__ == "__main__":
    key = jax.random.PRNGKey(0)
    kx, kp = jax.random.split(key)

    B, Cin, Cout, H, W = 2, 4, 8, 16, 16
    x = jax.random.normal(kx, (B, Cin, H, W), jnp.float32)
    params = init_params(kp, Cin, Cout)

    out = inconv_forward(x, params)
    out = jax.block_until_ready(out)

    ref = _reference(x, params)
    assert out.shape == (B, Cout, H, W), out.shape
    max_err = float(jnp.max(jnp.abs(out - ref)))
    assert jnp.allclose(out, ref, atol=5e-3, rtol=5e-3), max_err

    print("KERNEL_OK")
</pallas_src>

<mosaic_0001>
module attributes {stable_mosaic.version = 11 : i64} {
  func.func @double_conv_kernel(%arg0: i32, %arg1: memref<1x256x128xbf16, #tpu.memory_space<vmem>>, %arg2: memref<128x128xbf16, #tpu.memory_space<vmem>>, %arg3: memref<1x128xf32, #tpu.memory_space<vmem>>, %arg4: memref<1x128xf32, #tpu.memory_space<vmem>>, %arg5: memref<1152x128xbf16, #tpu.memory_space<vmem>>, %arg6: memref<1x128xf32, #tpu.memory_space<vmem>>, %arg7: memref<1x128xf32, #tpu.memory_space<vmem>>, %arg8: memref<1x8x256xf32, #tpu.memory_space<vmem>>, %arg9: memref<18x24x128xbf16, #tpu.memory_space<vmem>>, %arg10: memref<256x384xbf16, #tpu.memory_space<vmem>>) attributes {dimension_semantics = [#tpu.dimension_semantics<parallel>], iteration_bounds = array<i64: 2>, scalar_prefetch = 0 : i64, scratch_operands = 2 : i64, tpu.core_type = #tpu.core_type<tc>, window_params = [{transform_indices = @transform_0, window_bounds = array<i64: 1, 256, 128>}, {pipeline_mode = #tpu.pipeline_mode<synchronous>, transform_indices = @transform_1, window_bounds = array<i64: 128, 128>}, {pipeline_mode = #tpu.pipeline_mode<synchronous>, transform_indices = @transform_2, window_bounds = array<i64: 1, 128>}, {pipeline_mode = #tpu.pipeline_mode<synchronous>, transform_indices = @transform_3, window_bounds = array<i64: 1, 128>}, {pipeline_mode = #tpu.pipeline_mode<synchronous>, transform_indices = @transform_4, window_bounds = array<i64: 1152, 128>}, {pipeline_mode = #tpu.pipeline_mode<synchronous>, transform_indices = @transform_5, window_bounds = array<i64: 1, 128>}, {pipeline_mode = #tpu.pipeline_mode<synchronous>, transform_indices = @transform_6, window_bounds = array<i64: 1, 128>}, {transform_indices = @transform_7, window_bounds = array<i64: 1, 8, 256>}]} {
    %c0 = arith.constant 0 : index
    %c0_0 = arith.constant 0 : index
    %c0_1 = arith.constant 0 : index
    %0 = vector.load %arg1[%c0, %c0_0, %c0_1] : memref<1x256x128xbf16, #tpu.memory_space<vmem>>, vector<1x256x128xbf16>
    %1 = vector.shape_cast %0 : vector<1x256x128xbf16> to vector<256x128xbf16>
    %c0_2 = arith.constant 0 : index
    %c0_3 = arith.constant 0 : index
    %2 = vector.load %arg2[%c0_2, %c0_3] : memref<128x128xbf16, #tpu.memory_space<vmem>>, vector<128x128xbf16>
    %cst = arith.constant dense<0.000000e+00> : vector<256x128xf32>
    %3 = tpu.matmul %1, %2, %cst {dimension_numbers = #tpu.dot_dimension_numbers<[1], [0], [0], [1], [0, 0, 1, 1], [], []>} : vector<256x128xbf16>, vector<128x128xbf16>, vector<256x128xf32> -> vector<256x128xf32>
    %c0_4 = arith.constant 0 : index
    %c0_5 = arith.constant 0 : index
    %4 = vector.load %arg3[%c0_4, %c0_5] : memref<1x128xf32, #tpu.memory_space<vmem>>, vector<1x128xf32>
    %5 = vector.shape_cast %4 : vector<1x128xf32> to vector<128xf32>
    %6 = vector.shape_cast %5 : vector<128xf32> to vector<1x128xf32>
    %7 = vector.broadcast %6 : vector<1x128xf32> to vector<256x128xf32>
    %8 = arith.mulf %3, %7 : vector<256x128xf32>
    %c0_6 = arith.constant 0 : index
    %c0_7 = arith.constant 0 : index
    %9 = vector.load %arg4[%c0_6, %c0_7] : memref<1x128xf32, #tpu.memory_space<vmem>>, vector<1x128xf32>
    %10 = vector.shape_cast %9 : vector<1x128xf32> to vector<128xf32>
    %11 = vector.shape_cast %10 : vector<128xf32> to vector<1x128xf32>
    %12 = vector.broadcast %11 : vector<1x128xf32> to vector<256x128xf32>
    %13 = arith.addf %8, %12 : vector<256x128xf32>
    %cst_8 = arith.constant 0.000000e+00 : f32
    %14 = vector.broadcast %cst_8 : f32 to vector<256x128xf32>
    %15 = arith.maximumf %13, %14 : vector<256x128xf32>
    %cst_9 = arith.constant 0.000000e+00 : bf16
    %16 = vector.broadcast %cst_9 : bf16 to vector<1x24x128xbf16>
    %c0_10 = arith.constant 0 : index
    %c0_11 = arith.constant 0 : index
    %c0_12 = arith.constant 0 : index
    %17 = vector.load %arg9[%c0_10, %c0_11, %c0_12] : memref<18x24x128xbf16, #tpu.memory_space<vmem>>, vector<1x24x128xbf16>
    tpu.vector_store %arg9[%c0_10, %c0_11, %c0_12], %16 {strides = array<i32>} : memref<18x24x128xbf16, #tpu.memory_space<vmem>>, vector<1x24x128xbf16>,
    %cst_13 = arith.constant 0.000000e+00 : bf16
    %18 = vector.broadcast %cst_13 : bf16 to vector<1x24x128xbf16>
    %c17 = arith.constant 17 : index
    %c0_14 = arith.constant 0 : index
    %c0_15 = arith.constant 0 : index
    %19 = vector.load %arg9[%c17, %c0_14, %c0_15] : memref<18x24x128xbf16, #tpu.memory_space<vmem>>, vector<1x24x128xbf16>
    tpu.vector_store %arg9[%c17, %c0_14, %c0_15], %18 {strides = array<i32>} : memref<18x24x128xbf16, #tpu.memory_space<vmem>>, vector<1x24x128xbf16>,
    %cst_16 = arith.constant 0.000000e+00 : bf16
    %20 = vector.broadcast %cst_16 : bf16 to vector<16x1x128xbf16>
    %c1 = arith.constant 1 : index
    %c0_17 = arith.constant 0 : index
    %c0_18 = arith.constant 0 : index
    %21 = vector.load %arg9[%c1, %c0_17, %c0_18] : memref<18x24x128xbf16, #tpu.memory_space<vmem>>, vector<16x1x128xbf16>
    tpu.vector_store %arg9[%c1, %c0_17, %c0_18], %20 {strides = array<i32>} : memref<18x24x128xbf16, #tpu.memory_space<vmem>>, vector<16x1x128xbf16>,
    %cst_19 = arith.constant 0.000000e+00 : bf16
    %22 = vector.broadcast %cst_19 : bf16 to vector<16x1x128xbf16>
    %c1_20 = arith.constant 1 : index
    %c17_21 = arith.constant 17 : index
    %c0_22 = arith.constant 0 : index
    %23 = vector.load %arg9[%c1_20, %c17_21, %c0_22] : memref<18x24x128xbf16, #tpu.memory_space<vmem>>, vector<16x1x128xbf16>
    tpu.vector_store %arg9[%c1_20, %c17_21, %c0_22], %22 {strides = array<i32>} : memref<18x24x128xbf16, #tpu.memory_space<vmem>>, vector<16x1x128xbf16>,
    %24 = arith.truncf %15 : vector<256x128xf32> to vector<256x128xbf16>
    %25 = vector.shape_cast %24 : vector<256x128xbf16> to vector<16x16x128xbf16>
    %c1_23 = arith.constant 1 : index
    %c1_24 = arith.constant 1 : index
    %c0_25 = arith.constant 0 : index
    %26 = vector.load %arg9[%c1_23, %c1_24, %c0_25] : memref<18x24x128xbf16, #tpu.memory_space<vmem>>, vector<16x16x128xbf16>
    tpu.vector_store %arg9[%c1_23, %c1_24, %c0_25], %25 {strides = array<i32>} : memref<18x24x128xbf16, #tpu.memory_space<vmem>>, vector<16x16x128xbf16>,
    %c0_26 = arith.constant 0 : index
    %c0_27 = arith.constant 0 : index
    %c0_28 = arith.constant 0 : index
    %27 = vector.load %arg9[%c0_26, %c0_27, %c0_28] : memref<18x24x128xbf16, #tpu.memory_space<vmem>>, vector<16x16x128xbf16>
    %28 = vector.shape_cast %27 : vector<16x16x128xbf16> to vector<256x128xbf16>
    %c0_29 = arith.constant 0 : index
    %c0_30 = arith.constant 0 : index
    %29 = vector.load %arg10[%c0_29, %c0_30] : memref<256x384xbf16, #tpu.memory_space<vmem>>, vector<256x128xbf16>
    tpu.vector_store %arg10[%c0_29, %c0_30], %28 {strides = array<i32>} : memref<256x384xbf16, #tpu.memory_space<vmem>>, vector<256x128xbf16>,
    %c0_31 = arith.constant 0 : index
    %c1_32 = arith.constant 1 : index
    %c0_33 = arith.constant 0 : index
    %30 = vector.load %arg9[%c0_31, %c1_32, %c0_33] : memref<18x24x128xbf16, #tpu.memory_space<vmem>>, vector<16x16x128xbf16>
    %31 = vector.shape_cast %30 : vector<16x16x128xbf16> to vector<256x128xbf16>
    %c0_34 = arith.constant 0 : index
    %c128 = arith.constant 128 : index
    %32 = vector.load %arg10[%c0_34, %c128] : memref<256x384xbf16, #tpu.memory_space<vmem>>, vector<256x128xbf16>
    tpu.vector_store %arg10[%c0_34, %c128], %31 {strides = array<i32>} : memref<256x384xbf16, #tpu.memory_space<vmem>>, vector<256x128xbf16>,
    %c0_35 = arith.constant 0 : index
    %c2 = arith.constant 2 : index
    %c0_36 = arith.constant 0 : index
    %33 = vector.load %arg9[%c0_35, %c2, %c0_36] : memref<18x24x128xbf16, #tpu.memory_space<vmem>>, vector<16x16x128xbf16>
    %34 = vector.shape_cast %33 : vector<16x16x128xbf16> to vector<256x128xbf16>
    %c0_37 = arith.constant 0 : index
    %c256 = arith.constant 256 : index
    %35 = vector.load %arg10[%c0_37, %c256] : memref<256x384xbf16, #tpu.memory_space<vmem>>, vector<256x128xbf16>
    tpu.vector_store %arg10[%c0_37, %c256], %34 {strides = array<i32>} : memref<256x384xbf16, #tpu.memory_space<vmem>>, vector<256x128xbf16>,
    %c0_38 = arith.constant 0 : index
    %c0_39 = arith.constant 0 : index
    %36 = vector.load %arg10[%c0_38, %c0_39] : memref<256x384xbf16, #tpu.memory_space<vmem>>, vector<256x384xbf16>
    %c0_40 = arith.constant 0 : index
    %c0_41 = arith.constant 0 : index
    %37 = vector.load %arg5[%c0_40, %c0_41] : memref<1152x128xbf16, #tpu.memory_space<vmem>>, vector<384x128xbf16>
    %cst_42 = arith.constant dense<0.000000e+00> : vector<256x128xf32>
    %38 = tpu.matmul %36, %37, %cst_42 {dimension_numbers = #tpu.dot_dimension_numbers<[1], [0], [0], [1], [0, 0, 1, 1], [], []>} : vector<256x384xbf16>, vector<384x128xbf16>, vector<256x128xf32> -> vector<256x128xf32>
    %c1_43 = arith.constant 1 : index
    %c0_44 = arith.constant 0 : index
    %c0_45 = arith.constant 0 : index
    %39 = vector.load %arg9[%c1_43, %c0_44, %c0_45] : memref<18x24x128xbf16, #tpu.memory_space<vmem>>, vector<16x16x128xbf16>
    %40 = vector.shape_cast %39 : vector<16x16x128xbf16> to vector<256x128xbf16>
    %c0_46 = arith.constant 0 : index
    %c0_47 = arith.constant 0 : index
    %41 = vector.load %arg10[%c0_46, %c0_47] : memref<256x384xbf16, #tpu.memory_space<vmem>>, vector<256x128xbf16>
    tpu.vector_store %arg10[%c0_46, %c0_47], %40 {strides = array<i32>} : memref<256x384xbf16, #tpu.memory_space<vmem>>, vector<256x128xbf16>,
    %c1_48 = arith.constant 1 : index
    %c1_49 = arith.constant 1 : index
    %c0_50 = arith.constant 0 : index
    %42 = vector.load %arg9[%c1_48, %c1_49, %c0_50] : memref<18x24x128xbf16, #tpu.memory_space<vmem>>, vector<16x16x128xbf16>
    %43 = vector.shape_cast %42 : vector<16x16x128xbf16> to vector<256x128xbf16>
    %c0_51 = arith.constant 0 : index
    %c128_52 = arith.constant 128 : index
    %44 = vector.load %arg10[%c0_51, %c128_52] : memref<256x384xbf16, #tpu.memory_space<vmem>>, vector<256x128xbf16>
    tpu.vector_store %arg10[%c0_51, %c128_52], %43 {strides = array<i32>} : memref<256x384xbf16, #tpu.memory_space<vmem>>, vector<256x128xbf16>,
    %c1_53 = arith.constant 1 : index
    %c2_54 = arith.constant 2 : index
    %c0_55 = arith.constant 0 : index
    %45 = vector.load %arg9[%c1_53, %c2_54, %c0_55] : memref<18x24x128xbf16, #tpu.memory_space<vmem>>, vector<16x16x128xbf16>
    %46 = vector.shape_cast %45 : vector<16x16x128xbf16> to vector<256x128xbf16>
    %c0_56 = arith.constant 0 : index
    %c256_57 = arith.constant 256 : index
    %47 = vector.load %arg10[%c0_56, %c256_57] : memref<256x384xbf16, #tpu.memory_space<vmem>>, vector<256x128xbf16>
    tpu.vector_store %arg10[%c0_56, %c256_57], %46 {strides = array<i32>} : memref<256x384xbf16, #tpu.memory_space<vmem>>, vector<256x128xbf16>,
    %c0_58 = arith.constant 0 : index
    %c0_59 = arith.constant 0 : index
    %48 = vector.load %arg10[%c0_58, %c0_59] : memref<256x384xbf16, #tpu.memory_space<vmem>>, vector<256x384xbf16>
    %c384 = arith.constant 384 : index
    %c0_60 = arith.constant 0 : index
    %49 = vector.load %arg5[%c384, %c0_60] : memref<1152x128xbf16, #tpu.memory_space<vmem>>, vector<384x128xbf16>
    %cst_61 = arith.constant dense<0.000000e+00> : vector<256x128xf32>
    %50 = tpu.matmul %48, %49, %cst_61 {dimension_numbers = #tpu.dot_dimension_numbers<[1], [0], [0], [1], [0, 0, 1, 1], [], []>} : vector<256x384xbf16>, vector<384x128xbf16>, vector<256x128xf32> -> vector<256x128xf32>
    %51 = arith.addf %38, %50 : vector<256x128xf32>
    %c2_62 = arith.constant 2 : index
    %c0_63 = arith.constant 0 : index
    %c0_64 = arith.constant 0 : index
    %52 = vector.load %arg9[%c2_62, %c0_63, %c0_64] : memref<18x24x128xbf16, #tpu.memory_space<vmem>>, vector<16x16x128xbf16>
    %53 = vector.shape_cast %52 : vector<16x16x128xbf16> to vector<256x128xbf16>
    %c0_65 = arith.constant 0 : index
    %c0_66 = arith.constant 0 : index
    %54 = vector.load %arg10[%c0_65, %c0_66] : memref<256x384xbf16, #tpu.memory_space<vmem>>, vector<256x128xbf16>
    tpu.vector_store %arg10[%c0_65, %c0_66], %53 {strides = array<i32>} : memref<256x384xbf16, #tpu.memory_space<vmem>>, vector<256x128xbf16>,
    %c2_67 = arith.constant 2 : index
    %c1_68 = arith.constant 1 : index
    %c0_69 = arith.constant 0 : index
    %55 = vector.load %arg9[%c2_67, %c1_68, %c0_69] : memref<18x24x128xbf16, #tpu.memory_space<vmem>>, vector<16x16x128xbf16>
    %56 = vector.shape_cast %55 : vector<16x16x128xbf16> to vector<256x128xbf16>
    %c0_70 = arith.constant 0 : index
    %c128_71 = arith.constant 128 : index
    %57 = vector.load %arg10[%c0_70, %c128_71] : memref<256x384xbf16, #tpu.memory_space<vmem>>, vector<256x128xbf16>
    tpu.vector_store %arg10[%c0_70, %c128_71], %56 {strides = array<i32>} : memref<256x384xbf16, #tpu.memory_space<vmem>>, vector<256x128xbf16>,
    %c2_72 = arith.constant 2 : index
    %c2_73 = arith.constant 2 : index
    %c0_74 = arith.constant 0 : index
    %58 = vector.load %arg9[%c2_72, %c2_73, %c0_74] : memref<18x24x128xbf16, #tpu.memory_space<vmem>>, vector<16x16x128xbf16>
    %59 = vector.shape_cast %58 : vector<16x16x128xbf16> to vector<256x128xbf16>
    %c0_75 = arith.constant 0 : index
    %c256_76 = arith.constant 256 : index
    %60 = vector.load %arg10[%c0_75, %c256_76] : memref<256x384xbf16, #tpu.memory_space<vmem>>, vector<256x128xbf16>
    tpu.vector_store %arg10[%c0_75, %c256_76], %59 {strides = array<i32>} : memref<256x384xbf16, #tpu.memory_space<vmem>>, vector<256x128xbf16>,
    %c0_77 = arith.constant 0 : index
    %c0_78 = arith.constant 0 : index
    %61 = vector.load %arg10[%c0_77, %c0_78] : memref<256x384xbf16, #tpu.memory_space<vmem>>, vector<256x384xbf16>
    %c768 = arith.constant 768 : index
    %c0_79 = arith.constant 0 : index
    %62 = vector.load %arg5[%c768, %c0_79] : memref<1152x128xbf16, #tpu.memory_space<vmem>>, vector<384x128xbf16>
    %cst_80 = arith.constant dense<0.000000e+00> : vector<256x128xf32>
    %63 = tpu.matmul %61, %62, %cst_80 {dimension_numbers = #tpu.dot_dimension_numbers<[1], [0], [0], [1], [0, 0, 1, 1], [], []>} : vector<256x384xbf16>, vector<384x128xbf16>, vector<256x128xf32> -> vector<256x128xf32>
    %64 = arith.addf %51, %63 : vector<256x128xf32>
    %c0_81 = arith.constant 0 : index
    %c0_82 = arith.constant 0 : index
    %65 = vector.load %arg6[%c0_81, %c0_82] : memref<1x128xf32, #tpu.memory_space<vmem>>, vector<1x128xf32>
    %66 = vector.shape_cast %65 : vector<1x128xf32> to vector<128xf32>
    %67 = vector.shape_cast %66 : vector<128xf32> to vector<1x128xf32>
    %68 = vector.broadcast %67 : vector<1x128xf32> to vector<256x128xf32>
    %69 = arith.mulf %64, %68 : vector<256x128xf32>
    %c0_83 = arith.constant 0 : index
    %c0_84 = arith.constant 0 : index
    %70 = vector.load %arg7[%c0_83, %c0_84] : memref<1x128xf32, #tpu.memory_space<vmem>>, vector<1x128xf32>
    %71 = vector.shape_cast %70 : vector<1x128xf32> to vector<128xf32>
    %72 = vector.shape_cast %71 : vector<128xf32> to vector<1x128xf32>
    %73 = vector.broadcast %72 : vector<1x128xf32> to vector<256x128xf32>
    %74 = arith.addf %69, %73 : vector<256x128xf32>
    %cst_85 = arith.constant 0.000000e+00 : f32
    %75 = vector.broadcast %cst_85 : f32 to vector<256x128xf32>
    %76 = arith.maximumf %74, %75 : vector<256x128xf32>
    %77 = tpu.transpose %76, [1, 0] : vector<256x128xf32> -> vector<128x256xf32>
    %78 = vector.extract_strided_slice %77 {offsets = [0, 0], sizes = [8, 256], strides = [1, 1]} : vector<128x256xf32> to vector<8x256xf32>
    %c0_86 = arith.constant 0 : index
    %c0_87 = arith.constant 0 : index
    %c0_88 = arith.constant 0 : index
    %79 = vector.load %arg8[%c0_86, %c0_87, %c0_88] : memref<1x8x256xf32, #tpu.memory_space<vmem>>, vector<1x8x256xf32>
    %80 = vector.shape_cast %79 : vector<1x8x256xf32> to vector<8x256xf32>
    %81 = vector.shape_cast %78 : vector<8x256xf32> to vector<1x8x256xf32>
    tpu.vector_store %arg8[%c0_86, %c0_87, %c0_88], %81 {strides = array<i32>} : memref<1x8x256xf32, #tpu.memory_space<vmem>>, vector<1x8x256xf32>,
    return
  }
  func.func @transform_0(%arg0: i32) -> (i32, i32, i32) {
    %c0_i32 = arith.constant 0 : i32
    %c0_i32_0 = arith.constant 0 : i32
    %c0_i32_1 = arith.constant 0 : i32
    return %arg0, %c0_i32, %c0_i32_0 : i32, i32, i32
  }
  func.func @transform_1(%arg0: i32) -> (i32, i32) {
    %c0_i32 = arith.constant 0 : i32
    %c0_i32_0 = arith.constant 0 : i32
    %c0_i32_1 = arith.constant 0 : i32
    return %c0_i32, %c0_i32_0 : i32, i32
  }
  func.func @transform_2(%arg0: i32) -> (i32, i32) {
    %c0_i32 = arith.constant 0 : i32
    %c0_i32_0 = arith.constant 0 : i32
    %c0_i32_1 = arith.constant 0 : i32
    return %c0_i32, %c0_i32_0 : i32, i32
  }
  func.func @transform_3(%arg0: i32) -> (i32, i32) {
    %c0_i32 = arith.constant 0 : i32
    %c0_i32_0 = arith.constant 0 : i32
    %c0_i32_1 = arith.constant 0 : i32
    return %c0_i32, %c0_i32_0 : i32, i32
  }
  func.func @transform_4(%arg0: i32) -> (i32, i32) {
    %c0_i32 = arith.constant 0 : i32
    %c0_i32_0 = arith.constant 0 : i32
    %c0_i32_1 = arith.constant 0 : i32
    return %c0_i32, %c0_i32_0 : i32, i32
  }
  func.func @transform_5(%arg0: i32) -> (i32, i32) {
    %c0_i32 = arith.constant 0 : i32
    %c0_i32_0 = arith.constant 0 : i32
    %c0_i32_1 = arith.constant 0 : i32
    return %c0_i32, %c0_i32_0 : i32, i32
  }
  func.func @transform_6(%arg0: i32) -> (i32, i32) {
    %c0_i32 = arith.constant 0 : i32
    %c0_i32_0 = arith.constant 0 : i32
    %c0_i32_1 = arith.constant 0 : i32
    return %c0_i32, %c0_i32_0 : i32, i32
  }
  func.func @transform_7(%arg0: i32) -> (i32, i32, i32) {
    %c0_i32 = arith.constant 0 : i32
    %c0_i32_0 = arith.constant 0 : i32
    %c0_i32_1 = arith.constant 0 : i32
    return %arg0, %c0_i32, %c0_i32_0 : i32, i32, i32
  }
}

</mosaic_0001>

<llo_original>
// kernel: inconv_forward.1
$region0: #{inconv_forward.1}
  #allocation0 [shape = 'u32[]', space=smem, size = 0x4, offset = 0x4, fixed_abs, tag = 'smem constant byte address 0x4 - core index']
  #allocation1 [shape = 'u32[144,128]{1,0:T(1,128)}', space=vmem, size = 0x12000, scoped, tag = 'internal scratch']
  #allocation2 [shape = 'bf16[18,24,128]{2,1,0:T(8,128)(2,1)}', space=vmem, size = 0x1b000, scoped, tag = 'scratch operand']
  #allocation3 [shape = 'bf16[256,384]{1,0:T(8,128)(2,1)}', space=vmem, size = 0x30000, scoped, tag = 'scratch operand']
  %s0 = inlined_call_operand.vmem [shape: bf16[2,256,128], index: 0, kind: input, shape index: {}]
  %s1 = inlined_call_operand.vmem [shape: bf16[128,128], index: 1, kind: input, shape index: {}]
  %s2 = inlined_call_operand.vmem [shape: f32[1,128], index: 2, kind: input, shape index: {}]
  %s3 = inlined_call_operand.vmem [shape: f32[1,128], index: 3, kind: input, shape index: {}]
  %s4 = inlined_call_operand.vmem [shape: bf16[1152,128], index: 4, kind: input, shape index: {}]
  %s5 = inlined_call_operand.vmem [shape: f32[1,128], index: 5, kind: input, shape index: {}]
  %s6 = inlined_call_operand.vmem [shape: f32[1,128], index: 6, kind: input, shape index: {}]
  %s7 = inlined_call_operand.vmem [shape: f32[2,8,256], index: 7, kind: output, shape index: {}]
  %s8 = sld [smem:[#allocation0]]
  $region61: #{inconv_forward.1} parent=0
    _
  %s10 = ssub.s32 1, %s8
  %s11 = scalar_select 0, %s10, %s8
  loop: start=0, step=1, limit=4
  $region2: #{inconv_forward.1} parent=0 // loop_pre_header
    _
  $region3: #{inconv_forward.1} parent=0 // loop_header
    %s13 = sphi 0, %s17
    %p14 = scmp.ge.s32.totalorder %s13, 4
    %s23 = sphi 0, %s25
    %s26 = sphi 0, %s23
    %s27 = sphi 0, %s26
    %s43 = sphi 0, %s27
    %s47 = sphi 0, %s47
    %s49 = sphi 0, %s47
    %s50 = sphi 0, %s49
    %s64 = sphi 0, %s50
    %s68 = sphi 0, %s68
    %s70 = sphi 0, %s68
    %s71 = sphi 0, %s70
    %s85 = sphi 0, %s71
    %s89 = sphi 0, %s89
    %s91 = sphi 0, %s89
    %s92 = sphi 0, %s91
    %s106 = sphi 0, %s92
    %s110 = sphi 0, %s110
    %s112 = sphi 0, %s110
    %s113 = sphi 0, %s112
    %s127 = sphi 0, %s113
    %s131 = sphi 0, %s131
    %s133 = sphi 0, %s131
    %s134 = sphi 0, %s133
    %s148 = sphi 0, %s134
    %s152 = sphi 0, %s152
    %s154 = sphi 0, %s152
    %s155 = sphi 0, %s154
    %s169 = sphi 0, %s155
    %s175 = sphi 0, %s177
    %s178 = sphi 0, %s175
    %s179 = sphi 0, %s178
    %s195 = sphi 0, %s179
  $region4: #{inconv_forward.1} parent=0 // loop_header_branch
    %16 = sbr.rel (%p14) target = $region8
  $region5: #{inconv_forward.1} parent=0 // loop_body
    %s18 = ssub.s32 %s13, 1
    %s19 = ssub.s32 %s13, 2
    %s20 = sadd.s32 %s13, 1
    %s21 = ssub.s32 %s13, %s20
    %p22 = scmp.eq.s32.totalorder %s21, 0
    %s24 = sadd.s32 %s23, 1
    %s25 = scalar_select %p22, %s23, %s24
    %p28 = pneg %p22
    %p29 = scmp.eq.s32.totalorder %s13, 1
    %p30 = por %p28, %p29
    %p31 = scmp.ne.s32.totalorder %s23, %s26
    %p32 = scmp.eq.s32.totalorder %s13, 0
    %p33 = por %p31, %p32
    %p34 = scmp.ne.s32.totalorder %s23, %s26
    %p35 = scmp.eq.s32.totalorder %s18, 1
    %p36 = por %p34, %p35
    %p37 = scmp.ne.s32.totalorder %s26, %s27
    %p38 = scmp.eq.s32.totalorder %s18, 0
    %p39 = por %p37, %p38
    %p40 = scmp.ne.s32.totalorder %s26, %s27
    %p41 = scmp.eq.s32.totalorder %s19, 1
    %p42 = por %p40, %p41
    %p44 = scmp.ne.s32.totalorder %s27, %s43
    %p45 = scmp.eq.s32.totalorder %s19, 0
    %p46 = por %p44, %p45
    %s48 = sadd.s32 %s47, 1
    %p51 = scmp.eq.s32.totalorder %s13, 1
    %p52 = scmp.ne.s32.totalorder %s47, %s49
    %p53 = scmp.eq.s32.totalorder %s13, 0
    %p54 = por %p52, %p53
    %p55 = scmp.ne.s32.totalorder %s47, %s49
    %p56 = scmp.eq.s32.totalorder %s18, 1
    %p57 = por %p55, %p56
    %p58 = scmp.ne.s32.totalorder %s49, %s50
    %p59 = scmp.eq.s32.totalorder %s18, 0
    %p60 = por %p58, %p59
    %p61 = scmp.ne.s32.totalorder %s49, %s50
    %p62 = scmp.eq.s32.totalorder %s19, 1
    %p63 = por %p61, %p62
    %p65 = scmp.ne.s32.totalorder %s50, %s64
    %p66 = scmp.eq.s32.totalorder %s19, 0
    %p67 = por %p65, %p66
    %s69 = sadd.s32 %s68, 1
    %p72 = scmp.eq.s32.totalorder %s13, 1
    %p73 = scmp.ne.s32.totalorder %s68, %s70
    %p74 = scmp.eq.s32.totalorder %s13, 0
    %p75 = por %p73, %p74
    %p76 = scmp.ne.s32.totalorder %s68, %s70
    %p77 = scmp.eq.s32.totalorder %s18, 1
    %p78 = por %p76, %p77
    %p79 = scmp.ne.s32.totalorder %s70, %s71
    %p80 = scmp.eq.s32.totalorder %s18, 0
    %p81 = por %p79, %p80
    %p82 = scmp.ne.s32.totalorder %s70, %s71
    %p83 = scmp.eq.s32.totalorder %s19, 1
    %p84 = por %p82, %p83
    %p86 = scmp.ne.s32.totalorder %s71, %s85
    %p87 = scmp.eq.s32.totalorder %s19, 0
    %p88 = por %p86, %p87
    %s90 = sadd.s32 %s89, 1
    %p93 = scmp.eq.s32.totalorder %s13, 1
    %p94 = scmp.ne.s32.totalorder %s89, %s91
    %p95 = scmp.eq.s32.totalorder %s13, 0
    %p96 = por %p94, %p95
    %p97 = scmp.ne.s32.totalorder %s89, %s91
    %p98 = scmp.eq.s32.totalorder %s18, 1
    %p99 = por %p97, %p98
    %p100 = scmp.ne.s32.totalorder %s91, %s92
    %p101 = scmp.eq.s32.totalorder %s18, 0
    %p102 = por %p100, %p101
    %p103 = scmp.ne.s32.totalorder %s91, %s92
    %p104 = scmp.eq.s32.totalorder %s19, 1
    %p105 = por %p103, %p104
    %p107 = scmp.ne.s32.totalorder %s92, %s106
    %p108 = scmp.eq.s32.totalorder %s19, 0
    %p109 = por %p107, %p108
    %s111 = sadd.s32 %s110, 1
    %p114 = scmp.eq.s32.totalorder %s13, 1
    %p115 = scmp.ne.s32.totalorder %s110, %s112
    %p116 = scmp.eq.s32.totalorder %s13, 0
    %p117 = por %p115, %p116
    %p118 = scmp.ne.s32.totalorder %s110, %s112
    %p119 = scmp.eq.s32.totalorder %s18, 1
    %p120 = por %p118, %p119
    %p121 = scmp.ne.s32.totalorder %s112, %s113
    %p122 = scmp.eq.s32.totalorder %s18, 0
    %p123 = por %p121, %p122
    %p124 = scmp.ne.s32.totalorder %s112, %s113
    %p125 = scmp.eq.s32.totalorder %s19, 1
    %p126 = por %p124, %p125
    %p128 = scmp.ne.s32.totalorder %s113, %s127
    %p129 = scmp.eq.s32.totalorder %s19, 0
    %p130 = por %p128, %p129
    %s132 = sadd.s32 %s131, 1
    %p135 = scmp.eq.s32.totalorder %s13, 1
    %p136 = scmp.ne.s32.totalorder %s131, %s133
    %p137 = scmp.eq.s32.totalorder %s13, 0
    %p138 = por %p136, %p137
    %p139 = scmp.ne.s32.totalorder %s131, %s133
    %p140 = scmp.eq.s32.totalorder %s18, 1
    %p141 = por %p139, %p140
    %p142 = scmp.ne.s32.totalorder %s133, %s134
    %p143 = scmp.eq.s32.totalorder %s18, 0
    %p144 = por %p142, %p143
    %p145 = scmp.ne.s32.totalorder %s133, %s134
    %p146 = scmp.eq.s32.totalorder %s19, 1
    %p147 = por %p145, %p146
    %p149 = scmp.ne.s32.totalorder %s134, %s148
    %p150 = scmp.eq.s32.totalorder %s19, 0
    %p151 = por %p149, %p150
    %s153 = sadd.s32 %s152, 1
    %p156 = scmp.eq.s32.totalorder %s13, 1
    %p157 = scmp.ne.s32.totalorder %s152, %s154
    %p158 = scmp.eq.s32.totalorder %s13, 0
    %p159 = por %p157, %p158
    %p160 = scmp.ne.s32.totalorder %s152, %s154
    %p161 = scmp.eq.s32.totalorder %s18, 1
    %p162 = por %p160, %p161
    %p163 = scmp.ne.s32.totalorder %s154, %s155
    %p164 = scmp.eq.s32.totalorder %s18, 0
    %p165 = por %p163, %p164
    %p166 = scmp.ne.s32.totalorder %s154, %s155
    %p167 = scmp.eq.s32.totalorder %s19, 1
    %p168 = por %p166, %p167
    %p170 = scmp.ne.s32.totalorder %s155, %s169
    %p171 = scmp.eq.s32.totalorder %s19, 0
    %p172 = por %p170, %p171
    %s173 = ssub.s32 %s13, %s20
    %p174 = scmp.eq.s32.totalorder %s173, 0
    %s176 = sadd.s32 %s175, 1
    %s177 = scalar_select %p174, %s175, %s176
    %p180 = pneg %p174
    %p181 = scmp.eq.s32.totalorder %s13, 1
    %p182 = por %p180, %p181
    %p183 = scmp.ne.s32.totalorder %s175, %s178
    %p184 = scmp.eq.s32.totalorder %s13, 0
    %p185 = por %p183, %p184
    %p186 = scmp.ne.s32.totalorder %s175, %s178
    %p187 = scmp.eq.s32.totalorder %s18, 1
    %p188 = por %p186, %p187
    %p189 = scmp.ne.s32.totalorder %s178, %s179
    %p190 = scmp.eq.s32.totalorder %s18, 0
    %p191 = por %p189, %p190
    %p192 = scmp.ne.s32.totalorder %s178, %s179
    %p193 = scmp.eq.s32.totalorder %s19, 1
    %p194 = por %p192, %p193
    %p196 = scmp.ne.s32.totalorder %s179, %s195
    %p197 = scmp.eq.s32.totalorder %s19, 0
    %p198 = por %p196, %p197
    %p199 = scmp.le.s32.totalorder 1, %s13
    %p200 = scmp.lt.s32.totalorder %s13, 3
    %p201 = pnand %p199, %p200
    %p202 = pneg %p201
    // Predicated region
    $region9: #{inconv_forward.1} parent=5 // pred_check
      _
    $region10: #{inconv_forward.1} parent=5 // pred_check_branch
      %204 = sbr.rel (%p201) target = $region12
    $region11: #{inconv_forward.1} parent=5 // pred_region
      %s205 = ssub.s32 %s13, 1
      // Predicated region
      $region13: #{inconv_forward.1} parent=11 // pred_check
        %p206 = pneg %p60
      $region14: #{inconv_forward.1} parent=11 // pred_check_branch
        %208 = sbr.rel (%p206) target = $region16
      $region15: #{inconv_forward.1} parent=11 // pred_region
        _
      $region16: #{inconv_forward.1} parent=11 // pred_fallthru
        _
      // Predicated region
      $region17: #{inconv_forward.1} parent=11 // pred_check
        %p209 = pneg %p81
      $region18: #{inconv_forward.1} parent=11 // pred_check_branch
        %211 = sbr.rel (%p209) target = $region20
      $region19: #{inconv_forward.1} parent=11 // pred_region
        _
      $region20: #{inconv_forward.1} parent=11 // pred_fallthru
        _
      // Predicated region
      $region21: #{inconv_forward.1} parent=11 // pred_check
        %p212 = pneg %p102
      $region22: #{inconv_forward.1} parent=11 // pred_check_branch
        %214 = sbr.rel (%p212) target = $region24
      $region23: #{inconv_forward.1} parent=11 // pred_region
        _
      $region24: #{inconv_forward.1} parent=11 // pred_fallthru
        _
      // Predicated region
      $region25: #{inconv_forward.1} parent=11 // pred_check
        %p215 = pneg %p123
      $region26: #{inconv_forward.1} parent=11 // pred_check_branch
        %217 = sbr.rel (%p215) target = $region28
      $region27: #{inconv_forward.1} parent=11 // pred_region
        _
      $region28: #{inconv_forward.1} parent=11 // pred_fallthru
        _
      // Predicated region
      $region29: #{inconv_forward.1} parent=11 // pred_check
        %p218 = pneg %p144
      $region30: #{inconv_forward.1} parent=11 // pred_check_branch
        %220 = sbr.rel (%p218) target = $region32
      $region31: #{inconv_forward.1} parent=11 // pred_region
        _
      $region32: #{inconv_forward.1} parent=11 // pred_fallthru
        _
      // Predicated region
      $region33: #{inconv_forward.1} parent=11 // pred_check
        %p221 = pneg %p165
      $region34: #{inconv_forward.1} parent=11 // pred_check_branch
        %223 = sbr.rel (%p221) target = $region36
      $region35: #{inconv_forward.1} parent=11 // pred_region
        _
      $region36: #{inconv_forward.1} parent=11 // pred_fallthru
        _
    $region12: #{inconv_forward.1} parent=5 // pred_fallthru
      _
    %p224 = scmp.lt.s32.totalorder %s13, 2
    // Predicated region
    $region37: #{inconv_forward.1} parent=5 // pred_check
      %p225 = pneg %p224
    $region38: #{inconv_forward.1} parent=5 // pred_check_branch
      %227 = sbr.rel (%p225) target = $region40
    $region39: #{inconv_forward.1} parent=5 // pred_region
      // Predicated region
      $region41: #{inconv_forward.1} parent=39 // pred_check
        %p228 = pneg %p33
      $region42: #{inconv_forward.1} parent=39 // pred_check_branch
        %230 = sbr.rel (%p228) target = $region44
      $region43: #{inconv_forward.1} parent=39 // pred_region
        %p231 = scmp.lt.s32.totalorder %s13, 1
        %s232 = scalar_select %p231, %s13, 1
        %s233 = smul.addr %s232, 32
        %s234 = smul.addr %s233, 4
        %s235 = scalar_lea.vmem %s0, %s234
      $region44: #{inconv_forward.1} parent=39 // pred_fallthru
        _
    $region40: #{inconv_forward.1} parent=5 // pred_fallthru
      _
    %p236 = scmp.le.s32.totalorder 1, %s13
    %p237 = scmp.lt.s32.totalorder %s13, 3
    %p238 = pnand %p236, %p237
    %p239 = pneg %p238
    // Predicated region
    $region45: #{inconv_forward.1} parent=5 // pred_check
      _
    $region46: #{inconv_forward.1} parent=5 // pred_check_branch
      %241 = sbr.rel (%p238) target = $region48
    $region47: #{inconv_forward.1} parent=5 // pred_region
      %s242 = ssub.s32 %s13, 1
      %p243 = scmp.lt.s32.totalorder %s18, 1
      %s244 = scalar_select %p243, %s18, 1
      %s245 = smul.addr %s244, 32
      %s246 = smul.addr %s245, 4
      %s247 = scalar_lea.vmem %s0, %s246
      %p248 = pneg %p39
      %p249 = pneg %p36
      %p250 = pneg %p60
      %p251 = pneg %p57
      %p252 = pneg %p81
      %p253 = pneg %p78
      %p254 = pneg %p102
      %p255 = pneg %p99
      %p256 = pneg %p123
      %p257 = pneg %p120
      %p258 = pneg %p144
      %p259 = pneg %p141
      %p260 = pneg %p165
      %p261 = pneg %p162
      %p262 = pneg %p191
      %p263 = pneg %p188
      %p264 = scmp.lt.s32.totalorder %s18, 1
      %s265 = scalar_select %p264, %s18, 1
      %s266 = smul.addr %s265, 2
      %s267 = smul.addr %s266, 8
      %s268 = scalar_lea.vmem %s7, %s267
      %p269 = scmp.lt.s32.totalorder %s18, 1
      %s270 = scalar_select %p269, %s18, 1
      %s271 = smul.addr %s270, 32
      %s272 = smul.addr %s271, 4
      %s273 = scalar_lea.vmem %s0, %s272
      %p274 = scmp.lt.s32.totalorder %s18, 1
      %s275 = scalar_select %p274, %s18, 1
      %s276 = smul.addr %s275, 2
      %s277 = smul.addr %s276, 8
      %s278 = scalar_lea.vmem %s7, %s277
      %v280 = vld [vmem:[%s273] sm:$0xf]
      %v281 = vld [vmem:[%s273 + $0x4] sm:$0xf]
      %v282 = vld [vmem:[%s273 + $0x8] sm:$0xf]
      %v283 = vld [vmem:[%s273 + $0xc] sm:$0xf]
      %v284 = vld [vmem:[%s273 + $0x10] sm:$0xf]
      %v285 = vld [vmem:[%s273 + $0x14] sm:$0xf]
      %v286 = vld [vmem:[%s273 + $0x18] sm:$0xf]
      %v287 = vld [vmem:[%s273 + $0x1c] sm:$0xf]
      %v288 = vld [vmem:[%s273 + $0x20] sm:$0xf]
      %v289 = vld [vmem:[%s273 + $0x24] sm:$0xf]
      %v290 = vld [vmem:[%s273 + $0x28] sm:$0xf]
      %v291 = vld [vmem:[%s273 + $0x2c] sm:$0xf]
      %v292 = vld [vmem:[%s273 + $0x30] sm:$0xf]
      %v293 = vld [vmem:[%s273 + $0x34] sm:$0xf]
      %v294 = vld [vmem:[%s273 + $0x38] sm:$0xf]
      %v295 = vld [vmem:[%s273 + $0x3c] sm:$0xf]
      %v296 = vld [vmem:[%s273 + $0x40] sm:$0xf]
      %v297 = vld [vmem:[%s273 + $0x44] sm:$0xf]
      %v298 = vld [vmem:[%s273 + $0x48] sm:$0xf]
      %v299 = vld [vmem:[%s273 + $0x4c] sm:$0xf]
      %v300 = vld [vmem:[%s273 + $0x50] sm:$0xf]
      %v301 = vld [vmem:[%s273 + $0x54] sm:$0xf]
      %v302 = vld [vmem:[%s273 + $0x58] sm:$0xf]
      %v303 = vld [vmem:[%s273 + $0x5c] sm:$0xf]
      %v304 = vld [vmem:[%s273 + $0x60] sm:$0xf]
      %v305 = vld [vmem:[%s273 + $0x64] sm:$0xf]
      %v306 = vld [vmem:[%s273 + $0x68] sm:$0xf]
      %v307 = vld [vmem:[%s273 + $0x6c] sm:$0xf]
      %v308 = vld [vmem:[%s273 + $0x70] sm:$0xf]
      %v309 = vld [vmem:[%s273 + $0x74] sm:$0xf]
      %v310 = vld [vmem:[%s273 + $0x78] sm:$0xf]
      %v311 = vld [vmem:[%s273 + $0x7c] sm:$0xf]
      %v312 = vld [vmem:[%s1] sm:$0xf]
      %v313 = vld [vmem:[%s1 + $0x4] sm:$0xf]
      %v314 = vld [vmem:[%s1 + $0x8] sm:$0xf]
      %v315 = vld [vmem:[%s1 + $0xc] sm:$0xf]
      %v316 = vld [vmem:[%s1 + $0x10] sm:$0xf]
      %v317 = vld [vmem:[%s1 + $0x14] sm:$0xf]
      %v318 = vld [vmem:[%s1 + $0x18] sm:$0xf]
      %v319 = vld [vmem:[%s1 + $0x1c] sm:$0xf]
      %v320 = vld [vmem:[%s1 + $0x20] sm:$0xf]
      %v321 = vld [vmem:[%s1 + $0x24] sm:$0xf]
      %v322 = vld [vmem:[%s1 + $0x28] sm:$0xf]
      %v323 = vld [vmem:[%s1 + $0x2c] sm:$0xf]
      %v324 = vld [vmem:[%s1 + $0x30] sm:$0xf]
      %v325 = vld [vmem:[%s1 + $0x34] sm:$0xf]
      %v326 = vld [vmem:[%s1 + $0x38] sm:$0xf]
      %v327 = vld [vmem:[%s1 + $0x3c] sm:$0xf]
      %v360 = vunpack.c.l.b16 %v280
      %v361 = vunpack.c.l.b16 %v281
      %v362 = vunpack.c.l.b16 %v282
      %v363 = vunpack.c.l.b16 %v283
      %v364 = vunpack.c.l.b16 %v284
      %v365 = vunpack.c.l.b16 %v285
      %v366 = vunpack.c.l.b16 %v286
      %v367 = vunpack.c.l.b16 %v287
      %v368 = vunpack.c.l.b16 %v288
      %v369 = vunpack.c.l.b16 %v289
      %v370 = vunpack.c.l.b16 %v290
      %v371 = vunpack.c.l.b16 %v291
      %v372 = vunpack.c.l.b16 %v292
      %v373 = vunpack.c.l.b16 %v293
      %v374 = vunpack.c.l.b16 %v294
      %v375 = vunpack.c.l.b16 %v295
      %v376 = vunpack.c.l.b16 %v296
      %v377 = vunpack.c.l.b16 %v297
      %v378 = vunpack.c.l.b16 %v298
      %v379 = vunpack.c.l.b16 %v299
      %v380 = vunpack.c.l.b16 %v300
      %v381 = vunpack.c.l.b16 %v301
      %v382 = vunpack.c.l.b16 %v302
      %v383 = vunpack.c.l.b16 %v303
      %v384 = vunpack.c.l.b16 %v304
      %v385 = vunpack.c.l.b16 %v305
      %v386 = vunpack.c.l.b16 %v306
      %v387 = vunpack.c.l.b16 %v307
      %v388 = vunpack.c.l.b16 %v308
      %v389 = vunpack.c.l.b16 %v309
      %v390 = vunpack.c.l.b16 %v310
      %v391 = vunpack.c.l.b16 %v311
      %v392 = vpack.c.b16 %v361, %v360
      %v393 = vpack.c.b16 %v363, %v362
      %v394 = vpack.c.b16 %v365, %v364
      %v395 = vpack.c.b16 %v367, %v366
      %v396 = vpack.c.b16 %v369, %v368
      %v397 = vpack.c.b16 %v371, %v370
      %v398 = vpack.c.b16 %v373, %v372
      %v399 = vpack.c.b16 %v375, %v374
      %v400 = vpack.c.b16 %v377, %v376
      %v401 = vpack.c.b16 %v379, %v378
      %v402 = vpack.c.b16 %v381, %v380
      %v403 = vpack.c.b16 %v383, %v382
      %v404 = vpack.c.b16 %v385, %v384
      %v405 = vpack.c.b16 %v387, %v386
      %v406 = vpack.c.b16 %v389, %v388
      %v407 = vpack.c.b16 %v391, %v390
      %v440 = vunpack.c.l.b16 %v312
      %v441 = vunpack.c.l.b16 %v313
      %v442 = vunpack.c.l.b16 %v314
      %v443 = vunpack.c.l.b16 %v315
      %v444 = vunpack.c.l.b16 %v316
      %v445 = vunpack.c.l.b16 %v317
      %v446 = vunpack.c.l.b16 %v318
      %v447 = vunpack.c.l.b16 %v319
      %v448 = vunpack.c.l.b16 %v320
      %v449 = vunpack.c.l.b16 %v321
      %v450 = vunpack.c.l.b16 %v322
      %v451 = vunpack.c.l.b16 %v323
      %v452 = vunpack.c.l.b16 %v324
      %v453 = vunpack.c.l.b16 %v325
      %v454 = vunpack.c.l.b16 %v326
      %v455 = vunpack.c.l.b16 %v327
      %v456 = vpack.c.b16 %v441, %v440
      %v457 = vpack.c.b16 %v443, %v442
      %v458 = vpack.c.b16 %v445, %v444
      %v459 = vpack.c.b16 %v447, %v446
      %v460 = vpack.c.b16 %v449, %v448
      %v461 = vpack.c.b16 %v451, %v450
      %v462 = vpack.c.b16 %v453, %v452
      %v463 = vpack.c.b16 %v455, %v454
      %472 = vmatprep.subr.bf16.mxu0 0
      %473 = vmatpush1.bf16.msra.mxu0 %v463
      %474 = vmatprep.subr.bf16.mxu0 0
      %475 = vmatpush1.bf16.msra.mxu0 %v462
      %476 = vmatprep.subr.bf16.mxu0 0
      %477 = vmatpush1.bf16.msra.mxu0 %v461
      %478 = vmatprep.subr.bf16.mxu0 0
      %479 = vmatpush1.bf16.msra.mxu0 %v460
      %480 = vmatprep.subr.bf16.mxu0 0
      %481 = vmatpush1.bf16.msra.mxu0 %v459
      %482 = vmatprep.subr.bf16.mxu0 0
      %483 = vmatpush1.bf16.msra.mxu0 %v458
      %484 = vmatprep.subr.bf16.mxu0 0
      %485 = vmatpush1.bf16.msra.mxu0 %v457
      %486 = vmatprep.subr.bf16.mxu0 0
      %487 = vmatpush1.bf16.msra.mxu0 %v456
      %488 = vmatprep.subr.bf16.mxu0 0
      %489 = vmatpush2.bf16.msra.mxu0 0
      %490 = vmatprep.subr.bf16.mxu0 0
      %491 = vmatpush2.bf16.msra.mxu0 0
      %492 = vmatprep.subr.bf16.mxu0 0
      %493 = vmatpush2.bf16.msra.mxu0 0
      %494 = vmatprep.subr.bf16.mxu0 0
      %495 = vmatpush2.bf16.msra.mxu0 0
      %496 = vmatprep.subr.bf16.mxu0 0
      %497 = vmatpush2.bf16.msra.mxu0 0
      %498 = vmatprep.subr.bf16.mxu0 0
      %499 = vmatpush2.bf16.msra.mxu0 0
      %500 = vmatprep.subr.bf16.mxu0 0
      %501 = vmatpush2.bf16.msra.mxu0 0
      %502 = vmatprep.subr.bf16.mxu0 0
      %503 = vmatpush2.bf16.msra.mxu0 0
      %504 = vmatprep.mubr.bf16.mxu0 0
      %505 = vmatmul.mubr.bf16.gmra.mxu0 %v392
      %v506 = vpop.f32.mrf.mxu0
      %v507 = vadd.f32 0.0, %v506
      %v508 = vpop.f32.mrf.mxu0
      %v509 = vpop.f32.mrf.mxu0
      %v510 = vadd.f32 0.0, %v509
      %v511 = vpop.f32.mrf.mxu0
      %512 = vmatprep.mubr.bf16.mxu0 0
      %513 = vmatmul.mubr.bf16.gmra.mxu0 %v393
      %v514 = vpop.f32.mrf.mxu0
      %v515 = vadd.f32 0.0, %v514
      %v516 = vpop.f32.mrf.mxu0
      %v517 = vpop.f32.mrf.mxu0
      %v518 = vadd.f32 0.0, %v517
      %v519 = vpop.f32.mrf.mxu0
      %520 = vmatprep.mubr.bf16.mxu0 0
      %521 = vmatmul.mubr.bf16.gmra.mxu0 %v394
      %v522 = vpop.f32.mrf.mxu0
      %v523 = vadd.f32 0.0, %v522
      %v524 = vpop.f32.mrf.mxu0
      %v525 = vpop.f32.mrf.mxu0
      %v526 = vadd.f32 0.0, %v525
      %v527 = vpop.f32.mrf.mxu0
      %528 = vmatprep.mubr.bf16.mxu0 0
      %529 = vmatmul.mubr.bf16.gmra.mxu0 %v395
      %v530 = vpop.f32.mrf.mxu0
      %v531 = vadd.f32 0.0, %v530
      %v532 = vpop.f32.mrf.mxu0
      %v533 = vpop.f32.mrf.mxu0
      %v534 = vadd.f32 0.0, %v533
      %v535 = vpop.f32.mrf.mxu0
      %536 = vmatprep.mubr.bf16.mxu0 0
      %537 = vmatmul.mubr.bf16.gmra.mxu0 %v396
      %v538 = vpop.f32.mrf.mxu0
      %v539 = vadd.f32 0.0, %v538
      %v540 = vpop.f32.mrf.mxu0
      %v541 = vpop.f32.mrf.mxu0
      %v542 = vadd.f32 0.0, %v541
      %v543 = vpop.f32.mrf.mxu0
      %544 = vmatprep.mubr.bf16.mxu0 0
      %545 = vmatmul.mubr.bf16.gmra.mxu0 %v397
      %v546 = vpop.f32.mrf.mxu0
      %v547 = vadd.f32 0.0, %v546
      %v548 = vpop.f32.mrf.mxu0
      %v549 = vpop.f32.mrf.mxu0
      %v550 = vadd.f32 0.0, %v549
      %v551 = vpop.f32.mrf.mxu0
      %552 = vmatprep.mubr.bf16.mxu0 0
      %553 = vmatmul.mubr.bf16.gmra.mxu0 %v398
      %v554 = vpop.f32.mrf.mxu0
      %v555 = vadd.f32 0.0, %v554
      %v556 = vpop.f32.mrf.mxu0
      %v557 = vpop.f32.mrf.mxu0
      %v558 = vadd.f32 0.0, %v557
      %v559 = vpop.f32.mrf.mxu0
      %560 = vmatprep.mubr.bf16.mxu0 0
      %561 = vmatmul.mubr.bf16.gmra.mxu0 %v399
      %v562 = vpop.f32.mrf.mxu0
      %v563 = vadd.f32 0.0, %v562
      %v564 = vpop.f32.mrf.mxu0
      %v565 = vpop.f32.mrf.mxu0
      %v566 = vadd.f32 0.0, %v565
      %v567 = vpop.f32.mrf.mxu0
      %568 = vmatprep.mubr.bf16.mxu0 0
      %569 = vmatmul.mubr.bf16.gmra.mxu0 %v400
      %v570 = vpop.f32.mrf.mxu0
      %v571 = vadd.f32 0.0, %v570
      %v572 = vpop.f32.mrf.mxu0
      %v573 = vpop.f32.mrf.mxu0
      %v574 = vadd.f32 0.0, %v573
      %v575 = vpop.f32.mrf.mxu0
      %576 = vmatprep.mubr.bf16.mxu0 0
      %577 = vmatmul.mubr.bf16.gmra.mxu0 %v401
      %v578 = vpop.f32.mrf.mxu0
      %v579 = vadd.f32 0.0, %v578
      %v580 = vpop.f32.mrf.mxu0
      %v581 = vpop.f32.mrf.mxu0
      %v582 = vadd.f32 0.0, %v581
      %v583 = vpop.f32.mrf.mxu0
      %584 = vmatprep.mubr.bf16.mxu0 0
      %585 = vmatmul.mubr.bf16.gmra.mxu0 %v402
      %v586 = vpop.f32.mrf.mxu0
      %v587 = vadd.f32 0.0, %v586
      %v588 = vpop.f32.mrf.mxu0
      %v589 = vpop.f32.mrf.mxu0
      %v590 = vadd.f32 0.0, %v589
      %v591 = vpop.f32.mrf.mxu0
      %592 = vmatprep.mubr.bf16.mxu0 0
      %593 = vmatmul.mubr.bf16.gmra.mxu0 %v403
      %v594 = vpop.f32.mrf.mxu0
      %v595 = vadd.f32 0.0, %v594
      %v596 = vpop.f32.mrf.mxu0
      %v597 = vpop.f32.mrf.mxu0
      %v598 = vadd.f32 0.0, %v597
      %v599 = vpop.f32.mrf.mxu0
      %600 = vmatprep.mubr.bf16.mxu0 0
      %601 = vmatmul.mubr.bf16.gmra.mxu0 %v404
      %v602 = vpop.f32.mrf.mxu0
      %v603 = vadd.f32 0.0, %v602
      %v604 = vpop.f32.mrf.mxu0
      %v605 = vpop.f32.mrf.mxu0
      %v606 = vadd.f32 0.0, %v605
      %v607 = vpop.f32.mrf.mxu0
      %608 = vmatprep.mubr.bf16.mxu0 0
      %609 = vmatmul.mubr.bf16.gmra.mxu0 %v405
      %v610 = vpop.f32.mrf.mxu0
      %v611 = vadd.f32 0.0, %v610
      %v612 = vpop.f32.mrf.mxu0
      %v613 = vpop.f32.mrf.mxu0
      %v614 = vadd.f32 0.0, %v613
      %v615 = vpop.f32.mrf.mxu0
      %616 = vmatprep.mubr.bf16.mxu0 0
      %617 = vmatmul.mubr.bf16.gmra.mxu0 %v406
      %v618 = vpop.f32.mrf.mxu0
      %v619 = vadd.f32 0.0, %v618
      %v620 = vpop.f32.mrf.mxu0
      %v621 = vpop.f32.mrf.mxu0
      %v622 = vadd.f32 0.0, %v621
      %v623 = vpop.f32.mrf.mxu0
      %624 = vmatprep.mubr.bf16.mxu0 0
      %625 = vmatmul.mubr.bf16.gmra.mxu0 %v407
      %v626 = vpop.f32.mrf.mxu0
      %v627 = vadd.f32 0.0, %v626
      %v628 = vpop.f32.mrf.mxu0
      %v629 = vpop.f32.mrf.mxu0
      %v630 = vadd.f32 0.0, %v629
      %v631 = vpop.f32.mrf.mxu0
      %632 = vdwg.mxu0
      %v633 = vld [vmem:[%s2] sm:$0x1]
      %v635 = vlaneseq
      %v636 = vshrl.u32 %v635, 7
      %v637 = vsub.s32 0, %v636
      %v638 = vrot.slane %v633, %v637
      %v640 = vmul.f32 %v507, %v638
      %v641 = vmul.f32 %v510, %v638
      %v642 = vmul.f32 %v515, %v638
      %v643 = vmul.f32 %v518, %v638
      %v644 = vmul.f32 %v523, %v638
      %v645 = vmul.f32 %v526, %v638
      %v646 = vmul.f32 %v531, %v638
      %v647 = vmul.f32 %v534, %v638
      %v648 = vmul.f32 %v539, %v638
      %v649 = vmul.f32 %v542, %v638
      %v650 = vmul.f32 %v547, %v638
      %v651 = vmul.f32 %v550, %v638
      %v652 = vmul.f32 %v555, %v638
      %v653 = vmul.f32 %v558, %v638
      %v654 = vmul.f32 %v563, %v638
      %v655 = vmul.f32 %v566, %v638
      %v656 = vmul.f32 %v571, %v638
      %v657 = vmul.f32 %v574, %v638
      %v658 = vmul.f32 %v579, %v638
      %v659 = vmul.f32 %v582, %v638
      %v660 = vmul.f32 %v587, %v638
      %v661 = vmul.f32 %v590, %v638
      %v662 = vmul.f32 %v595, %v638
      %v663 = vmul.f32 %v598, %v638
      %v664 = vmul.f32 %v603, %v638
      %v665 = vmul.f32 %v606, %v638
      %v666 = vmul.f32 %v611, %v638
      %v667 = vmul.f32 %v614, %v638
      %v668 = vmul.f32 %v619, %v638
      %v669 = vmul.f32 %v622, %v638
      %v670 = vmul.f32 %v627, %v638
      %v671 = vmul.f32 %v630, %v638
      %v672 = vld [vmem:[%s3] sm:$0x1]
      %v674 = vlaneseq
      %v675 = vshrl.u32 %v674, 7
      %v676 = vsub.s32 0, %v675
      %v677 = vrot.slane %v672, %v676
      %v679 = vadd.f32 %v640, %v677
      %v680 = vadd.f32 %v641, %v677
      %v681 = vadd.f32 %v642, %v677
      %v682 = vadd.f32 %v643, %v677
      %v683 = vadd.f32 %v644, %v677
      %v684 = vadd.f32 %v645, %v677
      %v685 = vadd.f32 %v646, %v677
      %v686 = vadd.f32 %v647, %v677
      %v687 = vadd.f32 %v648, %v677
      %v688 = vadd.f32 %v649, %v677
      %v689 = vadd.f32 %v650, %v677
      %v690 = vadd.f32 %v651, %v677
      %v691 = vadd.f32 %v652, %v677
      %v692 = vadd.f32 %v653, %v677
      %v693 = vadd.f32 %v654, %v677
      %v694 = vadd.f32 %v655, %v677
      %v695 = vadd.f32 %v656, %v677
      %v696 = vadd.f32 %v657, %v677
      %v697 = vadd.f32 %v658, %v677
      %v698 = vadd.f32 %v659, %v677
      %v699 = vadd.f32 %v660, %v677
      %v700 = vadd.f32 %v661, %v677
      %v701 = vadd.f32 %v662, %v677
      %v702 = vadd.f32 %v663, %v677
      %v703 = vadd.f32 %v664, %v677
      %v704 = vadd.f32 %v665, %v677
      %v705 = vadd.f32 %v666, %v677
      %v706 = vadd.f32 %v667, %v677
      %v707 = vadd.f32 %v668, %v677
      %v708 = vadd.f32 %v669, %v677
      %v709 = vadd.f32 %v670, %v677
      %v710 = vadd.f32 %v671, %v677
      %v711 = vmax.f32 %v679, 0.0
      %v712 = vmax.f32 %v680, 0.0
      %v713 = vmax.f32 %v681, 0.0
      %v714 = vmax.f32 %v682, 0.0
      %v715 = vmax.f32 %v683, 0.0
      %v716 = vmax.f32 %v684, 0.0
      %v717 = vmax.f32 %v685, 0.0
      %v718 = vmax.f32 %v686, 0.0
      %v719 = vmax.f32 %v687, 0.0
      %v720 = vmax.f32 %v688, 0.0
      %v721 = vmax.f32 %v689, 0.0
      %v722 = vmax.f32 %v690, 0.0
      %v723 = vmax.f32 %v691, 0.0
      %v724 = vmax.f32 %v692, 0.0
      %v725 = vmax.f32 %v693, 0.0
      %v726 = vmax.f32 %v694, 0.0
      %v727 = vmax.f32 %v695, 0.0
      %v728 = vmax.f32 %v696, 0.0
      %v729 = vmax.f32 %v697, 0.0
      %v730 = vmax.f32 %v698, 0.0
      %v731 = vmax.f32 %v699, 0.0
      %v732 = vmax.f32 %v700, 0.0
      %v733 = vmax.f32 %v701, 0.0
      %v734 = vmax.f32 %v702, 0.0
      %v735 = vmax.f32 %v703, 0.0
      %v736 = vmax.f32 %v704, 0.0
      %v737 = vmax.f32 %v705, 0.0
      %v738 = vmax.f32 %v706, 0.0
      %v739 = vmax.f32 %v707, 0.0
      %v740 = vmax.f32 %v708, 0.0
      %v741 = vmax.f32 %v709, 0.0
      %v742 = vmax.f32 %v710, 0.0
      %743 = vst [vmem:[#allocation2] sm:$0xf] 0
      %744 = vst [vmem:[#allocation2 + $0x4] sm:$0xf] 0
      %745 = vst [vmem:[#allocation2 + $0x8] sm:$0xf] 0
      %s746 = scalar_lea.vmem [#allocation2], 204
      %747 = vst [vmem:[%s746] sm:$0xf] 0
      %748 = vst [vmem:[%s746 + $0x4] sm:$0xf] 0
      %749 = vst [vmem:[%s746 + $0x8] sm:$0xf] 0
      %s750 = scalar_lea.vmem [#allocation2], 12
      %vm751 = vcmask 1040384
      %vm752 = vsmask.f32 256
      %vm753 = vmand %vm751, %vm752
      %v754 = vld [vmem:[%s750] sm:$0x1]
      %v755 = vsel %vm753, 0, %v754
      %756 = vst [vmem:[%s750] sm:$0x1] %v755
      %v757 = vld [vmem:[%s750 + $0xc] sm:$0x1]
      %v758 = vsel %vm753, 0, %v757
      %759 = vst [vmem:[%s750 + $0xc] sm:$0x1] %v758
      %v760 = vld [vmem:[%s750 + $0x18] sm:$0x1]
      %v761 = vsel %vm753, 0, %v760
      %762 = vst [vmem:[%s750 + $0x18] sm:$0x1] %v761
      %v763 = vld [vmem:[%s750 + $0x24] sm:$0x1]
      %v764 = vsel %vm753, 0, %v763
      %765 = vst [vmem:[%s750 + $0x24] sm:$0x1] %v764
      %v766 = vld [vmem:[%s750 + $0x30] sm:$0x1]
      %v767 = vsel %vm753, 0, %v766
      %768 = vst [vmem:[%s750 + $0x30] sm:$0x1] %v767
      %v769 = vld [vmem:[%s750 + $0x3c] sm:$0x1]
      %v770 = vsel %vm753, 0, %v769
      %771 = vst [vmem:[%s750 + $0x3c] sm:$0x1] %v770
      %v772 = vld [vmem:[%s750 + $0x48] sm:$0x1]
      %v773 = vsel %vm753, 0, %v772
      %774 = vst [vmem:[%s750 + $0x48] sm:$0x1] %v773
      %v775 = vld [vmem:[%s750 + $0x54] sm:$0x1]
      %v776 = vsel %vm753, 0, %v775
      %777 = vst [vmem:[%s750 + $0x54] sm:$0x1] %v776
      %v778 = vld [vmem:[%s750 + $0x60] sm:$0x1]
      %v779 = vsel %vm753, 0, %v778
      %780 = vst [vmem:[%s750 + $0x60] sm:$0x1] %v779
      %v781 = vld [vmem:[%s750 + $0x6c] sm:$0x1]
      %v782 = vsel %vm753, 0, %v781
      %783 = vst [vmem:[%s750 + $0x6c] sm:$0x1] %v782
      %v784 = vld [vmem:[%s750 + $0x78] sm:$0x1]
      %v785 = vsel %vm753, 0, %v784
      %786 = vst [vmem:[%s750 + $0x78] sm:$0x1] %v785
      %v787 = vld [vmem:[%s750 + $0x84] sm:$0x1]
      %v788 = vsel %vm753, 0, %v787
      %789 = vst [vmem:[%s750 + $0x84] sm:$0x1] %v788
      %v790 = vld [vmem:[%s750 + $0x90] sm:$0x1]
      %v791 = vsel %vm753, 0, %v790
      %792 = vst [vmem:[%s750 + $0x90] sm:$0x1] %v791
      %v793 = vld [vmem:[%s750 + $0x9c] sm:$0x1]
      %v794 = vsel %vm753, 0, %v793
      %795 = vst [vmem:[%s750 + $0x9c] sm:$0x1] %v794
      %v796 = vld [vmem:[%s750 + $0xa8] sm:$0x1]
      %v797 = vsel %vm753, 0, %v796
      %798 = vst [vmem:[%s750 + $0xa8] sm:$0x1] %v797
      %v799 = vld [vmem:[%s750 + $0xb4] sm:$0x1]
      %v800 = vsel %vm753, 0, %v799
      %801 = vst [vmem:[%s750 + $0xb4] sm:$0x1] %v800
      %vm802 = vsmask.f32 7938
      %vm803 = vmand %vm751, %vm802
      %v804 = vld [vmem:[%s750 + $0x8] sm:$0x1]
      %v805 = vsel %vm803, 0, %v804
      %806 = vst [vmem:[%s750 + $0x8] sm:$0x1] %v805
      %v807 = vld [vmem:[%s750 + $0x14] sm:$0x1]
      %v808 = vsel %vm803, 0, %v807
      %809 = vst [vmem:[%s750 + $0x14] sm:$0x1] %v808
      %v810 = vld [vmem:[%s750 + $0x20] sm:$0x1]
      %v811 = vsel %vm803, 0, %v810
      %812 = vst [vmem:[%s750 + $0x20] sm:$0x1] %v811
      %v813 = vld [vmem:[%s750 + $0x2c] sm:$0x1]
      %v814 = vsel %vm803, 0, %v813
      %815 = vst [vmem:[%s750 + $0x2c] sm:$0x1] %v814
      %v816 = vld [vmem:[%s750 + $0x38] sm:$0x1]
      %v817 = vsel %vm803, 0, %v816
      %818 = vst [vmem:[%s750 + $0x38] sm:$0x1] %v817
      %v819 = vld [vmem:[%s750 + $0x44] sm:$0x1]
      %v820 = vsel %vm803, 0, %v819
      %821 = vst [vmem:[%s750 + $0x44] sm:$0x1] %v820
      %v822 = vld [vmem:[%s750 + $0x50] sm:$0x1]
      %v823 = vsel %vm803, 0, %v822
      %824 = vst [vmem:[%s750 + $0x50] sm:$0x1] %v823
      %v825 = vld [vmem:[%s750 + $0x5c] sm:$0x1]
      %v826 = vsel %vm803, 0, %v825
      %827 = vst [vmem:[%s750 + $0x5c] sm:$0x1] %v826
      %v828 = vld [vmem:[%s750 + $0x68] sm:$0x1]
      %v829 = vsel %vm803, 0, %v828
      %830 = vst [vmem:[%s750 + $0x68] sm:$0x1] %v829
      %v831 = vld [vmem:[%s750 + $0x74] sm:$0x1]
      %v832 = vsel %vm803, 0, %v831
      %833 = vst [vmem:[%s750 + $0x74] sm:$0x1] %v832
      %v834 = vld [vmem:[%s750 + $0x80] sm:$0x1]
      %v835 = vsel %vm803, 0, %v834
      %836 = vst [vmem:[%s750 + $0x80] sm:$0x1] %v835
      %v837 = vld [vmem:[%s750 + $0x8c] sm:$0x1]
      %v838 = vsel %vm803, 0, %v837
      %839 = vst [vmem:[%s750 + $0x8c] sm:$0x1] %v838
      %v840 = vld [vmem:[%s750 + $0x98] sm:$0x1]
      %v841 = vsel %vm803, 0, %v840
      %842 = vst [vmem:[%s750 + $0x98] sm:$0x1] %v841
      %v843 = vld [vmem:[%s750 + $0xa4] sm:$0x1]
      %v844 = vsel %vm803, 0, %v843
      %845 = vst [vmem:[%s750 + $0xa4] sm:$0x1] %v844
      %v846 = vld [vmem:[%s750 + $0xb0] sm:$0x1]
      %v847 = vsel %vm803, 0, %v846
      %848 = vst [vmem:[%s750 + $0xb0] sm:$0x1] %v847
      %v849 = vld [vmem:[%s750 + $0xbc] sm:$0x1]
      %v850 = vsel %vm803, 0, %v849
      %851 = vst [vmem:[%s750 + $0xbc] sm:$0x1] %v850
      %v852 = vpack.c.bf16 %v712, %v711
      %v853 = vpack.c.bf16 %v714, %v713
      %v854 = vpack.c.bf16 %v716, %v715
      %v855 = vpack.c.bf16 %v718, %v717
      %v856 = vpack.c.bf16 %v720, %v719
      %v857 = vpack.c.bf16 %v722, %v721
      %v858 = vpack.c.bf16 %v724, %v723
      %v859 = vpack.c.bf16 %v726, %v725
      %v860 = vpack.c.bf16 %v728, %v727
      %v861 = vpack.c.bf16 %v730, %v729
      %v862 = vpack.c.bf16 %v732, %v731
      %v863 = vpack.c.bf16 %v734, %v733
      %v864 = vpack.c.bf16 %v736, %v735
      %v865 = vpack.c.bf16 %v738, %v737
      %v866 = vpack.c.bf16 %v740, %v739
      %v867 = vpack.c.bf16 %v742, %v741
      %v884 = vunpack.c.l.b16 %v852
      %v885 = vunpack.c.h.b16 %v852
      %v886 = vunpack.c.l.b16 %v853
      %v887 = vunpack.c.h.b16 %v853
      %v888 = vunpack.c.l.b16 %v854
      %v889 = vunpack.c.h.b16 %v854
      %v890 = vunpack.c.l.b16 %v855
      %v891 = vunpack.c.h.b16 %v855
      %v892 = vunpack.c.l.b16 %v856
      %v893 = vunpack.c.h.b16 %v856
      %v894 = vunpack.c.l.b16 %v857
      %v895 = vunpack.c.h.b16 %v857
      %v896 = vunpack.c.l.b16 %v858
      %v897 = vunpack.c.h.b16 %v858
      %v898 = vunpack.c.l.b16 %v859
      %v899 = vunpack.c.h.b16 %v859
      %v900 = vunpack.c.l.b16 %v860
      %v901 = vunpack.c.h.b16 %v860
      %v902 = vunpack.c.l.b16 %v861
      %v903 = vunpack.c.h.b16 %v861
      %v904 = vunpack.c.l.b16 %v862
      %v905 = vunpack.c.h.b16 %v862
      %v906 = vunpack.c.l.b16 %v863
      %v907 = vunpack.c.h.b16 %v863
      %v908 = vunpack.c.l.b16 %v864
      %v909 = vunpack.c.h.b16 %v864
      %v910 = vunpack.c.l.b16 %v865
      %v911 = vunpack.c.h.b16 %v865
      %v912 = vunpack.c.l.b16 %v866
      %v913 = vunpack.c.h.b16 %v866
      %v914 = vunpack.c.l.b16 %v867
      %v915 = vunpack.c.h.b16 %v867
      %v916 = vpack.c.b16 %v884, %v884
      %v917 = vpack.c.b16 %v885, %v885
      %v918 = vpack.c.b16 %v886, %v886
      %v919 = vpack.c.b16 %v887, %v887
      %v920 = vpack.c.b16 %v888, %v888
      %v921 = vpack.c.b16 %v889, %v889
      %v922 = vpack.c.b16 %v890, %v890
      %v923 = vpack.c.b16 %v891, %v891
      %v924 = vpack.c.b16 %v892, %v892
      %v925 = vpack.c.b16 %v893, %v893
      %v926 = vpack.c.b16 %v894, %v894
      %v927 = vpack.c.b16 %v895, %v895
      %v928 = vpack.c.b16 %v896, %v896
      %v929 = vpack.c.b16 %v897, %v897
      %v930 = vpack.c.b16 %v898, %v898
      %v931 = vpack.c.b16 %v899, %v899
      %v932 = vpack.c.b16 %v900, %v900
      %v933 = vpack.c.b16 %v901, %v901
      %v934 = vpack.c.b16 %v902, %v902
      %v935 = vpack.c.b16 %v903, %v903
      %v936 = vpack.c.b16 %v904, %v904
      %v937 = vpack.c.b16 %v905, %v905
      %v938 = vpack.c.b16 %v906, %v906
      %v939 = vpack.c.b16 %v907, %v907
      %v940 = vpack.c.b16 %v908, %v908
      %v941 = vpack.c.b16 %v909, %v909
      %v942 = vpack.c.b16 %v910, %v910
      %v943 = vpack.c.b16 %v911, %v911
      %v944 = vpack.c.b16 %v912, %v912
      %v945 = vpack.c.b16 %v913, %v913
      %v946 = vpack.c.b16 %v914, %v914
      %v947 = vpack.c.b16 %v915, %v915
      %vm948 = vsmask.f32 4368
      %vm949 = vmor %vm752, %vm948
      %v951 = vshrl.u32 %v916, 16
      %v953 = vrot.slane %v951, 7
      %v954 = vshll.u32 %v916, 16
      %v956 = vor.u32 %v953, %v954
      %v957 = vrot.slane %v953, 4
      %v959 = vshrl.u32 %v917, 16
      %v961 = vrot.slane %v959, 7
      %v962 = vshll.u32 %v917, 16
      %v964 = vor.u32 %v961, %v962
      %v965 = vsel %vm949, %v957, %v964
      %v966 = vrot.slane %v961, 4
      %v968 = vshrl.u32 %v918, 16
      %v970 = vrot.slane %v968, 7
      %v971 = vshll.u32 %v918, 16
      %v973 = vor.u32 %v970, %v971
      %v974 = vrot.slane %v970, 4
      %v976 = vshrl.u32 %v919, 16
      %v978 = vrot.slane %v976, 7
      %v979 = vshll.u32 %v919, 16
      %v981 = vor.u32 %v978, %v979
      %v982 = vsel %vm949, %v974, %v981
      %v983 = vrot.slane %v978, 4
      %v985 = vshrl.u32 %v920, 16
      %v987 = vrot.slane %v985, 7
      %v988 = vshll.u32 %v920, 16
      %v990 = vor.u32 %v987, %v988
      %v991 = vrot.slane %v987, 4
      %v993 = vshrl.u32 %v921, 16
      %v995 = vrot.slane %v993, 7
      %v996 = vshll.u32 %v921, 16
      %v998 = vor.u32 %v995, %v996
      %v999 = vsel %vm949, %v991, %v998
      %v1000 = vrot.slane %v995, 4
      %v1002 = vshrl.u32 %v922, 16
      %v1004 = vrot.slane %v1002, 7
      %v1005 = vshll.u32 %v922, 16
      %v1007 = vor.u32 %v1004, %v1005
      %v1008 = vrot.slane %v1004, 4
      %v1010 = vshrl.u32 %v923, 16
      %v1012 = vrot.slane %v1010, 7
      %v1013 = vshll.u32 %v923, 16
      %v1015 = vor.u32 %v1012, %v1013
      %v1016 = vsel %vm949, %v1008, %v1015
      %v1017 = vrot.slane %v1012, 4
      %v1019 = vshrl.u32 %v924, 16
      %v1021 = vrot.slane %v1019, 7
      %v1022 = vshll.u32 %v924, 16
      %v1024 = vor.u32 %v1021, %v1022
      %v1025 = vrot.slane %v1021, 4
      %v1027 = vshrl.u32 %v925, 16
      %v1029 = vrot.slane %v1027, 7
      %v1030 = vshll.u32 %v925, 16
      %v1032 = vor.u32 %v1029, %v1030
      %v1033 = vsel %vm949, %v1025, %v1032
      %v1034 = vrot.slane %v1029, 4
      %v1036 = vshrl.u32 %v926, 16
      %v1038 = vrot.slane %v1036, 7
      %v1039 = vshll.u32 %v926, 16
      %v1041 = vor.u32 %v1038, %v1039
      %v1042 = vrot.slane %v1038, 4
      %v1044 = vshrl.u32 %v927, 16
      %v1046 = vrot.slane %v1044, 7
      %v1047 = vshll.u32 %v927, 16
      %v1049 = vor.u32 %v1046, %v1047
      %v1050 = vsel %vm949, %v1042, %v1049
      %v1051 = vrot.slane %v1046, 4
      %v1053 = vshrl.u32 %v928, 16
      %v1055 = vrot.slane %v1053, 7
      %v1056 = vshll.u32 %v928, 16
      %v1058 = vor.u32 %v1055, %v1056
      %v1059 = vrot.slane %v1055, 4
      %v1061 = vshrl.u32 %v929, 16
      %v1063 = vrot.slane %v1061, 7
      %v1064 = vshll.u32 %v929, 16
      %v1066 = vor.u32 %v1063, %v1064
      %v1067 = vsel %vm949, %v1059, %v1066
      %v1068 = vrot.slane %v1063, 4
      %v1070 = vshrl.u32 %v930, 16
      %v1072 = vrot.slane %v1070, 7
      %v1073 = vshll.u32 %v930, 16
      %v1075 = vor.u32 %v1072, %v1073
      %v1076 = vrot.slane %v1072, 4
      %v1078 = vshrl.u32 %v931, 16
      %v1080 = vrot.slane %v1078, 7
      %v1081 = vshll.u32 %v931, 16
      %v1083 = vor.u32 %v1080, %v1081
      %v1084 = vsel %vm949, %v1076, %v1083
      %v1085 = vrot.slane %v1080, 4
      %v1087 = vshrl.u32 %v932, 16
      %v1089 = vrot.slane %v1087, 7
      %v1090 = vshll.u32 %v932, 16
      %v1092 = vor.u32 %v1089, %v1090
      %v1093 = vrot.slane %v1089, 4
      %v1095 = vshrl.u32 %v933, 16
      %v1097 = vrot.slane %v1095, 7
      %v1098 = vshll.u32 %v933, 16
      %v1100 = vor.u32 %v1097, %v1098
      %v1101 = vsel %vm949, %v1093, %v1100
      %v1102 = vrot.slane %v1097, 4
      %v1104 = vshrl.u32 %v934, 16
      %v1106 = vrot.slane %v1104, 7
      %v1107 = vshll.u32 %v934, 16
      %v1109 = vor.u32 %v1106, %v1107
      %v1110 = vrot.slane %v1106, 4
      %v1112 = vshrl.u32 %v935, 16
      %v1114 = vrot.slane %v1112, 7
      %v1115 = vshll.u32 %v935, 16
      %v1117 = vor.u32 %v1114, %v1115
      %v1118 = vsel %vm949, %v1110, %v1117
      %v1119 = vrot.slane %v1114, 4
      %v1121 = vshrl.u32 %v936, 16
      %v1123 = vrot.slane %v1121, 7
      %v1124 = vshll.u32 %v936, 16
      %v1126 = vor.u32 %v1123, %v1124
      %v1127 = vrot.slane %v1123, 4
      %v1129 = vshrl.u32 %v937, 16
      %v1131 = vrot.slane %v1129, 7
      %v1132 = vshll.u32 %v937, 16
      %v1134 = vor.u32 %v1131, %v1132
      %v1135 = vsel %vm949, %v1127, %v1134
      %v1136 = vrot.slane %v1131, 4
      %v1138 = vshrl.u32 %v938, 16
      %v1140 = vrot.slane %v1138, 7
      %v1141 = vshll.u32 %v938, 16
      %v1143 = vor.u32 %v1140, %v1141
      %v1144 = vrot.slane %v1140, 4
      %v1146 = vshrl.u32 %v939, 16
      %v1148 = vrot.slane %v1146, 7
      %v1149 = vshll.u32 %v939, 16
      %v1151 = vor.u32 %v1148, %v1149
      %v1152 = vsel %vm949, %v1144, %v1151
      %v1153 = vrot.slane %v1148, 4
      %v1155 = vshrl.u32 %v940, 16
      %v1157 = vrot.slane %v1155, 7
      %v1158 = vshll.u32 %v940, 16
      %v1160 = vor.u32 %v1157, %v1158
      %v1161 = vrot.slane %v1157, 4
      %v1163 = vshrl.u32 %v941, 16
      %v1165 = vrot.slane %v1163, 7
      %v1166 = vshll.u32 %v941, 16
      %v1168 = vor.u32 %v1165, %v1166
      %v1169 = vsel %vm949, %v1161, %v1168
      %v1170 = vrot.slane %v1165, 4
      %v1172 = vshrl.u32 %v942, 16
      %v1174 = vrot.slane %v1172, 7
      %v1175 = vshll.u32 %v942, 16
      %v1177 = vor.u32 %v1174, %v1175
      %v1178 = vrot.slane %v1174, 4
      %v1180 = vshrl.u32 %v943, 16
      %v1182 = vrot.slane %v1180, 7
      %v1183 = vshll.u32 %v943, 16
      %v1185 = vor.u32 %v1182, %v1183
      %v1186 = vsel %vm949, %v1178, %v1185
      %v1187 = vrot.slane %v1182, 4
      %v1189 = vshrl.u32 %v944, 16
      %v1191 = vrot.slane %v1189, 7
      %v1192 = vshll.u32 %v944, 16
      %v1194 = vor.u32 %v1191, %v1192
      %v1195 = vrot.slane %v1191, 4
      %v1197 = vshrl.u32 %v945, 16
      %v1199 = vrot.slane %v1197, 7
      %v1200 = vshll.u32 %v945, 16
      %v1202 = vor.u32 %v1199, %v1200
      %v1203 = vsel %vm949, %v1195, %v1202
      %v1204 = vrot.slane %v1199, 4
      %v1206 = vshrl.u32 %v946, 16
      %v1208 = vrot.slane %v1206, 7
      %v1209 = vshll.u32 %v946, 16
      %v1211 = vor.u32 %v1208, %v1209
      %v1212 = vrot.slane %v1208, 4
      %v1214 = vshrl.u32 %v947, 16
      %v1216 = vrot.slane %v1214, 7
      %v1217 = vshll.u32 %v947, 16
      %v1219 = vor.u32 %v1216, %v1217
      %v1220 = vsel %vm949, %v1212, %v1219
      %v1221 = vrot.slane %v1216, 4
      %vm1270 = vcmask 1043456
      %vm1271 = vmand %vm1270, %vm802
      %v1272 = vld [vmem:[%s750] sm:$0xf]
      %v1273 = vsel %vm1271, %v956, %v1272
      %1274 = vst [vmem:[%s750] sm:$0xf] %v1273
      %1275 = vst [vmem:[%s750 + $0x4] sm:$0xf] %v965
      %v1276 = vld [vmem:[%s750 + $0x8] sm:$0x1]
      %v1277 = vsel %vm753, %v966, %v1276
      %1278 = vst [vmem:[%s750 + $0x8] sm:$0x1] %v1277
      %v1279 = vld [vmem:[%s750 + $0xc] sm:$0xf]
      %v1280 = vsel %vm1271, %v973, %v1279
      %1281 = vst [vmem:[%s750 + $0xc] sm:$0xf] %v1280
      %1282 = vst [vmem:[%s750 + $0x10] sm:$0xf] %v982
      %v1283 = vld [vmem:[%s750 + $0x14] sm:$0x1]
      %v1284 = vsel %vm753, %v983, %v1283
      %1285 = vst [vmem:[%s750 + $0x14] sm:$0x1] %v1284
      %v1286 = vld [vmem:[%s750 + $0x18] sm:$0xf]
      %v1287 = vsel %vm1271, %v990, %v1286
      %1288 = vst [vmem:[%s750 + $0x18] sm:$0xf] %v1287
      %1289 = vst [vmem:[%s750 + $0x1c] sm:$0xf] %v999
      %v1290 = vld [vmem:[%s750 + $0x20] sm:$0x1]
      %v1291 = vsel %vm753, %v1000, %v1290
      %1292 = vst [vmem:[%s750 + $0x20] sm:$0x1] %v1291
      %v1293 = vld [vmem:[%s750 + $0x24] sm:$0xf]
      %v1294 = vsel %vm1271, %v1007, %v1293
      %1295 = vst [vmem:[%s750 + $0x24] sm:$0xf] %v1294
      %1296 = vst [vmem:[%s750 + $0x28] sm:$0xf] %v1016
      %v1297 = vld [vmem:[%s750 + $0x2c] sm:$0x1]
      %v1298 = vsel %vm753, %v1017, %v1297
      %1299 = vst [vmem:[%s750 + $0x2c] sm:$0x1] %v1298
      %v1300 = vld [vmem:[%s750 + $0x30] sm:$0xf]
      %v1301 = vsel %vm1271, %v1024, %v1300
      %1302 = vst [vmem:[%s750 + $0x30] sm:$0xf] %v1301
      %1303 = vst [vmem:[%s750 + $0x34] sm:$0xf] %v1033
      %v1304 = vld [vmem:[%s750 + $0x38] sm:$0x1]
      %v1305 = vsel %vm753, %v1034, %v1304
      %1306 = vst [vmem:[%s750 + $0x38] sm:$0x1] %v1305
      %v1307 = vld [vmem:[%s750 + $0x3c] sm:$0xf]
      %v1308 = vsel %vm1271, %v1041, %v1307
      %1309 = vst [vmem:[%s750 + $0x3c] sm:$0xf] %v1308
      %1310 = vst [vmem:[%s750 + $0x40] sm:$0xf] %v1050
      %v1311 = vld [vmem:[%s750 + $0x44] sm:$0x1]
      %v1312 = vsel %vm753, %v1051, %v1311
      %1313 = vst [vmem:[%s750 + $0x44] sm:$0x1] %v1312
      %v1314 = vld [vmem:[%s750 + $0x48] sm:$0xf]
      %v1315 = vsel %vm1271, %v1058, %v1314
      %1316 = vst [vmem:[%s750 + $0x48] sm:$0xf] %v1315
      %1317 = vst [vmem:[%s750 + $0x4c] sm:$0xf] %v1067
      %v1318 = vld [vmem:[%s750 + $0x50] sm:$0x1]
      %v1319 = vsel %vm753, %v1068, %v1318
      %1320 = vst [vmem:[%s750 + $0x50] sm:$0x1] %v1319
      %v1321 = vld [vmem:[%s750 + $0x54] sm:$0xf]
      %v1322 = vsel %vm1271, %v1075, %v1321
      %1323 = vst [vmem:[%s750 + $0x54] sm:$0xf] %v1322
      %1324 = vst [vmem:[%s750 + $0x58] sm:$0xf] %v1084
      %v1325 = vld [vmem:[%s750 + $0x5c] sm:$0x1]
      %v1326 = vsel %vm753, %v1085, %v1325
      %1327 = vst [vmem:[%s750 + $0x5c] sm:$0x1] %v1326
      %v1328 = vld [vmem:[%s750 + $0x60] sm:$0xf]
      %v1329 = vsel %vm1271, %v1092, %v1328
      %1330 = vst [vmem:[%s750 + $0x60] sm:$0xf] %v1329
      %1331 = vst [vmem:[%s750 + $0x64] sm:$0xf] %v1101
      %v1332 = vld [vmem:[%s750 + $0x68] sm:$0x1]
      %v1333 = vsel %vm753, %v1102, %v1332
      %1334 = vst [vmem:[%s750 + $0x68] sm:$0x1] %v1333
      %v1335 = vld [vmem:[%s750 + $0x6c] sm:$0xf]
      %v1336 = vsel %vm1271, %v1109, %v1335
      %1337 = vst [vmem:[%s750 + $0x6c] sm:$0xf] %v1336
      %1338 = vst [vmem:[%s750 + $0x70] sm:$0xf] %v1118
      %v1339 = vld [vmem:[%s750 + $0x74] sm:$0x1]
      %v1340 = vsel %vm753, %v1119, %v1339
      %1341 = vst [vmem:[%s750 + $0x74] sm:$0x1] %v1340
      %v1342 = vld [vmem:[%s750 + $0x78] sm:$0xf]
      %v1343 = vsel %vm1271, %v1126, %v1342
      %1344 = vst [vmem:[%s750 + $0x78] sm:$0xf] %v1343
      %1345 = vst [vmem:[%s750 + $0x7c] sm:$0xf] %v1135
      %v1346 = vld [vmem:[%s750 + $0x80] sm:$0x1]
      %v1347 = vsel %vm753, %v1136, %v1346
      %1348 = vst [vmem:[%s750 + $0x80] sm:$0x1] %v1347
      %v1349 = vld [vmem:[%s750 + $0x84] sm:$0xf]
      %v1350 = vsel %vm1271, %v1143, %v1349
      %1351 = vst [vmem:[%s750 + $0x84] sm:$0xf] %v1350
      %1352 = vst [vmem:[%s750 + $0x88] sm:$0xf] %v1152
      %v1353 = vld [vmem:[%s750 + $0x8c] sm:$0x1]
      %v1354 = vsel %vm753, %v1153, %v1353
      %1355 = vst [vmem:[%s750 + $0x8c] sm:$0x1] %v1354
      %v1356 = vld [vmem:[%s750 + $0x90] sm:$0xf]
      %v1357 = vsel %vm1271, %v1160, %v1356
      %1358 = vst [vmem:[%s750 + $0x90] sm:$0xf] %v1357
      %1359 = vst [vmem:[%s750 + $0x94] sm:$0xf] %v1169
      %v1360 = vld [vmem:[%s750 + $0x98] sm:$0x1]
      %v1361 = vsel %vm753, %v1170, %v1360
      %1362 = vst [vmem:[%s750 + $0x98] sm:$0x1] %v1361
      %v1363 = vld [vmem:[%s750 + $0x9c] sm:$0xf]
      %v1364 = vsel %vm1271, %v1177, %v1363
      %1365 = vst [vmem:[%s750 + $0x9c] sm:$0xf] %v1364
      %1366 = vst [vmem:[%s750 + $0xa0] sm:$0xf] %v1186
      %v1367 = vld [vmem:[%s750 + $0xa4] sm:$0x1]
      %v1368 = vsel %vm753, %v1187, %v1367
      %1369 = vst [vmem:[%s750 + $0xa4] sm:$0x1] %v1368
      %v1370 = vld [vmem:[%s750 + $0xa8] sm:$0xf]
      %v1371 = vsel %vm1271, %v1194, %v1370
      %1372 = vst [vmem:[%s750 + $0xa8] sm:$0xf] %v1371
      %1373 = vst [vmem:[%s750 + $0xac] sm:$0xf] %v1203
      %v1374 = vld [vmem:[%s750 + $0xb0] sm:$0x1]
      %v1375 = vsel %vm753, %v1204, %v1374
      %1376 = vst [vmem:[%s750 + $0xb0] sm:$0x1] %v1375
      %v1377 = vld [vmem:[%s750 + $0xb4] sm:$0xf]
      %v1378 = vsel %vm1271, %v1211, %v1377
      %1379 = vst [vmem:[%s750 + $0xb4] sm:$0xf] %v1378
      %1380 = vst [vmem:[%s750 + $0xb8] sm:$0xf] %v1220
      %v1381 = vld [vmem:[%s750 + $0xbc] sm:$0x1]
      %v1382 = vsel %vm753, %v1221, %v1381
      %1383 = vst [vmem:[%s750 + $0xbc] sm:$0x1] %v1382
      %v1384 = vld [vmem:[#allocation2] sm:$0xf]
      %v1385 = vld [vmem:[#allocation2 + $0x4] sm:$0xf]
      %v1386 = vld [vmem:[#allocation2 + $0xc] sm:$0xf]
      %v1387 = vld [vmem:[#allocation2 + $0x10] sm:$0xf]
      %v1388 = vld [vmem:[#allocation2 + $0x18] sm:$0xf]
      %v1389 = vld [vmem:[#allocation2 + $0x1c] sm:$0xf]
      %v1390 = vld [vmem:[#allocation2 + $0x24] sm:$0xf]
      %v1391 = vld [vmem:[#allocation2 + $0x28] sm:$0xf]
      %v1392 = vld [vmem:[#allocation2 + $0x30] sm:$0xf]
      %v1393 = vld [vmem:[#allocation2 + $0x34] sm:$0xf]
      %v1394 = vld [vmem:[#allocation2 + $0x3c] sm:$0xf]
      %v1395 = vld [vmem:[#allocation2 + $0x40] sm:$0xf]
      %v1396 = vld [vmem:[#allocation2 + $0x48] sm:$0xf]
      %v1397 = vld [vmem:[#allocation2 + $0x4c] sm:$0xf]
      %v1398 = vld [vmem:[#allocation2 + $0x54] sm:$0xf]
      %v1399 = vld [vmem:[#allocation2 + $0x58] sm:$0xf]
      %v1400 = vld [vmem:[#allocation2 + $0x60] sm:$0xf]
      %v1401 = vld [vmem:[#allocation2 + $0x64] sm:$0xf]
      %v1402 = vld [vmem:[#allocation2 + $0x6c] sm:$0xf]
      %v1403 = vld [vmem:[#allocation2 + $0x70] sm:$0xf]
      %v1404 = vld [vmem:[#allocation2 + $0x78] sm:$0xf]
      %v1405 = vld [vmem:[#allocation2 + $0x7c] sm:$0xf]
      %v1406 = vld [vmem:[#allocation2 + $0x84] sm:$0xf]
      %v1407 = vld [vmem:[#allocation2 + $0x88] sm:$0xf]
      %v1408 = vld [vmem:[#allocation2 + $0x90] sm:$0xf]
      %v1409 = vld [vmem:[#allocation2 + $0x94] sm:$0xf]
      %v1410 = vld [vmem:[#allocation2 + $0x9c] sm:$0xf]
      %v1411 = vld [vmem:[#allocation2 + $0xa0] sm:$0xf]
      %v1412 = vld [vmem:[#allocation2 + $0xa8] sm:$0xf]
      %v1413 = vld [vmem:[#allocation2 + $0xac] sm:$0xf]
      %v1414 = vld [vmem:[#allocation2 + $0xb4] sm:$0xf]
      %v1415 = vld [vmem:[#allocation2 + $0xb8] sm:$0xf]
      %1416 = vst [vmem:[#allocation3] sm:$0xf] %v1384
      %1417 = vst [vmem:[#allocation3 + $0xc] sm:$0xf] %v1385
      %1418 = vst [vmem:[#allocation3 + $0x18] sm:$0xf] %v1386
      %1419 = vst [vmem:[#allocation3 + $0x24] sm:$0xf] %v1387
      %1420 = vst [vmem:[#allocation3 + $0x30] sm:$0xf] %v1388
      %1421 = vst [vmem:[#allocation3 + $0x3c] sm:$0xf] %v1389
      %1422 = vst [vmem:[#allocation3 + $0x48] sm:$0xf] %v1390
      %1423 = vst [vmem:[#allocation3 + $0x54] sm:$0xf] %v1391
      %1424 = vst [vmem:[#allocation3 + $0x60] sm:$0xf] %v1392
      %1425 = vst [vmem:[#allocation3 + $0x6c] sm:$0xf] %v1393
      %1426 = vst [vmem:[#allocation3 + $0x78] sm:$0xf] %v1394
      %1427 = vst [vmem:[#allocation3 + $0x84] sm:$0xf] %v1395
      %1428 = vst [vmem:[#allocation3 + $0x90] sm:$0xf] %v1396
      %1429 = vst [vmem:[#allocation3 + $0x9c] sm:$0xf] %v1397
      %1430 = vst [vmem:[#allocation3 + $0xa8] sm:$0xf] %v1398
      %1431 = vst [vmem:[#allocation3 + $0xb4] sm:$0xf] %v1399
      %1432 = vst [vmem:[#allocation3 + $0xc0] sm:$0xf] %v1400
      %1433 = vst [vmem:[#allocation3 + $0xcc] sm:$0xf] %v1401
      %1434 = vst [vmem:[#allocation3 + $0xd8] sm:$0xf] %v1402
      %1435 = vst [vmem:[#allocation3 + $0xe4] sm:$0xf] %v1403
      %1436 = vst [vmem:[#allocation3 + $0xf0] sm:$0xf] %v1404
      %1437 = vst [vmem:[#allocation3 + $0xfc] sm:$0xf] %v1405
      %1438 = vst [vmem:[#allocation3 + $0x108] sm:$0xf] %v1406
      %1439 = vst [vmem:[#allocation3 + $0x114] sm:$0xf] %v1407
      %1440 = vst [vmem:[#allocation3 + $0x120] sm:$0xf] %v1408
      %1441 = vst [vmem:[#allocation3 + $0x12c] sm:$0xf] %v1409
      %1442 = vst [vmem:[#allocation3 + $0x138] sm:$0xf] %v1410
      %1443 = vst [vmem:[#allocation3 + $0x144] sm:$0xf] %v1411
      %1444 = vst [vmem:[#allocation3 + $0x150] sm:$0xf] %v1412
      %1445 = vst [vmem:[#allocation3 + $0x15c] sm:$0xf] %v1413
      %1446 = vst [vmem:[#allocation3 + $0x168] sm:$0xf] %v1414
      %1447 = vst [vmem:[#allocation3 + $0x174] sm:$0xf] %v1415
      %v1448 = vld [vmem:[#allocation2] sm:$0xf]
      %v1449 = vld [vmem:[#allocation2 + $0x4] sm:$0xf]
      %v1450 = vld [vmem:[#allocation2 + $0x8] sm:$0x1]
      %v1451 = vld [vmem:[#allocation2 + $0xc] sm:$0xf]
      %v1452 = vld [vmem:[#allocation2 + $0x10] sm:$0xf]
      %v1453 = vld [vmem:[#allocation2 + $0x14] sm:$0x1]
      %v1454 = vld [vmem:[#allocation2 + $0x18] sm:$0xf]
      %v1455 = vld [vmem:[#allocation2 + $0x1c] sm:$0xf]
      %v1456 = vld [vmem:[#allocation2 + $0x20] sm:$0x1]
      %v1457 = vld [vmem:[#allocation2 + $0x24] sm:$0xf]
      %v1458 = vld [vmem:[#allocation2 + $0x28] sm:$0xf]
      %v1459 = vld [vmem:[#allocation2 + $0x2c] sm:$0x1]
      %v1460 = vld [vmem:[#allocation2 + $0x30] sm:$0xf]
      %v1461 = vld [vmem:[#allocation2 + $0x34] sm:$0xf]
      %v1462 = vld [vmem:[#allocation2 + $0x38] sm:$0x1]
      %v1463 = vld [vmem:[#allocation2 + $0x3c] sm:$0xf]
      %v1464 = vld [vmem:[#allocation2 + $0x40] sm:$0xf]
      %v1465 = vld [vmem:[#allocation2 + $0x44] sm:$0x1]
      %v1466 = vld [vmem:[#allocation2 + $0x48] sm:$0xf]
      %v1467 = vld [vmem:[#allocation2 + $0x4c] sm:$0xf]
      %v1468 = vld [vmem:[#allocation2 + $0x50] sm:$0x1]
      %v1469 = vld [vmem:[#allocation2 + $0x54] sm:$0xf]
      %v1470 = vld [vmem:[#allocation2 + $0x58] sm:$0xf]
      %v1471 = vld [vmem:[#allocation2 + $0x5c] sm:$0x1]
      %v1472 = vld [vmem:[#allocation2 + $0x60] sm:$0xf]
      %v1473 = vld [vmem:[#allocation2 + $0x64] sm:$0xf]
      %v1474 = vld [vmem:[#allocation2 + $0x68] sm:$0x1]
      %v1475 = vld [vmem:[#allocation2 + $0x6c] sm:$0xf]
      %v1476 = vld [vmem:[#allocation2 + $0x70] sm:$0xf]
      %v1477 = vld [vmem:[#allocation2 + $0x74] sm:$0x1]
      %v1478 = vld [vmem:[#allocation2 + $0x78] sm:$0xf]
      %v1479 = vld [vmem:[#allocation2 + $0x7c] sm:$0xf]
      %v1480 = vld [vmem:[#allocation2 + $0x80] sm:$0x1]
      %v1481 = vld [vmem:[#allocation2 + $0x84] sm:$0xf]
      %v1482 = vld [vmem:[#allocation2 + $0x88] sm:$0xf]
      %v1483 = vld [vmem:[#allocation2 + $0x8c] sm:$0x1]
      %v1484 = vld [vmem:[#allocation2 + $0x90] sm:$0xf]
      %v1485 = vld [vmem:[#allocation2 + $0x94] sm:$0xf]
      %v1486 = vld [vmem:[#allocation2 + $0x98] sm:$0x1]
      %v1487 = vld [vmem:[#allocation2 + $0x9c] sm:$0xf]
      %v1488 = vld [vmem:[#allocation2 + $0xa0] sm:$0xf]
      %v1489 = vld [vmem:[#allocation2 + $0xa4] sm:$0x1]
      %v1490 = vld [vmem:[#allocation2 + $0xa8] sm:$0xf]
      %v1491 = vld [vmem:[#allocation2 + $0xac] sm:$0xf]
      %v1492 = vld [vmem:[#allocation2 + $0xb0] sm:$0x1]
      %v1493 = vld [vmem:[#allocation2 + $0xb4] sm:$0xf]
      %v1494 = vld [vmem:[#allocation2 + $0xb8] sm:$0xf]
      %v1495 = vld [vmem:[#allocation2 + $0xbc] sm:$0x1]
      %vm1496 = vsmask.f32 3328
      %vm1497 = vsmask.f32 7440
      %vm1498 = vmor %vm1496, %vm1497
      %v1500 = vshrl.u32 %v1448, 16
      %v1502 = vrot.slane %v1500, 4
      %v1503 = vshll.u32 %v1448, 16
      %v1505 = vrot.slane %v1503, 5
      %v1506 = vor.u32 %v1502, %v1505
      %v1507 = vrot.slane %v1506, 4
      %v1509 = vshll.u32 %v1449, 16
      %v1511 = vrot.slane %v1509, 5
      %v1512 = vsel %vm1498, %v1507, %v1511
      %v1513 = vshrl.u32 %v1449, 16
      %v1515 = vrot.slane %v1513, 4
      %v1516 = vor.u32 %v1515, %v1511
      %v1517 = vrot.slane %v1516, 4
      %v1519 = vshll.u32 %v1450, 16
      %v1521 = vrot.slane %v1519, 5
      %v1522 = vsel %vm1498, %v1517, %v1521
      %v1524 = vshrl.u32 %v1451, 16
      %v1526 = vrot.slane %v1524, 4
      %v1527 = vshll.u32 %v1451, 16
      %v1529 = vrot.slane %v1527, 5
      %v1530 = vor.u32 %v1526, %v1529
      %v1531 = vrot.slane %v1530, 4
      %v1533 = vshll.u32 %v1452, 16
      %v1535 = vrot.slane %v1533, 5
      %v1536 = vsel %vm1498, %v1531, %v1535
      %v1537 = vshrl.u32 %v1452, 16
      %v1539 = vrot.slane %v1537, 4
      %v1540 = vor.u32 %v1539, %v1535
      %v1541 = vrot.slane %v1540, 4
      %v1543 = vshll.u32 %v1453, 16
      %v1545 = vrot.slane %v1543, 5
      %v1546 = vsel %vm1498, %v1541, %v1545
      %v1548 = vshrl.u32 %v1454, 16
      %v1550 = vrot.slane %v1548, 4
      %v1551 = vshll.u32 %v1454, 16
      %v1553 = vrot.slane %v1551, 5
      %v1554 = vor.u32 %v1550, %v1553
      %v1555 = vrot.slane %v1554, 4
      %v1557 = vshll.u32 %v1455, 16
      %v1559 = vrot.slane %v1557, 5
      %v1560 = vsel %vm1498, %v1555, %v1559
      %v1561 = vshrl.u32 %v1455, 16
      %v1563 = vrot.slane %v1561, 4
      %v1564 = vor.u32 %v1563, %v1559
      %v1565 = vrot.slane %v1564, 4
      %v1567 = vshll.u32 %v1456, 16
      %v1569 = vrot.slane %v1567, 5
      %v1570 = vsel %vm1498, %v1565, %v1569
      %v1572 = vshrl.u32 %v1457, 16
      %v1574 = vrot.slane %v1572, 4
      %v1575 = vshll.u32 %v1457, 16
      %v1577 = vrot.slane %v1575, 5
      %v1578 = vor.u32 %v1574, %v1577
      %v1579 = vrot.slane %v1578, 4
      %v1581 = vshll.u32 %v1458, 16
      %v1583 = vrot.slane %v1581, 5
      %v1584 = vsel %vm1498, %v1579, %v1583
      %v1585 = vshrl.u32 %v1458, 16
      %v1587 = vrot.slane %v1585, 4
      %v1588 = vor.u32 %v1587, %v1583
      %v1589 = vrot.slane %v1588, 4
      %v1591 = vshll.u32 %v1459, 16
      %v1593 = vrot.slane %v1591, 5
      %v1594 = vsel %vm1498, %v1589, %v1593
      %v1596 = vshrl.u32 %v1460, 16
      %v1598 = vrot.slane %v1596, 4
      %v1599 = vshll.u32 %v1460, 16
      %v1601 = vrot.slane %v1599, 5
      %v1602 = vor.u32 %v1598, %v1601
      %v1603 = vrot.slane %v1602, 4
      %v1605 = vshll.u32 %v1461, 16
      %v1607 = vrot.slane %v1605, 5
      %v1608 = vsel %vm1498, %v1603, %v1607
      %v1609 = vshrl.u32 %v1461, 16
      %v1611 = vrot.slane %v1609, 4
      %v1612 = vor.u32 %v1611, %v1607
      %v1613 = vrot.slane %v1612, 4
      %v1615 = vshll.u32 %v1462, 16
      %v1617 = vrot.slane %v1615, 5
      %v1618 = vsel %vm1498, %v1613, %v1617
      %v1620 = vshrl.u32 %v1463, 16
      %v1622 = vrot.slane %v1620, 4
      %v1623 = vshll.u32 %v1463, 16
      %v1625 = vrot.slane %v1623, 5
      %v1626 = vor.u32 %v1622, %v1625
      %v1627 = vrot.slane %v1626, 4
      %v1629 = vshll.u32 %v1464, 16
      %v1631 = vrot.slane %v1629, 5
      %v1632 = vsel %vm1498, %v1627, %v1631
      %v1633 = vshrl.u32 %v1464, 16
      %v1635 = vrot.slane %v1633, 4
      %v1636 = vor.u32 %v1635, %v1631
      %v1637 = vrot.slane %v1636, 4
      %v1639 = vshll.u32 %v1465, 16
      %v1641 = vrot.slane %v1639, 5
      %v1642 = vsel %vm1498, %v1637, %v1641
      %v1644 = vshrl.u32 %v1466, 16
      %v1646 = vrot.slane %v1644, 4
      %v1647 = vshll.u32 %v1466, 16
      %v1649 = vrot.slane %v1647, 5
      %v1650 = vor.u32 %v1646, %v1649
      %v1651 = vrot.slane %v1650, 4
      %v1653 = vshll.u32 %v1467, 16
      %v1655 = vrot.slane %v1653, 5
      %v1656 = vsel %vm1498, %v1651, %v1655
      %v1657 = vshrl.u32 %v1467, 16
      %v1659 = vrot.slane %v1657, 4
      %v1660 = vor.u32 %v1659, %v1655
      %v1661 = vrot.slane %v1660, 4
      %v1663 = vshll.u32 %v1468, 16
      %v1665 = vrot.slane %v1663, 5
      %v1666 = vsel %vm1498, %v1661, %v1665
      %v1668 = vshrl.u32 %v1469, 16
      %v1670 = vrot.slane %v1668, 4
      %v1671 = vshll.u32 %v1469, 16
      %v1673 = vrot.slane %v1671, 5
      %v1674 = vor.u32 %v1670, %v1673
      %v1675 = vrot.slane %v1674, 4
      %v1677 = vshll.u32 %v1470, 16
      %v1679 = vrot.slane %v1677, 5
      %v1680 = vsel %vm1498, %v1675, %v1679
      %v1681 = vshrl.u32 %v1470, 16
      %v1683 = vrot.slane %v1681, 4
      %v1684 = vor.u32 %v1683, %v1679
      %v1685 = vrot.slane %v1684, 4
      %v1687 = vshll.u32 %v1471, 16
      %v1689 = vrot.slane %v1687, 5
      %v1690 = vsel %vm1498, %v1685, %v1689
      %v1692 = vshrl.u32 %v1472, 16
      %v1694 = vrot.slane %v1692, 4
      %v1695 = vshll.u32 %v1472, 16
      %v1697 = vrot.slane %v1695, 5
      %v1698 = vor.u32 %v1694, %v1697
      %v1699 = vrot.slane %v1698, 4
      %v1701 = vshll.u32 %v1473, 16
      %v1703 = vrot.slane %v1701, 5
      %v1704 = vsel %vm1498, %v1699, %v1703
      %v1705 = vshrl.u32 %v1473, 16
      %v1707 = vrot.slane %v1705, 4
      %v1708 = vor.u32 %v1707, %v1703
      %v1709 = vrot.slane %v1708, 4
      %v1711 = vshll.u32 %v1474, 16
      %v1713 = vrot.slane %v1711, 5
      %v1714 = vsel %vm1498, %v1709, %v1713
      %v1716 = vshrl.u32 %v1475, 16
      %v1718 = vrot.slane %v1716, 4
      %v1719 = vshll.u32 %v1475, 16
      %v1721 = vrot.slane %v1719, 5
      %v1722 = vor.u32 %v1718, %v1721
      %v1723 = vrot.slane %v1722, 4
      %v1725 = vshll.u32 %v1476, 16
      %v1727 = vrot.slane %v1725, 5
      %v1728 = vsel %vm1498, %v1723, %v1727
      %v1729 = vshrl.u32 %v1476, 16
      %v1731 = vrot.slane %v1729, 4
      %v1732 = vor.u32 %v1731, %v1727
      %v1733 = vrot.slane %v1732, 4
      %v1735 = vshll.u32 %v1477, 16
      %v1737 = vrot.slane %v1735, 5
      %v1738 = vsel %vm1498, %v1733, %v1737
      %v1740 = vshrl.u32 %v1478, 16
      %v1742 = vrot.slane %v1740, 4
      %v1743 = vshll.u32 %v1478, 16
      %v1745 = vrot.slane %v1743, 5
      %v1746 = vor.u32 %v1742, %v1745
      %v1747 = vrot.slane %v1746, 4
      %v1749 = vshll.u32 %v1479, 16
      %v1751 = vrot.slane %v1749, 5
      %v1752 = vsel %vm1498, %v1747, %v1751
      %v1753 = vshrl.u32 %v1479, 16
      %v1755 = vrot.slane %v1753, 4
      %v1756 = vor.u32 %v1755, %v1751
      %v1757 = vrot.slane %v1756, 4
      %v1759 = vshll.u32 %v1480, 16
      %v1761 = vrot.slane %v1759, 5
      %v1762 = vsel %vm1498, %v1757, %v1761
      %v1764 = vshrl.u32 %v1481, 16
      %v1766 = vrot.slane %v1764, 4
      %v1767 = vshll.u32 %v1481, 16
      %v1769 = vrot.slane %v1767, 5
      %v1770 = vor.u32 %v1766, %v1769
      %v1771 = vrot.slane %v1770, 4
      %v1773 = vshll.u32 %v1482, 16
      %v1775 = vrot.slane %v1773, 5
      %v1776 = vsel %vm1498, %v1771, %v1775
      %v1777 = vshrl.u32 %v1482, 16
      %v1779 = vrot.slane %v1777, 4
      %v1780 = vor.u32 %v1779, %v1775
      %v1781 = vrot.slane %v1780, 4
      %v1783 = vshll.u32 %v1483, 16
      %v1785 = vrot.slane %v1783, 5
      %v1786 = vsel %vm1498, %v1781, %v1785
      %v1788 = vshrl.u32 %v1484, 16
      %v1790 = vrot.slane %v1788, 4
      %v1791 = vshll.u32 %v1484, 16
      %v1793 = vrot.slane %v1791, 5
      %v1794 = vor.u32 %v1790, %v1793
      %v1795 = vrot.slane %v1794, 4
      %v1797 = vshll.u32 %v1485, 16
      %v1799 = vrot.slane %v1797, 5
      %v1800 = vsel %vm1498, %v1795, %v1799
      %v1801 = vshrl.u32 %v1485, 16
      %v1803 = vrot.slane %v1801, 4
      %v1804 = vor.u32 %v1803, %v1799
      %v1805 = vrot.slane %v1804, 4
      %v1807 = vshll.u32 %v1486, 16
      %v1809 = vrot.slane %v1807, 5
      %v1810 = vsel %vm1498, %v1805, %v1809
      %v1812 = vshrl.u32 %v1487, 16
      %v1814 = vrot.slane %v1812, 4
      %v1815 = vshll.u32 %v1487, 16
      %v1817 = vrot.slane %v1815, 5
      %v1818 = vor.u32 %v1814, %v1817
      %v1819 = vrot.slane %v1818, 4
      %v1821 = vshll.u32 %v1488, 16
      %v1823 = vrot.slane %v1821, 5
      %v1824 = vsel %vm1498, %v1819, %v1823
      %v1825 = vshrl.u32 %v1488, 16
      %v1827 = vrot.slane %v1825, 4
      %v1828 = vor.u32 %v1827, %v1823
      %v1829 = vrot.slane %v1828, 4
      %v1831 = vshll.u32 %v1489, 16
      %v1833 = vrot.slane %v1831, 5
      %v1834 = vsel %vm1498, %v1829, %v1833
      %v1836 = vshrl.u32 %v1490, 16
      %v1838 = vrot.slane %v1836, 4
      %v1839 = vshll.u32 %v1490, 16
      %v1841 = vrot.slane %v1839, 5
      %v1842 = vor.u32 %v1838, %v1841
      %v1843 = vrot.slane %v1842, 4
      %v1845 = vshll.u32 %v1491, 16
      %v1847 = vrot.slane %v1845, 5
      %v1848 = vsel %vm1498, %v1843, %v1847
      %v1849 = vshrl.u32 %v1491, 16
      %v1851 = vrot.slane %v1849, 4
      %v1852 = vor.u32 %v1851, %v1847
      %v1853 = vrot.slane %v1852, 4
      %v1855 = vshll.u32 %v1492, 16
      %v1857 = vrot.slane %v1855, 5
      %v1858 = vsel %vm1498, %v1853, %v1857
      %v1860 = vshrl.u32 %v1493, 16
      %v1862 = vrot.slane %v1860, 4
      %v1863 = vshll.u32 %v1493, 16
      %v1865 = vrot.slane %v1863, 5
      %v1866 = vor.u32 %v1862, %v1865
      %v1867 = vrot.slane %v1866, 4
      %v1869 = vshll.u32 %v1494, 16
      %v1871 = vrot.slane %v1869, 5
      %v1872 = vsel %vm1498, %v1867, %v1871
      %v1873 = vshrl.u32 %v1494, 16
      %v1875 = vrot.slane %v1873, 4
      %v1876 = vor.u32 %v1875, %v1871
      %v1877 = vrot.slane %v1876, 4
      %v1879 = vshll.u32 %v1495, 16
      %v1881 = vrot.slane %v1879, 5
      %v1882 = vsel %vm1498, %v1877, %v1881
      %1915 = vst [vmem:[#allocation3 + $0x4] sm:$0xf] %v1512
      %1916 = vst [vmem:[#allocation3 + $0x10] sm:$0xf] %v1522
      %1917 = vst [vmem:[#allocation3 + $0x1c] sm:$0xf] %v1536
      %1918 = vst [vmem:[#allocation3 + $0x28] sm:$0xf] %v1546
      %1919 = vst [vmem:[#allocation3 + $0x34] sm:$0xf] %v1560
      %1920 = vst [vmem:[#allocation3 + $0x40] sm:$0xf] %v1570
      %1921 = vst [vmem:[#allocation3 + $0x4c] sm:$0xf] %v1584
      %1922 = vst [vmem:[#allocation3 + $0x58] sm:$0xf] %v1594
      %1923 = vst [vmem:[#allocation3 + $0x64] sm:$0xf] %v1608
      %1924 = vst [vmem:[#allocation3 + $0x70] sm:$0xf] %v1618
      %1925 = vst [vmem:[#allocation3 + $0x7c] sm:$0xf] %v1632
      %1926 = vst [vmem:[#allocation3 + $0x88] sm:$0xf] %v1642
      %1927 = vst [vmem:[#allocation3 + $0x94] sm:$0xf] %v1656
      %1928 = vst [vmem:[#allocation3 + $0xa0] sm:$0xf] %v1666
      %1929 = vst [vmem:[#allocation3 + $0xac] sm:$0xf] %v1680
      %1930 = vst [vmem:[#allocation3 + $0xb8] sm:$0xf] %v1690
      %1931 = vst [vmem:[#allocation3 + $0xc4] sm:$0xf] %v1704
      %1932 = vst [vmem:[#allocation3 + $0xd0] sm:$0xf] %v1714
      %1933 = vst [vmem:[#allocation3 + $0xdc] sm:$0xf] %v1728
      %1934 = vst [vmem:[#allocation3 + $0xe8] sm:$0xf] %v1738
      %1935 = vst [vmem:[#allocation3 + $0xf4] sm:$0xf] %v1752
      %1936 = vst [vmem:[#allocation3 + $0x100] sm:$0xf] %v1762
      %1937 = vst [vmem:[#allocation3 + $0x10c] sm:$0xf] %v1776
      %1938 = vst [vmem:[#allocation3 + $0x118] sm:$0xf] %v1786
      %1939 = vst [vmem:[#allocation3 + $0x124] sm:$0xf] %v1800
      %1940 = vst [vmem:[#allocation3 + $0x130] sm:$0xf] %v1810
      %1941 = vst [vmem:[#allocation3 + $0x13c] sm:$0xf] %v1824
      %1942 = vst [vmem:[#allocation3 + $0x148] sm:$0xf] %v1834
      %1943 = vst [vmem:[#allocation3 + $0x154] sm:$0xf] %v1848
      %1944 = vst [vmem:[#allocation3 + $0x160] sm:$0xf] %v1858
      %1945 = vst [vmem:[#allocation3 + $0x16c] sm:$0xf] %v1872
      %1946 = vst [vmem:[#allocation3 + $0x178] sm:$0xf] %v1882
      %v1947 = vld [vmem:[#allocation2] sm:$0xe]
      %v1948 = vld [vmem:[#allocation2 + $0x4] sm:$0xf]
      %v1949 = vld [vmem:[#allocation2 + $0x8] sm:$0x1]
      %v1950 = vld [vmem:[#allocation2 + $0xc] sm:$0xe]
      %v1951 = vld [vmem:[#allocation2 + $0x10] sm:$0xf]
      %v1952 = vld [vmem:[#allocation2 + $0x14] sm:$0x1]
      %v1953 = vld [vmem:[#allocation2 + $0x18] sm:$0xe]
      %v1954 = vld [vmem:[#allocation2 + $0x1c] sm:$0xf]
      %v1955 = vld [vmem:[#allocation2 + $0x20] sm:$0x1]
      %v1956 = vld [vmem:[#allocation2 + $0x24] sm:$0xe]
      %v1957 = vld [vmem:[#allocation2 + $0x28] sm:$0xf]
      %v1958 = vld [vmem:[#allocation2 + $0x2c] sm:$0x1]
      %v1959 = vld [vmem:[#allocation2 + $0x30] sm:$0xe]
      %v1960 = vld [vmem:[#allocation2 + $0x34] sm:$0xf]
      %v1961 = vld [vmem:[#allocation2 + $0x38] sm:$0x1]
      %v1962 = vld [vmem:[#allocation2 + $0x3c] sm:$0xe]
      %v1963 = vld [vmem:[#allocation2 + $0x40] sm:$0xf]
      %v1964 = vld [vmem:[#allocation2 + $0x44] sm:$0x1]
      %v1965 = vld [vmem:[#allocation2 + $0x48] sm:$0xe]
      %v1966 = vld [vmem:[#allocation2 + $0x4c] sm:$0xf]
      %v1967 = vld [vmem:[#allocation2 + $0x50] sm:$0x1]
      %v1968 = vld [vmem:[#allocation2 + $0x54] sm:$0xe]
      %v1969 = vld [vmem:[#allocation2 + $0x58] sm:$0xf]
      %v1970 = vld [vmem:[#allocation2 + $0x5c] sm:$0x1]
      %v1971 = vld [vmem:[#allocation2 + $0x60] sm:$0xe]
      %v1972 = vld [vmem:[#allocation2 + $0x64] sm:$0xf]
      %v1973 = vld [vmem:[#allocation2 + $0x68] sm:$0x1]
      %v1974 = vld [vmem:[#allocation2 + $0x6c] sm:$0xe]
      %v1975 = vld [vmem:[#allocation2 + $0x70] sm:$0xf]
      %v1976 = vld [vmem:[#allocation2 + $0x74] sm:$0x1]
      %v1977 = vld [vmem:[#allocation2 + $0x78] sm:$0xe]
      %v1978 = vld [vmem:[#allocation2 + $0x7c] sm:$0xf]
      %v1979 = vld [vmem:[#allocation2 + $0x80] sm:$0x1]
      %v1980 = vld [vmem:[#allocation2 + $0x84] sm:$0xe]
      %v1981 = vld [vmem:[#allocation2 + $0x88] sm:$0xf]
      %v1982 = vld [vmem:[#allocation2 + $0x8c] sm:$0x1]
      %v1983 = vld [vmem:[#allocation2 + $0x90] sm:$0xe]
      %v1984 = vld [vmem:[#allocation2 + $0x94] sm:$0xf]
      %v1985 = vld [vmem:[#allocation2 + $0x98] sm:$0x1]
      %v1986 = vld [vmem:[#allocation2 + $0x9c] sm:$0xe]
      %v1987 = vld [vmem:[#allocation2 + $0xa0] sm:$0xf]
      %v1988 = vld [vmem:[#allocation2 + $0xa4] sm:$0x1]
      %v1989 = vld [vmem:[#allocation2 + $0xa8] sm:$0xe]
      %v1990 = vld [vmem:[#allocation2 + $0xac] sm:$0xf]
      %v1991 = vld [vmem:[#allocation2 + $0xb0] sm:$0x1]
      %v1992 = vld [vmem:[#allocation2 + $0xb4] sm:$0xe]
      %v1993 = vld [vmem:[#allocation2 + $0xb8] sm:$0xf]
      %v1994 = vld [vmem:[#allocation2 + $0xbc] sm:$0x1]
      %vm2043 = vcmask 1042432
      %vm2044 = vcmask 1046532
      %vm2045 = vmor %vm2043, %vm2044
      %v2046 = vrot.slane %v1947, 5
      %v2047 = vrot.slane %v2046, 4
      %v2048 = vrot.slane %v1948, 5
      %v2049 = vsel %vm2045, %v2047, %v2048
      %v2050 = vrot.slane %v2048, 4
      %v2051 = vrot.slane %v1949, 5
      %v2052 = vsel %vm2045, %v2050, %v2051
      %v2053 = vrot.slane %v1950, 5
      %v2054 = vrot.slane %v2053, 4
      %v2055 = vrot.slane %v1951, 5
      %v2056 = vsel %vm2045, %v2054, %v2055
      %v2057 = vrot.slane %v2055, 4
      %v2058 = vrot.slane %v1952, 5
      %v2059 = vsel %vm2045, %v2057, %v2058
      %v2060 = vrot.slane %v1953, 5
      %v2061 = vrot.slane %v2060, 4
      %v2062 = vrot.slane %v1954, 5
      %v2063 = vsel %vm2045, %v2061, %v2062
      %v2064 = vrot.slane %v2062, 4
      %v2065 = vrot.slane %v1955, 5
      %v2066 = vsel %vm2045, %v2064, %v2065
      %v2067 = vrot.slane %v1956, 5
      %v2068 = vrot.slane %v2067, 4
      %v2069 = vrot.slane %v1957, 5
      %v2070 = vsel %vm2045, %v2068, %v2069
      %v2071 = vrot.slane %v2069, 4
      %v2072 = vrot.slane %v1958, 5
      %v2073 = vsel %vm2045, %v2071, %v2072
      %v2074 = vrot.slane %v1959, 5
      %v2075 = vrot.slane %v2074, 4
      %v2076 = vrot.slane %v1960, 5
      %v2077 = vsel %vm2045, %v2075, %v2076
      %v2078 = vrot.slane %v2076, 4
      %v2079 = vrot.slane %v1961, 5
      %v2080 = vsel %vm2045, %v2078, %v2079
      %v2081 = vrot.slane %v1962, 5
      %v2082 = vrot.slane %v2081, 4
      %v2083 = vrot.slane %v1963, 5
      %v2084 = vsel %vm2045, %v2082, %v2083
      %v2085 = vrot.slane %v2083, 4
      %v2086 = vrot.slane %v1964, 5
      %v2087 = vsel %vm2045, %v2085, %v2086
      %v2088 = vrot.slane %v1965, 5
      %v2089 = vrot.slane %v2088, 4
      %v2090 = vrot.slane %v1966, 5
      %v2091 = vsel %vm2045, %v2089, %v2090
      %v2092 = vrot.slane %v2090, 4
      %v2093 = vrot.slane %v1967, 5
      %v2094 = vsel %vm2045, %v2092, %v2093
      %v2095 = vrot.slane %v1968, 5
      %v2096 = vrot.slane %v2095, 4
      %v2097 = vrot.slane %v1969, 5
      %v2098 = vsel %vm2045, %v2096, %v2097
      %v2099 = vrot.slane %v2097, 4
      %v2100 = vrot.slane %v1970, 5
      %v2101 = vsel %vm2045, %v2099, %v2100
      %v2102 = vrot.slane %v1971, 5
      %v2103 = vrot.slane %v2102, 4
      %v2104 = vrot.slane %v1972, 5
      %v2105 = vsel %vm2045, %v2103, %v2104
      %v2106 = vrot.slane %v2104, 4
      %v2107 = vrot.slane %v1973, 5
      %v2108 = vsel %vm2045, %v2106, %v2107
      %v2109 = vrot.slane %v1974, 5
      %v2110 = vrot.slane %v2109, 4
      %v2111 = vrot.slane %v1975, 5
      %v2112 = vsel %vm2045, %v2110, %v2111
      %v2113 = vrot.slane %v2111, 4
      %v2114 = vrot.slane %v1976, 5
      %v2115 = vsel %vm2045, %v2113, %v2114
      %v2116 = vrot.slane %v1977, 5
      %v2117 = vrot.slane %v2116, 4
      %v2118 = vrot.slane %v1978, 5
      %v2119 = vsel %vm2045, %v2117, %v2118
      %v2120 = vrot.slane %v2118, 4
      %v2121 = vrot.slane %v1979, 5
      %v2122 = vsel %vm2045, %v2120, %v2121
      %v2123 = vrot.slane %v1980, 5
      %v2124 = vrot.slane %v2123, 4
      %v2125 = vrot.slane %v1981, 5
      %v2126 = vsel %vm2045, %v2124, %v2125
      %v2127 = vrot.slane %v2125, 4
      %v2128 = vrot.slane %v1982, 5
      %v2129 = vsel %vm2045, %v2127, %v2128
      %v2130 = vrot.slane %v1983, 5
      %v2131 = vrot.slane %v2130, 4
      %v2132 = vrot.slane %v1984, 5
      %v2133 = vsel %vm2045, %v2131, %v2132
      %v2134 = vrot.slane %v2132, 4
      %v2135 = vrot.slane %v1985, 5
      %v2136 = vsel %vm2045, %v2134, %v2135
      %v2137 = vrot.slane %v1986, 5
      %v2138 = vrot.slane %v2137, 4
      %v2139 = vrot.slane %v1987, 5
      %v2140 = vsel %vm2045, %v2138, %v2139
      %v2141 = vrot.slane %v2139, 4
      %v2142 = vrot.slane %v1988, 5
      %v2143 = vsel %vm2045, %v2141, %v2142
      %v2144 = vrot.slane %v1989, 5
      %v2145 = vrot.slane %v2144, 4
      %v2146 = vrot.slane %v1990, 5
      %v2147 = vsel %vm2045, %v2145, %v2146
      %v2148 = vrot.slane %v2146, 4
      %v2149 = vrot.slane %v1991, 5
      %v2150 = vsel %vm2045, %v2148, %v2149
      %v2151 = vrot.slane %v1992, 5
      %v2152 = vrot.slane %v2151, 4
      %v2153 = vrot.slane %v1993, 5
      %v2154 = vsel %vm2045, %v2152, %v2153
      %v2155 = vrot.slane %v2153, 4
      %v2156 = vrot.slane %v1994, 5
      %v2157 = vsel %vm2045, %v2155, %v2156
      %2190 = vst [vmem:[#allocation3 + $0x8] sm:$0xf] %v2049
      %2191 = vst [vmem:[#allocation3 + $0x14] sm:$0xf] %v2052
      %2192 = vst [vmem:[#allocation3 + $0x20] sm:$0xf] %v2056
      %2193 = vst [vmem:[#allocation3 + $0x2c] sm:$0xf] %v2059
      %2194 = vst [vmem:[#allocation3 + $0x38] sm:$0xf] %v2063
      %2195 = vst [vmem:[#allocation3 + $0x44] sm:$0xf] %v2066
      %2196 = vst [vmem:[#allocation3 + $0x50] sm:$0xf] %v2070
      %2197 = vst [vmem:[#allocation3 + $0x5c] sm:$0xf] %v2073
      %2198 = vst [vmem:[#allocation3 + $0x68] sm:$0xf] %v2077
      %2199 = vst [vmem:[#allocation3 + $0x74] sm:$0xf] %v2080
      %2200 = vst [vmem:[#allocation3 + $0x80] sm:$0xf] %v2084
      %2201 = vst [vmem:[#allocation3 + $0x8c] sm:$0xf] %v2087
      %2202 = vst [vmem:[#allocation3 + $0x98] sm:$0xf] %v2091
      %2203 = vst [vmem:[#allocation3 + $0xa4] sm:$0xf] %v2094
      %2204 = vst [vmem:[#allocation3 + $0xb0] sm:$0xf] %v2098
      %2205 = vst [vmem:[#allocation3 + $0xbc] sm:$0xf] %v2101
      %2206 = vst [vmem:[#allocation3 + $0xc8] sm:$0xf] %v2105
      %2207 = vst [vmem:[#allocation3 + $0xd4] sm:$0xf] %v2108
      %2208 = vst [vmem:[#allocation3 + $0xe0] sm:$0xf] %v2112
      %2209 = vst [vmem:[#allocation3 + $0xec] sm:$0xf] %v2115
      %2210 = vst [vmem:[#allocation3 + $0xf8] sm:$0xf] %v2119
      %2211 = vst [vmem:[#allocation3 + $0x104] sm:$0xf] %v2122
      %2212 = vst [vmem:[#allocation3 + $0x110] sm:$0xf] %v2126
      %2213 = vst [vmem:[#allocation3 + $0x11c] sm:$0xf] %v2129
      %2214 = vst [vmem:[#allocation3 + $0x128] sm:$0xf] %v2133
      %2215 = vst [vmem:[#allocation3 + $0x134] sm:$0xf] %v2136
      %2216 = vst [vmem:[#allocation3 + $0x140] sm:$0xf] %v2140
      %2217 = vst [vmem:[#allocation3 + $0x14c] sm:$0xf] %v2143
      %2218 = vst [vmem:[#allocation3 + $0x158] sm:$0xf] %v2147
      %2219 = vst [vmem:[#allocation3 + $0x164] sm:$0xf] %v2150
      %2220 = vst [vmem:[#allocation3 + $0x170] sm:$0xf] %v2154
      %2221 = vst [vmem:[#allocation3 + $0x17c] sm:$0xf] %v2157
      %v2222 = vld [vmem:[#allocation3] sm:$0xff]
      %v2223 = vld [vmem:[#allocation3 + $0x8] sm:$0xf]
      %v2224 = vld [vmem:[#allocation3 + $0xc] sm:$0xff]
      %v2225 = vld [vmem:[#allocation3 + $0x14] sm:$0xf]
      %v2226 = vld [vmem:[#allocation3 + $0x18] sm:$0xff]
      %v2227 = vld [vmem:[#allocation3 + $0x20] sm:$0xf]
      %v2228 = vld [vmem:[#allocation3 + $0x24] sm:$0xff]
      %v2229 = vld [vmem:[#allocation3 + $0x2c] sm:$0xf]
      %v2230 = vld [vmem:[#allocation3 + $0x30] sm:$0xff]
      %v2231 = vld [vmem:[#allocation3 + $0x38] sm:$0xf]
      %v2232 = vld [vmem:[#allocation3 + $0x3c] sm:$0xff]
      %v2233 = vld [vmem:[#allocation3 + $0x44] sm:$0xf]
      %v2234 = vld [vmem:[#allocation3 + $0x48] sm:$0xff]
      %v2235 = vld [vmem:[#allocation3 + $0x50] sm:$0xf]
      %v2236 = vld [vmem:[#allocation3 + $0x54] sm:$0xff]
      %v2237 = vld [vmem:[#allocation3 + $0x5c] sm:$0xf]
      %v2238 = vld [vmem:[#allocation3 + $0x60] sm:$0xff]
      %v2239 = vld [vmem:[#allocation3 + $0x68] sm:$0xf]
      %v2240 = vld [vmem:[#allocation3 + $0x6c] sm:$0xff]
      %v2241 = vld [vmem:[#allocation3 + $0x74] sm:$0xf]
      %v2242 = vld [vmem:[#allocation3 + $0x78] sm:$0xff]
      %v2243 = vld [vmem:[#allocation3 + $0x80] sm:$0xf]
      %v2244 = vld [vmem:[#allocation3 + $0x84] sm:$0xff]
      %v2245 = vld [vmem:[#allocation3 + $0x8c] sm:$0xf]
      %v2246 = vld [vmem:[#allocation3 + $0x90] sm:$0xff]
      %v2247 = vld [vmem:[#allocation3 + $0x98] sm:$0xf]
      %v2248 = vld [vmem:[#allocation3 + $0x9c] sm:$0xff]
      %v2249 = vld [vmem:[#allocation3 + $0xa4] sm:$0xf]
      %v2250 = vld [vmem:[#allocation3 + $0xa8] sm:$0xff]
      %v2251 = vld [vmem:[#allocation3 + $0xb0] sm:$0xf]
      %v2252 = vld [vmem:[#allocation3 + $0xb4] sm:$0xff]
      %v2253 = vld [vmem:[#allocation3 + $0xbc] sm:$0xf]
      %v2254 = vld [vmem:[#allocation3 + $0xc0] sm:$0xff]
      %v2255 = vld [vmem:[#allocation3 + $0xc8] sm:$0xf]
      %v2256 = vld [vmem:[#allocation3 + $0xcc] sm:$0xff]
      %v2257 = vld [vmem:[#allocation3 + $0xd4] sm:$0xf]
      %v2258 = vld [vmem:[#allocation3 + $0xd8] sm:$0xff]
      %v2259 = vld [vmem:[#allocation3 + $0xe0] sm:$0xf]
      %v2260 = vld [vmem:[#allocation3 + $0xe4] sm:$0xff]
      %v2261 = vld [vmem:[#allocation3 + $0xec] sm:$0xf]
      %v2262 = vld [vmem:[#allocation3 + $0xf0] sm:$0xff]
      %v2263 = vld [vmem:[#allocation3 + $0xf8] sm:$0xf]
      %v2264 = vld [vmem:[#allocation3 + $0xfc] sm:$0xff]
      %v2265 = vld [vmem:[#allocation3 + $0x104] sm:$0xf]
      %v2266 = vld [vmem:[#allocation3 + $0x108] sm:$0xff]
      %v2267 = vld [vmem:[#allocation3 + $0x110] sm:$0xf]
      %v2268 = vld [vmem:[#allocation3 + $0x114] sm:$0xff]
      %v2269 = vld [vmem:[#allocation3 + $0x11c] sm:$0xf]
      %v2270 = vld [vmem:[#allocation3 + $0x120] sm:$0xff]
      %v2271 = vld [vmem:[#allocation3 + $0x128] sm:$0xf]
      %v2272 = vld [vmem:[#allocation3 + $0x12c] sm:$0xff]
      %v2273 = vld [vmem:[#allocation3 + $0x134] sm:$0xf]
      %v2274 = vld [vmem:[#allocation3 + $0x138] sm:$0xff]
      %v2275 = vld [vmem:[#allocation3 + $0x140] sm:$0xf]
      %v2276 = vld [vmem:[#allocation3 + $0x144] sm:$0xff]
      %v2277 = vld [vmem:[#allocation3 + $0x14c] sm:$0xf]
      %v2278 = vld [vmem:[#allocation3 + $0x150] sm:$0xff]
      %v2279 = vld [vmem:[#allocation3 + $0x158] sm:$0xf]
      %v2280 = vld [vmem:[#allocation3 + $0x15c] sm:$0xff]
      %v2281 = vld [vmem:[#allocation3 + $0x164] sm:$0xf]
      %v2282 = vld [vmem:[#allocation3 + $0x168] sm:$0xff]
      %v2283 = vld [vmem:[#allocation3 + $0x170] sm:$0xf]
      %v2284 = vld [vmem:[#allocation3 + $0x174] sm:$0xff]
      %v2285 = vld [vmem:[#allocation3 + $0x17c] sm:$0xf]
      %v2286 = vld [vmem:[%s4] sm:$0xf]
      %v2287 = vld [vmem:[%s4 + $0x4] sm:$0xf]
      %v2288 = vld [vmem:[%s4 + $0x8] sm:$0xf]
      %v2289 = vld [vmem:[%s4 + $0xc] sm:$0xf]
      %v2290 = vld [vmem:[%s4 + $0x10] sm:$0xf]
      %v2291 = vld [vmem:[%s4 + $0x14] sm:$0xf]
      %v2292 = vld [vmem:[%s4 + $0x18] sm:$0xf]
      %v2293 = vld [vmem:[%s4 + $0x1c] sm:$0xf]
      %v2294 = vld [vmem:[%s4 + $0x20] sm:$0xf]
      %v2295 = vld [vmem:[%s4 + $0x24] sm:$0xf]
      %v2296 = vld [vmem:[%s4 + $0x28] sm:$0xf]
      %v2297 = vld [vmem:[%s4 + $0x2c] sm:$0xf]
      %v2298 = vld [vmem:[%s4 + $0x30] sm:$0xf]
      %v2299 = vld [vmem:[%s4 + $0x34] sm:$0xf]
      %v2300 = vld [vmem:[%s4 + $0x38] sm:$0xf]
      %v2301 = vld [vmem:[%s4 + $0x3c] sm:$0xf]
      %v2302 = vld [vmem:[%s4 + $0x40] sm:$0xf]
      %v2303 = vld [vmem:[%s4 + $0x44] sm:$0xf]
      %v2304 = vld [vmem:[%s4 + $0x48] sm:$0xf]
      %v2305 = vld [vmem:[%s4 + $0x4c] sm:$0xf]
      %v2306 = vld [vmem:[%s4 + $0x50] sm:$0xf]
      %v2307 = vld [vmem:[%s4 + $0x54] sm:$0xf]
      %v2308 = vld [vmem:[%s4 + $0x58] sm:$0xf]
      %v2309 = vld [vmem:[%s4 + $0x5c] sm:$0xf]
      %v2310 = vld [vmem:[%s4 + $0x60] sm:$0xf]
      %v2311 = vld [vmem:[%s4 + $0x64] sm:$0xf]
      %v2312 = vld [vmem:[%s4 + $0x68] sm:$0xf]
      %v2313 = vld [vmem:[%s4 + $0x6c] sm:$0xf]
      %v2314 = vld [vmem:[%s4 + $0x70] sm:$0xf]
      %v2315 = vld [vmem:[%s4 + $0x74] sm:$0xf]
      %v2316 = vld [vmem:[%s4 + $0x78] sm:$0xf]
      %v2317 = vld [vmem:[%s4 + $0x7c] sm:$0xf]
      %v2318 = vld [vmem:[%s4 + $0x80] sm:$0xf]
      %v2319 = vld [vmem:[%s4 + $0x84] sm:$0xf]
      %v2320 = vld [vmem:[%s4 + $0x88] sm:$0xf]
      %v2321 = vld [vmem:[%s4 + $0x8c] sm:$0xf]
      %v2322 = vld [vmem:[%s4 + $0x90] sm:$0xf]
      %v2323 = vld [vmem:[%s4 + $0x94] sm:$0xf]
      %v2324 = vld [vmem:[%s4 + $0x98] sm:$0xf]
      %v2325 = vld [vmem:[%s4 + $0x9c] sm:$0xf]
      %v2326 = vld [vmem:[%s4 + $0xa0] sm:$0xf]
      %v2327 = vld [vmem:[%s4 + $0xa4] sm:$0xf]
      %v2328 = vld [vmem:[%s4 + $0xa8] sm:$0xf]
      %v2329 = vld [vmem:[%s4 + $0xac] sm:$0xf]
      %v2330 = vld [vmem:[%s4 + $0xb0] sm:$0xf]
      %v2331 = vld [vmem:[%s4 + $0xb4] sm:$0xf]
      %v2332 = vld [vmem:[%s4 + $0xb8] sm:$0xf]
      %v2333 = vld [vmem:[%s4 + $0xbc] sm:$0xf]
      %v2334 = vld [vmem:[%s750] sm:$0xf]
      %v2335 = vld [vmem:[%s750 + $0x4] sm:$0xf]
      %v2336 = vld [vmem:[%s750 + $0xc] sm:$0xf]
      %v2337 = vld [vmem:[%s750 + $0x10] sm:$0xf]
      %v2338 = vld [vmem:[%s750 + $0x18] sm:$0xf]
      %v2339 = vld [vmem:[%s750 + $0x1c] sm:$0xf]
      %v2340 = vld [vmem:[%s750 + $0x24] sm:$0xf]
      %v2341 = vld [vmem:[%s750 + $0x28] sm:$0xf]
      %v2342 = vld [vmem:[%s750 + $0x30] sm:$0xf]
      %v2343 = vld [vmem:[%s750 + $0x34] sm:$0xf]
      %v2344 = vld [vmem:[%s750 + $0x3c] sm:$0xf]
      %v2345 = vld [vmem:[%s750 + $0x40] sm:$0xf]
      %v2346 = vld [vmem:[%s750 + $0x48] sm:$0xf]
      %v2347 = vld [vmem:[%s750 + $0x4c] sm:$0xf]
      %v2348 = vld [vmem:[%s750 + $0x54] sm:$0xf]
      %v2349 = vld [vmem:[%s750 + $0x58] sm:$0xf]
      %v2350 = vld [vmem:[%s750 + $0x60] sm:$0xf]
      %v2351 = vld [vmem:[%s750 + $0x64] sm:$0xf]
      %v2352 = vld [vmem:[%s750 + $0x6c] sm:$0xf]
      %v2353 = vld [vmem:[%s750 + $0x70] sm:$0xf]
      %v2354 = vld [vmem:[%s750 + $0x78] sm:$0xf]
      %v2355 = vld [vmem:[%s750 + $0x7c] sm:$0xf]
      %v2356 = vld [vmem:[%s750 + $0x84] sm:$0xf]
      %v2357 = vld [vmem:[%s750 + $0x88] sm:$0xf]
      %v2358 = vld [vmem:[%s750 + $0x90] sm:$0xf]
      %v2359 = vld [vmem:[%s750 + $0x94] sm:$0xf]
      %v2360 = vld [vmem:[%s750 + $0x9c] sm:$0xf]
      %v2361 = vld [vmem:[%s750 + $0xa0] sm:$0xf]
      %v2362 = vld [vmem:[%s750 + $0xa8] sm:$0xf]
      %v2363 = vld [vmem:[%s750 + $0xac] sm:$0xf]
      %v2364 = vld [vmem:[%s750 + $0xb4] sm:$0xf]
      %v2365 = vld [vmem:[%s750 + $0xb8] sm:$0xf]
      %2366 = vst [vmem:[#allocation3] sm:$0xf] %v2334
      %2367 = vst [vmem:[#allocation3 + $0xc] sm:$0xf] %v2335
      %2368 = vst [vmem:[#allocation3 + $0x18] sm:$0xf] %v2336
      %2369 = vst [vmem:[#allocation3 + $0x24] sm:$0xf] %v2337
      %2370 = vst [vmem:[#allocation3 + $0x30] sm:$0xf] %v2338
      %2371 = vst [vmem:[#allocation3 + $0x3c] sm:$0xf] %v2339
      %2372 = vst [vmem:[#allocation3 + $0x48] sm:$0xf] %v2340
      %2373 = vst [vmem:[#allocation3 + $0x54] sm:$0xf] %v2341
      %2374 = vst [vmem:[#allocation3 + $0x60] sm:$0xf] %v2342
      %2375 = vst [vmem:[#allocation3 + $0x6c] sm:$0xf] %v2343
      %2376 = vst [vmem:[#allocation3 + $0x78] sm:$0xf] %v2344
      %2377 = vst [vmem:[#allocation3 + $0x84] sm:$0xf] %v2345
      %2378 = vst [vmem:[#allocation3 + $0x90] sm:$0xf] %v2346
      %2379 = vst [vmem:[#allocation3 + $0x9c] sm:$0xf] %v2347
      %2380 = vst [vmem:[#allocation3 + $0xa8] sm:$0xf] %v2348
      %2381 = vst [vmem:[#allocation3 + $0xb4] sm:$0xf] %v2349
      %2382 = vst [vmem:[#allocation3 + $0xc0] sm:$0xf] %v2350
      %2383 = vst [vmem:[#allocation3 + $0xcc] sm:$0xf] %v2351
      %2384 = vst [vmem:[#allocation3 + $0xd8] sm:$0xf] %v2352
      %2385 = vst [vmem:[#allocation3 + $0xe4] sm:$0xf] %v2353
      %2386 = vst [vmem:[#allocation3 + $0xf0] sm:$0xf] %v2354
      %2387 = vst [vmem:[#allocation3 + $0xfc] sm:$0xf] %v2355
      %2388 = vst [vmem:[#allocation3 + $0x108] sm:$0xf] %v2356
      %2389 = vst [vmem:[#allocation3 + $0x114] sm:$0xf] %v2357
      %2390 = vst [vmem:[#allocation3 + $0x120] sm:$0xf] %v2358
      %2391 = vst [vmem:[#allocation3 + $0x12c] sm:$0xf] %v2359
      %2392 = vst [vmem:[#allocation3 + $0x138] sm:$0xf] %v2360
      %2393 = vst [vmem:[#allocation3 + $0x144] sm:$0xf] %v2361
      %2394 = vst [vmem:[#allocation3 + $0x150] sm:$0xf] %v2362
      %2395 = vst [vmem:[#allocation3 + $0x15c] sm:$0xf] %v2363
      %2396 = vst [vmem:[#allocation3 + $0x168] sm:$0xf] %v2364
      %2397 = vst [vmem:[#allocation3 + $0x174] sm:$0xf] %v2365
      %v2398 = vld [vmem:[%s750] sm:$0xf]
      %v2399 = vld [vmem:[%s750 + $0x4] sm:$0xf]
      %v2400 = vld [vmem:[%s750 + $0x8] sm:$0x1]
      %v2401 = vld [vmem:[%s750 + $0xc] sm:$0xf]
      %v2402 = vld [vmem:[%s750 + $0x10] sm:$0xf]
      %v2403 = vld [vmem:[%s750 + $0x14] sm:$0x1]
      %v2404 = vld [vmem:[%s750 + $0x18] sm:$0xf]
      %v2405 = vld [vmem:[%s750 + $0x1c] sm:$0xf]
      %v2406 = vld [vmem:[%s750 + $0x20] sm:$0x1]
      %v2407 = vld [vmem:[%s750 + $0x24] sm:$0xf]
      %v2408 = vld [vmem:[%s750 + $0x28] sm:$0xf]
      %v2409 = vld [vmem:[%s750 + $0x2c] sm:$0x1]
      %v2410 = vld [vmem:[%s750 + $0x30] sm:$0xf]
      %v2411 = vld [vmem:[%s750 + $0x34] sm:$0xf]
      %v2412 = vld [vmem:[%s750 + $0x38] sm:$0x1]
      %v2413 = vld [vmem:[%s750 + $0x3c] sm:$0xf]
      %v2414 = vld [vmem:[%s750 + $0x40] sm:$0xf]
      %v2415 = vld [vmem:[%s750 + $0x44] sm:$0x1]
      %v2416 = vld [vmem:[%s750 + $0x48] sm:$0xf]
      %v2417 = vld [vmem:[%s750 + $0x4c] sm:$0xf]
      %v2418 = vld [vmem:[%s750 + $0x50] sm:$0x1]
      %v2419 = vld [vmem:[%s750 + $0x54] sm:$0xf]
      %v2420 = vld [vmem:[%s750 + $0x58] sm:$0xf]
      %v2421 = vld [vmem:[%s750 + $0x5c] sm:$0x1]
      %v2422 = vld [vmem:[%s750 + $0x60] sm:$0xf]
      %v2423 = vld [vmem:[%s750 + $0x64] sm:$0xf]
      %v2424 = vld [vmem:[%s750 + $0x68] sm:$0x1]
      %v2425 = vld [vmem:[%s750 + $0x6c] sm:$0xf]
      %v2426 = vld [vmem:[%s750 + $0x70] sm:$0xf]
      %v2427 = vld [vmem:[%s750 + $0x74] sm:$0x1]
      %v2428 = vld [vmem:[%s750 + $0x78] sm:$0xf]
      %v2429 = vld [vmem:[%s750 + $0x7c] sm:$0xf]
      %v2430 = vld [vmem:[%s750 + $0x80] sm:$0x1]
      %v2431 = vld [vmem:[%s750 + $0x84] sm:$0xf]
      %v2432 = vld [vmem:[%s750 + $0x88] sm:$0xf]
      %v2433 = vld [vmem:[%s750 + $0x8c] sm:$0x1]
      %v2434 = vld [vmem:[%s750 + $0x90] sm:$0xf]
      %v2435 = vld [vmem:[%s750 + $0x94] sm:$0xf]
      %v2436 = vld [vmem:[%s750 + $0x98] sm:$0x1]
      %v2437 = vld [vmem:[%s750 + $0x9c] sm:$0xf]
      %v2438 = vld [vmem:[%s750 + $0xa0] sm:$0xf]
      %v2439 = vld [vmem:[%s750 + $0xa4] sm:$0x1]
      %v2440 = vld [vmem:[%s750 + $0xa8] sm:$0xf]
      %v2441 = vld [vmem:[%s750 + $0xac] sm:$0xf]
      %v2442 = vld [vmem:[%s750 + $0xb0] sm:$0x1]
      %v2443 = vld [vmem:[%s750 + $0xb4] sm:$0xf]
      %v2444 = vld [vmem:[%s750 + $0xb8] sm:$0xf]
      %v2445 = vld [vmem:[%s750 + $0xbc] sm:$0x1]
      %v2447 = vshrl.u32 %v2398, 16
      %v2449 = vrot.slane %v2447, 4
      %v2450 = vshll.u32 %v2398, 16
      %v2452 = vrot.slane %v2450, 5
      %v2453 = vor.u32 %v2449, %v2452
      %v2454 = vrot.slane %v2453, 4
      %v2456 = vshll.u32 %v2399, 16
      %v2458 = vrot.slane %v2456, 5
      %v2459 = vsel %vm1498, %v2454, %v2458
      %v2460 = vshrl.u32 %v2399, 16
      %v2462 = vrot.slane %v2460, 4
      %v2463 = vor.u32 %v2462, %v2458
      %v2464 = vrot.slane %v2463, 4
      %v2466 = vshll.u32 %v2400, 16
      %v2468 = vrot.slane %v2466, 5
      %v2469 = vsel %vm1498, %v2464, %v2468
      %v2471 = vshrl.u32 %v2401, 16
      %v2473 = vrot.slane %v2471, 4
      %v2474 = vshll.u32 %v2401, 16
      %v2476 = vrot.slane %v2474, 5
      %v2477 = vor.u32 %v2473, %v2476
      %v2478 = vrot.slane %v2477, 4
      %v2480 = vshll.u32 %v2402, 16
      %v2482 = vrot.slane %v2480, 5
      %v2483 = vsel %vm1498, %v2478, %v2482
      %v2484 = vshrl.u32 %v2402, 16
      %v2486 = vrot.slane %v2484, 4
      %v2487 = vor.u32 %v2486, %v2482
      %v2488 = vrot.slane %v2487, 4
      %v2490 = vshll.u32 %v2403, 16
      %v2492 = vrot.slane %v2490, 5
      %v2493 = vsel %vm1498, %v2488, %v2492
      %v2495 = vshrl.u32 %v2404, 16
      %v2497 = vrot.slane %v2495, 4
      %v2498 = vshll.u32 %v2404, 16
      %v2500 = vrot.slane %v2498, 5
      %v2501 = vor.u32 %v2497, %v2500
      %v2502 = vrot.slane %v2501, 4
      %v2504 = vshll.u32 %v2405, 16
      %v2506 = vrot.slane %v2504, 5
      %v2507 = vsel %vm1498, %v2502, %v2506
      %v2508 = vshrl.u32 %v2405, 16
      %v2510 = vrot.slane %v2508, 4
      %v2511 = vor.u32 %v2510, %v2506
      %v2512 = vrot.slane %v2511, 4
      %v2514 = vshll.u32 %v2406, 16
      %v2516 = vrot.slane %v2514, 5
      %v2517 = vsel %vm1498, %v2512, %v2516
      %v2519 = vshrl.u32 %v2407, 16
      %v2521 = vrot.slane %v2519, 4
      %v2522 = vshll.u32 %v2407, 16
      %v2524 = vrot.slane %v2522, 5
      %v2525 = vor.u32 %v2521, %v2524
      %v2526 = vrot.slane %v2525, 4
      %v2528 = vshll.u32 %v2408, 16
      %v2530 = vrot.slane %v2528, 5
      %v2531 = vsel %vm1498, %v2526, %v2530
      %v2532 = vshrl.u32 %v2408, 16
      %v2534 = vrot.slane %v2532, 4
      %v2535 = vor.u32 %v2534, %v2530
      %v2536 = vrot.slane %v2535, 4
      %v2538 = vshll.u32 %v2409, 16
      %v2540 = vrot.slane %v2538, 5
      %v2541 = vsel %vm1498, %v2536, %v2540
      %v2543 = vshrl.u32 %v2410, 16
      %v2545 = vrot.slane %v2543, 4
      %v2546 = vshll.u32 %v2410, 16
      %v2548 = vrot.slane %v2546, 5
      %v2549 = vor.u32 %v2545, %v2548
      %v2550 = vrot.slane %v2549, 4
      %v2552 = vshll.u32 %v2411, 16
      %v2554 = vrot.slane %v2552, 5
      %v2555 = vsel %vm1498, %v2550, %v2554
      %v2556 = vshrl.u32 %v2411, 16
      %v2558 = vrot.slane %v2556, 4
      %v2559 = vor.u32 %v2558, %v2554
      %v2560 = vrot.slane %v2559, 4
      %v2562 = vshll.u32 %v2412, 16
      %v2564 = vrot.slane %v2562, 5
      %v2565 = vsel %vm1498, %v2560, %v2564
      %v2567 = vshrl.u32 %v2413, 16
      %v2569 = vrot.slane %v2567, 4
      %v2570 = vshll.u32 %v2413, 16
      %v2572 = vrot.slane %v2570, 5
      %v2573 = vor.u32 %v2569, %v2572
      %v2574 = vrot.slane %v2573, 4
      %v2576 = vshll.u32 %v2414, 16
      %v2578 = vrot.slane %v2576, 5
      %v2579 = vsel %vm1498, %v2574, %v2578
      %v2580 = vshrl.u32 %v2414, 16
      %v2582 = vrot.slane %v2580, 4
      %v2583 = vor.u32 %v2582, %v2578
      %v2584 = vrot.slane %v2583, 4
      %v2586 = vshll.u32 %v2415, 16
      %v2588 = vrot.slane %v2586, 5
      %v2589 = vsel %vm1498, %v2584, %v2588
      %v2591 = vshrl.u32 %v2416, 16
      %v2593 = vrot.slane %v2591, 4
      %v2594 = vshll.u32 %v2416, 16
      %v2596 = vrot.slane %v2594, 5
      %v2597 = vor.u32 %v2593, %v2596
      %v2598 = vrot.slane %v2597, 4
      %v2600 = vshll.u32 %v2417, 16
      %v2602 = vrot.slane %v2600, 5
      %v2603 = vsel %vm1498, %v2598, %v2602
      %v2604 = vshrl.u32 %v2417, 16
      %v2606 = vrot.slane %v2604, 4
      %v2607 = vor.u32 %v2606, %v2602
      %v2608 = vrot.slane %v2607, 4
      %v2610 = vshll.u32 %v2418, 16
      %v2612 = vrot.slane %v2610, 5
      %v2613 = vsel %vm1498, %v2608, %v2612
      %v2615 = vshrl.u32 %v2419, 16
      %v2617 = vrot.slane %v2615, 4
      %v2618 = vshll.u32 %v2419, 16
      %v2620 = vrot.slane %v2618, 5
      %v2621 = vor.u32 %v2617, %v2620
      %v2622 = vrot.slane %v2621, 4
      %v2624 = vshll.u32 %v2420, 16
      %v2626 = vrot.slane %v2624, 5
      %v2627 = vsel %vm1498, %v2622, %v2626
      %v2628 = vshrl.u32 %v2420, 16
      %v2630 = vrot.slane %v2628, 4
      %v2631 = vor.u32 %v2630, %v2626
      %v2632 = vrot.slane %v2631, 4
      %v2634 = vshll.u32 %v2421, 16
      %v2636 = vrot.slane %v2634, 5
      %v2637 = vsel %vm1498, %v2632, %v2636
      %v2639 = vshrl.u32 %v2422, 16
      %v2641 = vrot.slane %v2639, 4
      %v2642 = vshll.u32 %v2422, 16
      %v2644 = vrot.slane %v2642, 5
      %v2645 = vor.u32 %v2641, %v2644
      %v2646 = vrot.slane %v2645, 4
      %v2648 = vshll.u32 %v2423, 16
      %v2650 = vrot.slane %v2648, 5
      %v2651 = vsel %vm1498, %v2646, %v2650
      %v2652 = vshrl.u32 %v2423, 16
      %v2654 = vrot.slane %v2652, 4
      %v2655 = vor.u32 %v2654, %v2650
      %v2656 = vrot.slane %v2655, 4
      %v2658 = vshll.u32 %v2424, 16
      %v2660 = vrot.slane %v2658, 5
      %v2661 = vsel %vm1498, %v2656, %v2660
      %v2663 = vshrl.u32 %v2425, 16
      %v2665 = vrot.slane %v2663, 4
      %v2666 = vshll.u32 %v2425, 16
      %v2668 = vrot.slane %v2666, 5
      %v2669 = vor.u32 %v2665, %v2668
      %v2670 = vrot.slane %v2669, 4
      %v2672 = vshll.u32 %v2426, 16
      %v2674 = vrot.slane %v2672, 5
      %v2675 = vsel %vm1498, %v2670, %v2674
      %v2676 = vshrl.u32 %v2426, 16
      %v2678 = vrot.slane %v2676, 4
      %v2679 = vor.u32 %v2678, %v2674
      %v2680 = vrot.slane %v2679, 4
      %v2682 = vshll.u32 %v2427, 16
      %v2684 = vrot.slane %v2682, 5
      %v2685 = vsel %vm1498, %v2680, %v2684
      %v2687 = vshrl.u32 %v2428, 16
      %v2689 = vrot.slane %v2687, 4
      %v2690 = vshll.u32 %v2428, 16
      %v2692 = vrot.slane %v2690, 5
      %v2693 = vor.u32 %v2689, %v2692
      %v2694 = vrot.slane %v2693, 4
      %v2696 = vshll.u32 %v2429, 16
      %v2698 = vrot.slane %v2696, 5
      %v2699 = vsel %vm1498, %v2694, %v2698
      %v2700 = vshrl.u32 %v2429, 16
      %v2702 = vrot.slane %v2700, 4
      %v2703 = vor.u32 %v2702, %v2698
      %v2704 = vrot.slane %v2703, 4
      %v2706 = vshll.u32 %v2430, 16
      %v2708 = vrot.slane %v2706, 5
      %v2709 = vsel %vm1498, %v2704, %v2708
      %v2711 = vshrl.u32 %v2431, 16
      %v2713 = vrot.slane %v2711, 4
      %v2714 = vshll.u32 %v2431, 16
      %v2716 = vrot.slane %v2714, 5
      %v2717 = vor.u32 %v2713, %v2716
      %v2718 = vrot.slane %v2717, 4
      %v2720 = vshll.u32 %v2432, 16
      %v2722 = vrot.slane %v2720, 5
      %v2723 = vsel %vm1498, %v2718, %v2722
      %v2724 = vshrl.u32 %v2432, 16
      %v2726 = vrot.slane %v2724, 4
      %v2727 = vor.u32 %v2726, %v2722
      %v2728 = vrot.slane %v2727, 4
      %v2730 = vshll.u32 %v2433, 16
      %v2732 = vrot.slane %v2730, 5
      %v2733 = vsel %vm1498, %v2728, %v2732
      %v2735 = vshrl.u32 %v2434, 16
      %v2737 = vrot.slane %v2735, 4
      %v2738 = vshll.u32 %v2434, 16
      %v2740 = vrot.slane %v2738, 5
      %v2741 = vor.u32 %v2737, %v2740
      %v2742 = vrot.slane %v2741, 4
      %v2744 = vshll.u32 %v2435, 16
      %v2746 = vrot.slane %v2744, 5
      %v2747 = vsel %vm1498, %v2742, %v2746
      %v2748 = vshrl.u32 %v2435, 16
      %v2750 = vrot.slane %v2748, 4
      %v2751 = vor.u32 %v2750, %v2746
      %v2752 = vrot.slane %v2751, 4
      %v2754 = vshll.u32 %v2436, 16
      %v2756 = vrot.slane %v2754, 5
      %v2757 = vsel %vm1498, %v2752, %v2756
      %v2759 = vshrl.u32 %v2437, 16
      %v2761 = vrot.slane %v2759, 4
      %v2762 = vshll.u32 %v2437, 16
      %v2764 = vrot.slane %v2762, 5
      %v2765 = vor.u32 %v2761, %v2764
      %v2766 = vrot.slane %v2765, 4
      %v2768 = vshll.u32 %v2438, 16
      %v2770 = vrot.slane %v2768, 5
      %v2771 = vsel %vm1498, %v2766, %v2770
      %v2772 = vshrl.u32 %v2438, 16
      %v2774 = vrot.slane %v2772, 4
      %v2775 = vor.u32 %v2774, %v2770
      %v2776 = vrot.slane %v2775, 4
      %v2778 = vshll.u32 %v2439, 16
      %v2780 = vrot.slane %v2778, 5
      %v2781 = vsel %vm1498, %v2776, %v2780
      %v2783 = vshrl.u32 %v2440, 16
      %v2785 = vrot.slane %v2783, 4
      %v2786 = vshll.u32 %v2440, 16
      %v2788 = vrot.slane %v2786, 5
      %v2789 = vor.u32 %v2785, %v2788
      %v2790 = vrot.slane %v2789, 4
      %v2792 = vshll.u32 %v2441, 16
      %v2794 = vrot.slane %v2792, 5
      %v2795 = vsel %vm1498, %v2790, %v2794
      %v2796 = vshrl.u32 %v2441, 16
      %v2798 = vrot.slane %v2796, 4
      %v2799 = vor.u32 %v2798, %v2794
      %v2800 = vrot.slane %v2799, 4
      %v2802 = vshll.u32 %v2442, 16
      %v2804 = vrot.slane %v2802, 5
      %v2805 = vsel %vm1498, %v2800, %v2804
      %v2807 = vshrl.u32 %v2443, 16
      %v2809 = vrot.slane %v2807, 4
      %v2810 = vshll.u32 %v2443, 16
      %v2812 = vrot.slane %v2810, 5
      %v2813 = vor.u32 %v2809, %v2812
      %v2814 = vrot.slane %v2813, 4
      %v2816 = vshll.u32 %v2444, 16
      %v2818 = vrot.slane %v2816, 5
      %v2819 = vsel %vm1498, %v2814, %v2818
      %v2820 = vshrl.u32 %v2444, 16
      %v2822 = vrot.slane %v2820, 4
      %v2823 = vor.u32 %v2822, %v2818
      %v2824 = vrot.slane %v2823, 4
      %v2826 = vshll.u32 %v2445, 16
      %v2828 = vrot.slane %v2826, 5
      %v2829 = vsel %vm1498, %v2824, %v2828
      %2862 = vst [vmem:[#allocation3 + $0x4] sm:$0xf] %v2459
      %2863 = vst [vmem:[#allocation3 + $0x10] sm:$0xf] %v2469
      %2864 = vst [vmem:[#allocation3 + $0x1c] sm:$0xf] %v2483
      %2865 = vst [vmem:[#allocation3 + $0x28] sm:$0xf] %v2493
      %2866 = vst [vmem:[#allocation3 + $0x34] sm:$0xf] %v2507
      %2867 = vst [vmem:[#allocation3 + $0x40] sm:$0xf] %v2517
      %2868 = vst [vmem:[#allocation3 + $0x4c] sm:$0xf] %v2531
      %2869 = vst [vmem:[#allocation3 + $0x58] sm:$0xf] %v2541
      %2870 = vst [vmem:[#allocation3 + $0x64] sm:$0xf] %v2555
      %2871 = vst [vmem:[#allocation3 + $0x70] sm:$0xf] %v2565
      %2872 = vst [vmem:[#allocation3 + $0x7c] sm:$0xf] %v2579
      %2873 = vst [vmem:[#allocation3 + $0x88] sm:$0xf] %v2589
      %2874 = vst [vmem:[#allocation3 + $0x94] sm:$0xf] %v2603
      %2875 = vst [vmem:[#allocation3 + $0xa0] sm:$0xf] %v2613
      %2876 = vst [vmem:[#allocation3 + $0xac] sm:$0xf] %v2627
      %2877 = vst [vmem:[#allocation3 + $0xb8] sm:$0xf] %v2637
      %2878 = vst [vmem:[#allocation3 + $0xc4] sm:$0xf] %v2651
      %2879 = vst [vmem:[#allocation3 + $0xd0] sm:$0xf] %v2661
      %2880 = vst [vmem:[#allocation3 + $0xdc] sm:$0xf] %v2675
      %2881 = vst [vmem:[#allocation3 + $0xe8] sm:$0xf] %v2685
      %2882 = vst [vmem:[#allocation3 + $0xf4] sm:$0xf] %v2699
      %2883 = vst [vmem:[#allocation3 + $0x100] sm:$0xf] %v2709
      %2884 = vst [vmem:[#allocation3 + $0x10c] sm:$0xf] %v2723
      %2885 = vst [vmem:[#allocation3 + $0x118] sm:$0xf] %v2733
      %2886 = vst [vmem:[#allocation3 + $0x124] sm:$0xf] %v2747
      %2887 = vst [vmem:[#allocation3 + $0x130] sm:$0xf] %v2757
      %2888 = vst [vmem:[#allocation3 + $0x13c] sm:$0xf] %v2771
      %2889 = vst [vmem:[#allocation3 + $0x148] sm:$0xf] %v2781
      %2890 = vst [vmem:[#allocation3 + $0x154] sm:$0xf] %v2795
      %2891 = vst [vmem:[#allocation3 + $0x160] sm:$0xf] %v2805
      %2892 = vst [vmem:[#allocation3 + $0x16c] sm:$0xf] %v2819
      %2893 = vst [vmem:[#allocation3 + $0x178] sm:$0xf] %v2829
      %v2894 = vld [vmem:[%s750] sm:$0xe]
      %v2895 = vld [vmem:[%s750 + $0x4] sm:$0xf]
      %v2896 = vld [vmem:[%s750 + $0x8] sm:$0x1]
      %v2897 = vld [vmem:[%s750 + $0xc] sm:$0xe]
      %v2898 = vld [vmem:[%s750 + $0x10] sm:$0xf]
      %v2899 = vld [vmem:[%s750 + $0x14] sm:$0x1]
      %v2900 = vld [vmem:[%s750 + $0x18] sm:$0xe]
      %v2901 = vld [vmem:[%s750 + $0x1c] sm:$0xf]
      %v2902 = vld [vmem:[%s750 + $0x20] sm:$0x1]
      %v2903 = vld [vmem:[%s750 + $0x24] sm:$0xe]
      %v2904 = vld [vmem:[%s750 + $0x28] sm:$0xf]
      %v2905 = vld [vmem:[%s750 + $0x2c] sm:$0x1]
      %v2906 = vld [vmem:[%s750 + $0x30] sm:$0xe]
      %v2907 = vld [vmem:[%s750 + $0x34] sm:$0xf]
      %v2908 = vld [vmem:[%s750 + $0x38] sm:$0x1]
      %v2909 = vld [vmem:[%s750 + $0x3c] sm:$0xe]
      %v2910 = vld [vmem:[%s750 + $0x40] sm:$0xf]
      %v2911 = vld [vmem:[%s750 + $0x44] sm:$0x1]
      %v2912 = vld [vmem:[%s750 + $0x48] sm:$0xe]
      %v2913 = vld [vmem:[%s750 + $0x4c] sm:$0xf]
      %v2914 = vld [vmem:[%s750 + $0x50] sm:$0x1]
      %v2915 = vld [vmem:[%s750 + $0x54] sm:$0xe]
      %v2916 = vld [vmem:[%s750 + $0x58] sm:$0xf]
      %v2917 = vld [vmem:[%s750 + $0x5c] sm:$0x1]
      %v2918 = vld [vmem:[%s750 + $0x60] sm:$0xe]
      %v2919 = vld [vmem:[%s750 + $0x64] sm:$0xf]
      %v2920 = vld [vmem:[%s750 + $0x68] sm:$0x1]
      %v2921 = vld [vmem:[%s750 + $0x6c] sm:$0xe]
      %v2922 = vld [vmem:[%s750 + $0x70] sm:$0xf]
      %v2923 = vld [vmem:[%s750 + $0x74] sm:$0x1]
      %v2924 = vld [vmem:[%s750 + $0x78] sm:$0xe]
      %v2925 = vld [vmem:[%s750 + $0x7c] sm:$0xf]
      %v2926 = vld [vmem:[%s750 + $0x80] sm:$0x1]
      %v2927 = vld [vmem:[%s750 + $0x84] sm:$0xe]
      %v2928 = vld [vmem:[%s750 + $0x88] sm:$0xf]
      %v2929 = vld [vmem:[%s750 + $0x8c] sm:$0x1]
      %v2930 = vld [vmem:[%s750 + $0x90] sm:$0xe]
      %v2931 = vld [vmem:[%s750 + $0x94] sm:$0xf]
      %v2932 = vld [vmem:[%s750 + $0x98] sm:$0x1]
      %v2933 = vld [vmem:[%s750 + $0x9c] sm:$0xe]
      %v2934 = vld [vmem:[%s750 + $0xa0] sm:$0xf]
      %v2935 = vld [vmem:[%s750 + $0xa4] sm:$0x1]
      %v2936 = vld [vmem:[%s750 + $0xa8] sm:$0xe]
      %v2937 = vld [vmem:[%s750 + $0xac] sm:$0xf]
      %v2938 = vld [vmem:[%s750 + $0xb0] sm:$0x1]
      %v2939 = vld [vmem:[%s750 + $0xb4] sm:$0xe]
      %v2940 = vld [vmem:[%s750 + $0xb8] sm:$0xf]
      %v2941 = vld [vmem:[%s750 + $0xbc] sm:$0x1]
      %v2990 = vrot.slane %v2894, 5
      %v2991 = vrot.slane %v2990, 4
      %v2992 = vrot.slane %v2895, 5
      %v2993 = vsel %vm2045, %v2991, %v2992
      %v2994 = vrot.slane %v2992, 4
      %v2995 = vrot.slane %v2896, 5
      %v2996 = vsel %vm2045, %v2994, %v2995
      %v2997 = vrot.slane %v2897, 5
      %v2998 = vrot.slane %v2997, 4
      %v2999 = vrot.slane %v2898, 5
      %v3000 = vsel %vm2045, %v2998, %v2999
      %v3001 = vrot.slane %v2999, 4
      %v3002 = vrot.slane %v2899, 5
      %v3003 = vsel %vm2045, %v3001, %v3002
      %v3004 = vrot.slane %v2900, 5
      %v3005 = vrot.slane %v3004, 4
      %v3006 = vrot.slane %v2901, 5
      %v3007 = vsel %vm2045, %v3005, %v3006
      %v3008 = vrot.slane %v3006, 4
      %v3009 = vrot.slane %v2902, 5
      %v3010 = vsel %vm2045, %v3008, %v3009
      %v3011 = vrot.slane %v2903, 5
      %v3012 = vrot.slane %v3011, 4
      %v3013 = vrot.slane %v2904, 5
      %v3014 = vsel %vm2045, %v3012, %v3013
      %v3015 = vrot.slane %v3013, 4
      %v3016 = vrot.slane %v2905, 5
      %v3017 = vsel %vm2045, %v3015, %v3016
      %v3018 = vrot.slane %v2906, 5
      %v3019 = vrot.slane %v3018, 4
      %v3020 = vrot.slane %v2907, 5
      %v3021 = vsel %vm2045, %v3019, %v3020
      %v3022 = vrot.slane %v3020, 4
      %v3023 = vrot.slane %v2908, 5
      %v3024 = vsel %vm2045, %v3022, %v3023
      %v3025 = vrot.slane %v2909, 5
      %v3026 = vrot.slane %v3025, 4
      %v3027 = vrot.slane %v2910, 5
      %v3028 = vsel %vm2045, %v3026, %v3027
      %v3029 = vrot.slane %v3027, 4
      %v3030 = vrot.slane %v2911, 5
      %v3031 = vsel %vm2045, %v3029, %v3030
      %v3032 = vrot.slane %v2912, 5
      %v3033 = vrot.slane %v3032, 4
      %v3034 = vrot.slane %v2913, 5
      %v3035 = vsel %vm2045, %v3033, %v3034
      %v3036 = vrot.slane %v3034, 4
      %v3037 = vrot.slane %v2914, 5
      %v3038 = vsel %vm2045, %v3036, %v3037
      %v3039 = vrot.slane %v2915, 5
      %v3040 = vrot.slane %v3039, 4
      %v3041 = vrot.slane %v2916, 5
      %v3042 = vsel %vm2045, %v3040, %v3041
      %v3043 = vrot.slane %v3041, 4
      %v3044 = vrot.slane %v2917, 5
      %v3045 = vsel %vm2045, %v3043, %v3044
      %v3046 = vrot.slane %v2918, 5
      %v3047 = vrot.slane %v3046, 4
      %v3048 = vrot.slane %v2919, 5
      %v3049 = vsel %vm2045, %v3047, %v3048
      %v3050 = vrot.slane %v3048, 4
      %v3051 = vrot.slane %v2920, 5
      %v3052 = vsel %vm2045, %v3050, %v3051
      %v3053 = vrot.slane %v2921, 5
      %v3054 = vrot.slane %v3053, 4
      %v3055 = vrot.slane %v2922, 5
      %v3056 = vsel %vm2045, %v3054, %v3055
      %v3057 = vrot.slane %v3055, 4
      %v3058 = vrot.slane %v2923, 5
      %v3059 = vsel %vm2045, %v3057, %v3058
      %v3060 = vrot.slane %v2924, 5
      %v3061 = vrot.slane %v3060, 4
      %v3062 = vrot.slane %v2925, 5
      %v3063 = vsel %vm2045, %v3061, %v3062
      %v3064 = vrot.slane %v3062, 4
      %v3065 = vrot.slane %v2926, 5
      %v3066 = vsel %vm2045, %v3064, %v3065
      %v3067 = vrot.slane %v2927, 5
      %v3068 = vrot.slane %v3067, 4
      %v3069 = vrot.slane %v2928, 5
      %v3070 = vsel %vm2045, %v3068, %v3069
      %v3071 = vrot.slane %v3069, 4
      %v3072 = vrot.slane %v2929, 5
      %v3073 = vsel %vm2045, %v3071, %v3072
      %v3074 = vrot.slane %v2930, 5
      %v3075 = vrot.slane %v3074, 4
      %v3076 = vrot.slane %v2931, 5
      %v3077 = vsel %vm2045, %v3075, %v3076
      %v3078 = vrot.slane %v3076, 4
      %v3079 = vrot.slane %v2932, 5
      %v3080 = vsel %vm2045, %v3078, %v3079
      %v3081 = vrot.slane %v2933, 5
      %v3082 = vrot.slane %v3081, 4
      %v3083 = vrot.slane %v2934, 5
      %v3084 = vsel %vm2045, %v3082, %v3083
      %v3085 = vrot.slane %v3083, 4
      %v3086 = vrot.slane %v2935, 5
      %v3087 = vsel %vm2045, %v3085, %v3086
      %v3088 = vrot.slane %v2936, 5
      %v3089 = vrot.slane %v3088, 4
      %v3090 = vrot.slane %v2937, 5
      %v3091 = vsel %vm2045, %v3089, %v3090
      %v3092 = vrot.slane %v3090, 4
      %v3093 = vrot.slane %v2938, 5
      %v3094 = vsel %vm2045, %v3092, %v3093
      %v3095 = vrot.slane %v2939, 5
      %v3096 = vrot.slane %v3095, 4
      %v3097 = vrot.slane %v2940, 5
      %v3098 = vsel %vm2045, %v3096, %v3097
      %v3099 = vrot.slane %v3097, 4
      %v3100 = vrot.slane %v2941, 5
      %v3101 = vsel %vm2045, %v3099, %v3100
      %3134 = vst [vmem:[#allocation3 + $0x8] sm:$0xf] %v2993
      %3135 = vst [vmem:[#allocation3 + $0x14] sm:$0xf] %v2996
      %3136 = vst [vmem:[#allocation3 + $0x20] sm:$0xf] %v3000
      %3137 = vst [vmem:[#allocation3 + $0x2c] sm:$0xf] %v3003
      %3138 = vst [vmem:[#allocation3 + $0x38] sm:$0xf] %v3007
      %3139 = vst [vmem:[#allocation3 + $0x44] sm:$0xf] %v3010
      %3140 = vst [vmem:[#allocation3 + $0x50] sm:$0xf] %v3014
      %3141 = vst [vmem:[#allocation3 + $0x5c] sm:$0xf] %v3017
      %3142 = vst [vmem:[#allocation3 + $0x68] sm:$0xf] %v3021
      %3143 = vst [vmem:[#allocation3 + $0x74] sm:$0xf] %v3024
      %3144 = vst [vmem:[#allocation3 + $0x80] sm:$0xf] %v3028
      %3145 = vst [vmem:[#allocation3 + $0x8c] sm:$0xf] %v3031
      %3146 = vst [vmem:[#allocation3 + $0x98] sm:$0xf] %v3035
      %3147 = vst [vmem:[#allocation3 + $0xa4] sm:$0xf] %v3038
      %3148 = vst [vmem:[#allocation3 + $0xb0] sm:$0xf] %v3042
      %3149 = vst [vmem:[#allocation3 + $0xbc] sm:$0xf] %v3045
      %3150 = vst [vmem:[#allocation3 + $0xc8] sm:$0xf] %v3049
      %3151 = vst [vmem:[#allocation3 + $0xd4] sm:$0xf] %v3052
      %3152 = vst [vmem:[#allocation3 + $0xe0] sm:$0xf] %v3056
      %3153 = vst [vmem:[#allocation3 + $0xec] sm:$0xf] %v3059
      %3154 = vst [vmem:[#allocation3 + $0xf8] sm:$0xf] %v3063
      %3155 = vst [vmem:[#allocation3 + $0x104] sm:$0xf] %v3066
      %3156 = vst [vmem:[#allocation3 + $0x110] sm:$0xf] %v3070
      %3157 = vst [vmem:[#allocation3 + $0x11c] sm:$0xf] %v3073
      %3158 = vst [vmem:[#allocation3 + $0x128] sm:$0xf] %v3077
      %3159 = vst [vmem:[#allocation3 + $0x134] sm:$0xf] %v3080
      %3160 = vst [vmem:[#allocation3 + $0x140] sm:$0xf] %v3084
      %3161 = vst [vmem:[#allocation3 + $0x14c] sm:$0xf] %v3087
      %3162 = vst [vmem:[#allocation3 + $0x158] sm:$0xf] %v3091
      %3163 = vst [vmem:[#allocation3 + $0x164] sm:$0xf] %v3094
      %3164 = vst [vmem:[#allocation3 + $0x170] sm:$0xf] %v3098
      %3165 = vst [vmem:[#allocation3 + $0x17c] sm:$0xf] %v3101
      %v3166 = vld [vmem:[#allocation3] sm:$0xff]
      %v3167 = vld [vmem:[#allocation3 + $0x8] sm:$0xf]
      %v3168 = vld [vmem:[#allocation3 + $0xc] sm:$0xff]
      %v3169 = vld [vmem:[#allocation3 + $0x14] sm:$0xf]
      %v3170 = vld [vmem:[#allocation3 + $0x18] sm:$0xff]
      %v3171 = vld [vmem:[#allocation3 + $0x20] sm:$0xf]
      %v3172 = vld [vmem:[#allocation3 + $0x24] sm:$0xff]
      %v3173 = vld [vmem:[#allocation3 + $0x2c] sm:$0xf]
      %v3174 = vld [vmem:[#allocation3 + $0x30] sm:$0xff]
      %v3175 = vld [vmem:[#allocation3 + $0x38] sm:$0xf]
      %v3176 = vld [vmem:[#allocation3 + $0x3c] sm:$0xff]
      %v3177 = vld [vmem:[#allocation3 + $0x44] sm:$0xf]
      %v3178 = vld [vmem:[#allocation3 + $0x48] sm:$0xff]
      %v3179 = vld [vmem:[#allocation3 + $0x50] sm:$0xf]
      %v3180 = vld [vmem:[#allocation3 + $0x54] sm:$0xff]
      %v3181 = vld [vmem:[#allocation3 + $0x5c] sm:$0xf]
      %v3182 = vld [vmem:[#allocation3 + $0x60] sm:$0xff]
      %v3183 = vld [vmem:[#allocation3 + $0x68] sm:$0xf]
      %v3184 = vld [vmem:[#allocation3 + $0x6c] sm:$0xff]
      %v3185 = vld [vmem:[#allocation3 + $0x74] sm:$0xf]
      %v3186 = vld [vmem:[#allocation3 + $0x78] sm:$0xff]
      %v3187 = vld [vmem:[#allocation3 + $0x80] sm:$0xf]
      %v3188 = vld [vmem:[#allocation3 + $0x84] sm:$0xff]
      %v3189 = vld [vmem:[#allocation3 + $0x8c] sm:$0xf]
      %v3190 = vld [vmem:[#allocation3 + $0x90] sm:$0xff]
      %v3191 = vld [vmem:[#allocation3 + $0x98] sm:$0xf]
      %v3192 = vld [vmem:[#allocation3 + $0x9c] sm:$0xff]
      %v3193 = vld [vmem:[#allocation3 + $0xa4] sm:$0xf]
      %v3194 = vld [vmem:[#allocation3 + $0xa8] sm:$0xff]
      %v3195 = vld [vmem:[#allocation3 + $0xb0] sm:$0xf]
      %v3196 = vld [vmem:[#allocation3 + $0xb4] sm:$0xff]
      %v3197 = vld [vmem:[#allocation3 + $0xbc] sm:$0xf]
      %v3198 = vld [vmem:[#allocation3 + $0xc0] sm:$0xff]
      %v3199 = vld [vmem:[#allocation3 + $0xc8] sm:$0xf]
      %v3200 = vld [vmem:[#allocation3 + $0xcc] sm:$0xff]
      %v3201 = vld [vmem:[#allocation3 + $0xd4] sm:$0xf]
      %v3202 = vld [vmem:[#allocation3 + $0xd8] sm:$0xff]
      %v3203 = vld [vmem:[#allocation3 + $0xe0] sm:$0xf]
      %v3204 = vld [vmem:[#allocation3 + $0xe4] sm:$0xff]
      %v3205 = vld [vmem:[#allocation3 + $0xec] sm:$0xf]
      %v3206 = vld [vmem:[#allocation3 + $0xf0] sm:$0xff]
      %v3207 = vld [vmem:[#allocation3 + $0xf8] sm:$0xf]
      %v3208 = vld [vmem:[#allocation3 + $0xfc] sm:$0xff]
      %v3209 = vld [vmem:[#allocation3 + $0x104] sm:$0xf]
      %v3210 = vld [vmem:[#allocation3 + $0x108] sm:$0xff]
      %v3211 = vld [vmem:[#allocation3 + $0x110] sm:$0xf]
      %v3212 = vld [vmem:[#allocation3 + $0x114] sm:$0xff]
      %v3213 = vld [vmem:[#allocation3 + $0x11c] sm:$0xf]
      %v3214 = vld [vmem:[#allocation3 + $0x120] sm:$0xff]
      %v3215 = vld [vmem:[#allocation3 + $0x128] sm:$0xf]
      %v3216 = vld [vmem:[#allocation3 + $0x12c] sm:$0xff]
      %v3217 = vld [vmem:[#allocation3 + $0x134] sm:$0xf]
      %v3218 = vld [vmem:[#allocation3 + $0x138] sm:$0xff]
      %v3219 = vld [vmem:[#allocation3 + $0x140] sm:$0xf]
      %v3220 = vld [vmem:[#allocation3 + $0x144] sm:$0xff]
      %v3221 = vld [vmem:[#allocation3 + $0x14c] sm:$0xf]
      %v3222 = vld [vmem:[#allocation3 + $0x150] sm:$0xff]
      %v3223 = vld [vmem:[#allocation3 + $0x158] sm:$0xf]
      %v3224 = vld [vmem:[#allocation3 + $0x15c] sm:$0xff]
      %v3225 = vld [vmem:[#allocation3 + $0x164] sm:$0xf]
      %v3226 = vld [vmem:[#allocation3 + $0x168] sm:$0xff]
      %v3227 = vld [vmem:[#allocation3 + $0x170] sm:$0xf]
      %v3228 = vld [vmem:[#allocation3 + $0x174] sm:$0xff]
      %v3229 = vld [vmem:[#allocation3 + $0x17c] sm:$0xf]
      %v3230 = vld [vmem:[%s4 + $0xc0] sm:$0xf]
      %v3231 = vld [vmem:[%s4 + $0xc4] sm:$0xf]
      %v3232 = vld [vmem:[%s4 + $0xc8] sm:$0xf]
      %v3233 = vld [vmem:[%s4 + $0xcc] sm:$0xf]
      %v3234 = vld [vmem:[%s4 + $0xd0] sm:$0xf]
      %v3235 = vld [vmem:[%s4 + $0xd4] sm:$0xf]
      %v3236 = vld [vmem:[%s4 + $0xd8] sm:$0xf]
      %v3237 = vld [vmem:[%s4 + $0xdc] sm:$0xf]
      %v3238 = vld [vmem:[%s4 + $0xe0] sm:$0xf]
      %v3239 = vld [vmem:[%s4 + $0xe4] sm:$0xf]
      %v3240 = vld [vmem:[%s4 + $0xe8] sm:$0xf]
      %v3241 = vld [vmem:[%s4 + $0xec] sm:$0xf]
      %v3242 = vld [vmem:[%s4 + $0xf0] sm:$0xf]
      %v3243 = vld [vmem:[%s4 + $0xf4] sm:$0xf]
      %v3244 = vld [vmem:[%s4 + $0xf8] sm:$0xf]
      %v3245 = vld [vmem:[%s4 + $0xfc] sm:$0xf]
      %v3246 = vld [vmem:[%s4 + $0x100] sm:$0xf]
      %v3247 = vld [vmem:[%s4 + $0x104] sm:$0xf]
      %v3248 = vld [vmem:[%s4 + $0x108] sm:$0xf]
      %v3249 = vld [vmem:[%s4 + $0x10c] sm:$0xf]
      %v3250 = vld [vmem:[%s4 + $0x110] sm:$0xf]
      %v3251 = vld [vmem:[%s4 + $0x114] sm:$0xf]
      %v3252 = vld [vmem:[%s4 + $0x118] sm:$0xf]
      %v3253 = vld [vmem:[%s4 + $0x11c] sm:$0xf]
      %v3254 = vld [vmem:[%s4 + $0x120] sm:$0xf]
      %v3255 = vld [vmem:[%s4 + $0x124] sm:$0xf]
      %v3256 = vld [vmem:[%s4 + $0x128] sm:$0xf]
      %v3257 = vld [vmem:[%s4 + $0x12c] sm:$0xf]
      %v3258 = vld [vmem:[%s4 + $0x130] sm:$0xf]
      %v3259 = vld [vmem:[%s4 + $0x134] sm:$0xf]
      %v3260 = vld [vmem:[%s4 + $0x138] sm:$0xf]
      %v3261 = vld [vmem:[%s4 + $0x13c] sm:$0xf]
      %v3262 = vld [vmem:[%s4 + $0x140] sm:$0xf]
      %v3263 = vld [vmem:[%s4 + $0x144] sm:$0xf]
      %v3264 = vld [vmem:[%s4 + $0x148] sm:$0xf]
      %v3265 = vld [vmem:[%s4 + $0x14c] sm:$0xf]
      %v3266 = vld [vmem:[%s4 + $0x150] sm:$0xf]
      %v3267 = vld [vmem:[%s4 + $0x154] sm:$0xf]
      %v3268 = vld [vmem:[%s4 + $0x158] sm:$0xf]
      %v3269 = vld [vmem:[%s4 + $0x15c] sm:$0xf]
      %v3270 = vld [vmem:[%s4 + $0x160] sm:$0xf]
      %v3271 = vld [vmem:[%s4 + $0x164] sm:$0xf]
      %v3272 = vld [vmem:[%s4 + $0x168] sm:$0xf]
      %v3273 = vld [vmem:[%s4 + $0x16c] sm:$0xf]
      %v3274 = vld [vmem:[%s4 + $0x170] sm:$0xf]
      %v3275 = vld [vmem:[%s4 + $0x174] sm:$0xf]
      %v3276 = vld [vmem:[%s4 + $0x178] sm:$0xf]
      %v3277 = vld [vmem:[%s4 + $0x17c] sm:$0xf]
      %v3342 = vunpack.c.l.b16 %v3166
      %v3343 = vunpack.c.h.b16 %v3166
      %v3344 = vunpack.c.l.b16 %v3167
      %v3345 = vunpack.c.l.b16 %v3168
      %v3346 = vunpack.c.h.b16 %v3168
      %v3347 = vunpack.c.l.b16 %v3169
      %v3348 = vunpack.c.l.b16 %v3170
      %v3349 = vunpack.c.h.b16 %v3170
      %v3350 = vunpack.c.l.b16 %v3171
      %v3351 = vunpack.c.l.b16 %v3172
      %v3352 = vunpack.c.h.b16 %v3172
      %v3353 = vunpack.c.l.b16 %v3173
      %v3354 = vunpack.c.l.b16 %v3174
      %v3355 = vunpack.c.h.b16 %v3174
      %v3356 = vunpack.c.l.b16 %v3175
      %v3357 = vunpack.c.l.b16 %v3176
      %v3358 = vunpack.c.h.b16 %v3176
      %v3359 = vunpack.c.l.b16 %v3177
      %v3360 = vunpack.c.l.b16 %v3178
      %v3361 = vunpack.c.h.b16 %v3178
      %v3362 = vunpack.c.l.b16 %v3179
      %v3363 = vunpack.c.l.b16 %v3180
      %v3364 = vunpack.c.h.b16 %v3180
      %v3365 = vunpack.c.l.b16 %v3181
      %v3366 = vunpack.c.l.b16 %v3182
      %v3367 = vunpack.c.h.b16 %v3182
      %v3368 = vunpack.c.l.b16 %v3183
      %v3369 = vunpack.c.l.b16 %v3184
      %v3370 = vunpack.c.h.b16 %v3184
      %v3371 = vunpack.c.l.b16 %v3185
      %v3372 = vunpack.c.l.b16 %v3186
      %v3373 = vunpack.c.h.b16 %v3186
      %v3374 = vunpack.c.l.b16 %v3187
      %v3375 = vunpack.c.l.b16 %v3188
      %v3376 = vunpack.c.h.b16 %v3188
      %v3377 = vunpack.c.l.b16 %v3189
      %v3378 = vunpack.c.l.b16 %v3190
      %v3379 = vunpack.c.h.b16 %v3190
      %v3380 = vunpack.c.l.b16 %v3191
      %v3381 = vunpack.c.l.b16 %v3192
      %v3382 = vunpack.c.h.b16 %v3192
      %v3383 = vunpack.c.l.b16 %v3193
      %v3384 = vunpack.c.l.b16 %v3194
      %v3385 = vunpack.c.h.b16 %v3194
      %v3386 = vunpack.c.l.b16 %v3195
      %v3387 = vunpack.c.l.b16 %v3196
      %v3388 = vunpack.c.h.b16 %v3196
      %v3389 = vunpack.c.l.b16 %v3197
      %v3390 = vunpack.c.l.b16 %v3198
      %v3391 = vunpack.c.h.b16 %v3198
      %v3392 = vunpack.c.l.b16 %v3199
      %v3393 = vunpack.c.l.b16 %v3200
      %v3394 = vunpack.c.h.b16 %v3200
      %v3395 = vunpack.c.l.b16 %v3201
      %v3396 = vunpack.c.l.b16 %v3202
      %v3397 = vunpack.c.h.b16 %v3202
      %v3398 = vunpack.c.l.b16 %v3203
      %v3399 = vunpack.c.l.b16 %v3204
      %v3400 = vunpack.c.h.b16 %v3204
      %v3401 = vunpack.c.l.b16 %v3205
      %v3402 = vunpack.c.l.b16 %v3206
      %v3403 = vunpack.c.h.b16 %v3206
      %v3404 = vunpack.c.l.b16 %v3207
      %v3405 = vunpack.c.l.b16 %v3208
      %v3406 = vunpack.c.h.b16 %v3208
      %v3407 = vunpack.c.l.b16 %v3209
      %v3408 = vunpack.c.l.b16 %v3210
      %v3409 = vunpack.c.h.b16 %v3210
      %v3410 = vunpack.c.l.b16 %v3211
      %v3411 = vunpack.c.l.b16 %v3212
      %v3412 = vunpack.c.h.b16 %v3212
      %v3413 = vunpack.c.l.b16 %v3213
      %v3414 = vunpack.c.l.b16 %v3214
      %v3415 = vunpack.c.h.b16 %v3214
      %v3416 = vunpack.c.l.b16 %v3215
      %v3417 = vunpack.c.l.b16 %v3216
      %v3418 = vunpack.c.h.b16 %v3216
      %v3419 = vunpack.c.l.b16 %v3217
      %v3420 = vunpack.c.l.b16 %v3218
      %v3421 = vunpack.c.h.b16 %v3218
      %v3422 = vunpack.c.l.b16 %v3219
      %v3423 = vunpack.c.l.b16 %v3220
      %v3424 = vunpack.c.h.b16 %v3220
      %v3425 = vunpack.c.l.b16 %v3221
      %v3426 = vunpack.c.l.b16 %v3222
      %v3427 = vunpack.c.h.b16 %v3222
      %v3428 = vunpack.c.l.b16 %v3223
      %v3429 = vunpack.c.l.b16 %v3224
      %v3430 = vunpack.c.h.b16 %v3224
      %v3431 = vunpack.c.l.b16 %v3225
      %v3432 = vunpack.c.l.b16 %v3226
      %v3433 = vunpack.c.h.b16 %v3226
      %v3434 = vunpack.c.l.b16 %v3227
      %v3435 = vunpack.c.l.b16 %v3228
      %v3436 = vunpack.c.h.b16 %v3228
      %v3437 = vunpack.c.l.b16 %v3229
      %v3438 = vpack.c.b16 %v3345, %v3342
      %v3439 = vpack.c.b16 %v3346, %v3343
      %v3440 = vpack.c.b16 %v3347, %v3344
      %v3441 = vpack.c.b16 %v3351, %v3348
      %v3442 = vpack.c.b16 %v3352, %v3349
      %v3443 = vpack.c.b16 %v3353, %v3350
      %v3444 = vpack.c.b16 %v3357, %v3354
      %v3445 = vpack.c.b16 %v3358, %v3355
      %v3446 = vpack.c.b16 %v3359, %v3356
      %v3447 = vpack.c.b16 %v3363, %v3360
      %v3448 = vpack.c.b16 %v3364, %v3361
      %v3449 = vpack.c.b16 %v3365, %v3362
      %v3450 = vpack.c.b16 %v3369, %v3366
      %v3451 = vpack.c.b16 %v3370, %v3367
      %v3452 = vpack.c.b16 %v3371, %v3368
      %v3453 = vpack.c.b16 %v3375, %v3372
      %v3454 = vpack.c.b16 %v3376, %v3373
      %v3455 = vpack.c.b16 %v3377, %v3374
      %v3456 = vpack.c.b16 %v3381, %v3378
      %v3457 = vpack.c.b16 %v3382, %v3379
      %v3458 = vpack.c.b16 %v3383, %v3380
      %v3459 = vpack.c.b16 %v3387, %v3384
      %v3460 = vpack.c.b16 %v3388, %v3385
      %v3461 = vpack.c.b16 %v3389, %v3386
      %v3462 = vpack.c.b16 %v3393, %v3390
      %v3463 = vpack.c.b16 %v3394, %v3391
      %v3464 = vpack.c.b16 %v3395, %v3392
      %v3465 = vpack.c.b16 %v3399, %v3396
      %v3466 = vpack.c.b16 %v3400, %v3397
      %v3467 = vpack.c.b16 %v3401, %v3398
      %v3468 = vpack.c.b16 %v3405, %v3402
      %v3469 = vpack.c.b16 %v3406, %v3403
      %v3470 = vpack.c.b16 %v3407, %v3404
      %v3471 = vpack.c.b16 %v3411, %v3408
      %v3472 = vpack.c.b16 %v3412, %v3409
      %v3473 = vpack.c.b16 %v3413, %v3410
      %v3474 = vpack.c.b16 %v3417, %v3414
      %v3475 = vpack.c.b16 %v3418, %v3415
      %v3476 = vpack.c.b16 %v3419, %v3416
      %v3477 = vpack.c.b16 %v3423, %v3420
      %v3478 = vpack.c.b16 %v3424, %v3421
      %v3479 = vpack.c.b16 %v3425, %v3422
      %v3480 = vpack.c.b16 %v3429, %v3426
      %v3481 = vpack.c.b16 %v3430, %v3427
      %v3482 = vpack.c.b16 %v3431, %v3428
      %v3483 = vpack.c.b16 %v3435, %v3432
      %v3484 = vpack.c.b16 %v3436, %v3433
      %v3485 = vpack.c.b16 %v3437, %v3434
      %v3582 = vunpack.c.l.b16 %v3230
      %v3583 = vunpack.c.l.b16 %v3231
      %v3584 = vunpack.c.l.b16 %v3232
      %v3585 = vunpack.c.l.b16 %v3233
      %v3586 = vunpack.c.l.b16 %v3234
      %v3587 = vunpack.c.l.b16 %v3235
      %v3588 = vunpack.c.l.b16 %v3236
      %v3589 = vunpack.c.l.b16 %v3237
      %v3590 = vunpack.c.l.b16 %v3238
      %v3591 = vunpack.c.l.b16 %v3239
      %v3592 = vunpack.c.l.b16 %v3240
      %v3593 = vunpack.c.l.b16 %v3241
      %v3594 = vunpack.c.l.b16 %v3242
      %v3595 = vunpack.c.l.b16 %v3243
      %v3596 = vunpack.c.l.b16 %v3244
      %v3597 = vunpack.c.l.b16 %v3245
      %v3598 = vunpack.c.l.b16 %v3246
      %v3599 = vunpack.c.l.b16 %v3247
      %v3600 = vunpack.c.l.b16 %v3248
      %v3601 = vunpack.c.l.b16 %v3249
      %v3602 = vunpack.c.l.b16 %v3250
      %v3603 = vunpack.c.l.b16 %v3251
      %v3604 = vunpack.c.l.b16 %v3252
      %v3605 = vunpack.c.l.b16 %v3253
      %v3606 = vunpack.c.l.b16 %v3254
      %v3607 = vunpack.c.l.b16 %v3255
      %v3608 = vunpack.c.l.b16 %v3256
      %v3609 = vunpack.c.l.b16 %v3257
      %v3610 = vunpack.c.l.b16 %v3258
      %v3611 = vunpack.c.l.b16 %v3259
      %v3612 = vunpack.c.l.b16 %v3260
      %v3613 = vunpack.c.l.b16 %v3261
      %v3614 = vunpack.c.l.b16 %v3262
      %v3615 = vunpack.c.l.b16 %v3263
      %v3616 = vunpack.c.l.b16 %v3264
      %v3617 = vunpack.c.l.b16 %v3265
      %v3618 = vunpack.c.l.b16 %v3266
      %v3619 = vunpack.c.l.b16 %v3267
      %v3620 = vunpack.c.l.b16 %v3268
      %v3621 = vunpack.c.l.b16 %v3269
      %v3622 = vunpack.c.l.b16 %v3270
      %v3623 = vunpack.c.l.b16 %v3271
      %v3624 = vunpack.c.l.b16 %v3272
      %v3625 = vunpack.c.l.b16 %v3273
      %v3626 = vunpack.c.l.b16 %v3274
      %v3627 = vunpack.c.l.b16 %v3275
      %v3628 = vunpack.c.l.b16 %v3276
      %v3629 = vunpack.c.l.b16 %v3277
      %v3630 = vpack.c.b16 %v3583, %v3582
      %v3631 = vpack.c.b16 %v3585, %v3584
      %v3632 = vpack.c.b16 %v3587, %v3586
      %v3633 = vpack.c.b16 %v3589, %v3588
      %v3634 = vpack.c.b16 %v3591, %v3590
      %v3635 = vpack.c.b16 %v3593, %v3592
      %v3636 = vpack.c.b16 %v3595, %v3594
      %v3637 = vpack.c.b16 %v3597, %v3596
      %v3638 = vpack.c.b16 %v3599, %v3598
      %v3639 = vpack.c.b16 %v3601, %v3600
      %v3640 = vpack.c.b16 %v3603, %v3602
      %v3641 = vpack.c.b16 %v3605, %v3604
      %v3642 = vpack.c.b16 %v3607, %v3606
      %v3643 = vpack.c.b16 %v3609, %v3608
      %v3644 = vpack.c.b16 %v3611, %v3610
      %v3645 = vpack.c.b16 %v3613, %v3612
      %v3646 = vpack.c.b16 %v3615, %v3614
      %v3647 = vpack.c.b16 %v3617, %v3616
      %v3648 = vpack.c.b16 %v3619, %v3618
      %v3649 = vpack.c.b16 %v3621, %v3620
      %v3650 = vpack.c.b16 %v3623, %v3622
      %v3651 = vpack.c.b16 %v3625, %v3624
      %v3652 = vpack.c.b16 %v3627, %v3626
      %v3653 = vpack.c.b16 %v3629, %v3628
      %3678 = vmatprep.subr.bf16.mxu0 0
      %3679 = vmatpush1.bf16.msra.mxu0 %v3637
      %3680 = vmatprep.subr.bf16.mxu0 0
      %3681 = vmatpush1.bf16.msra.mxu0 %v3636
      %3682 = vmatprep.subr.bf16.mxu0 0
      %3683 = vmatpush1.bf16.msra.mxu0 %v3635
      %3684 = vmatprep.subr.bf16.mxu0 0
      %3685 = vmatpush1.bf16.msra.mxu0 %v3634
      %3686 = vmatprep.subr.bf16.mxu0 0
      %3687 = vmatpush1.bf16.msra.mxu0 %v3633
      %3688 = vmatprep.subr.bf16.mxu0 0
      %3689 = vmatpush1.bf16.msra.mxu0 %v3632
      %3690 = vmatprep.subr.bf16.mxu0 0
      %3691 = vmatpush1.bf16.msra.mxu0 %v3631
      %3692 = vmatprep.subr.bf16.mxu0 0
      %3693 = vmatpush1.bf16.msra.mxu0 %v3630
      %3694 = vmatprep.subr.bf16.mxu0 0
      %3695 = vmatpush2.bf16.msra.mxu0 %v3645
      %3696 = vmatprep.subr.bf16.mxu0 0
      %3697 = vmatpush2.bf16.msra.mxu0 %v3644
      %3698 = vmatprep.subr.bf16.mxu0 0
      %3699 = vmatpush2.bf16.msra.mxu0 %v3643
      %3700 = vmatprep.subr.bf16.mxu0 0
      %3701 = vmatpush2.bf16.msra.mxu0 %v3642
      %3702 = vmatprep.subr.bf16.mxu0 0
      %3703 = vmatpush2.bf16.msra.mxu0 %v3641
      %3704 = vmatprep.subr.bf16.mxu0 0
      %3705 = vmatpush2.bf16.msra.mxu0 %v3640
      %3706 = vmatprep.subr.bf16.mxu0 0
      %3707 = vmatpush2.bf16.msra.mxu0 %v3639
      %3708 = vmatprep.subr.bf16.mxu0 0
      %3709 = vmatpush2.bf16.msra.mxu0 %v3638
      %3710 = vmatprep.mubr.bf16.mxu0 %v3439
      %3711 = vmatmul.mubr.bf16.gmra.mxu0 %v3438
      %v3712 = vpop.f32.mrf.mxu0
      %v3713 = vadd.f32 0.0, %v3712
      %v3714 = vpop.f32.mrf.mxu0
      %v3715 = vpop.f32.mrf.mxu0
      %v3716 = vadd.f32 0.0, %v3715
      %v3717 = vpop.f32.mrf.mxu0
      %3718 = vmatprep.mubr.bf16.mxu0 %v3442
      %3719 = vmatmul.mubr.bf16.gmra.mxu0 %v3441
      %v3720 = vpop.f32.mrf.mxu0
      %v3721 = vadd.f32 0.0, %v3720
      %v3722 = vpop.f32.mrf.mxu0
      %v3723 = vpop.f32.mrf.mxu0
      %v3724 = vadd.f32 0.0, %v3723
      %v3725 = vpop.f32.mrf.mxu0
      %3726 = vmatprep.mubr.bf16.mxu0 %v3445
      %3727 = vmatmul.mubr.bf16.gmra.mxu0 %v3444
      %v3728 = vpop.f32.mrf.mxu0
      %v3729 = vadd.f32 0.0, %v3728
      %v3730 = vpop.f32.mrf.mxu0
      %v3731 = vpop.f32.mrf.mxu0
      %v3732 = vadd.f32 0.0, %v3731
      %v3733 = vpop.f32.mrf.mxu0
      %3734 = vmatprep.mubr.bf16.mxu0 %v3448
      %3735 = vmatmul.mubr.bf16.gmra.mxu0 %v3447
      %v3736 = vpop.f32.mrf.mxu0
      %v3737 = vadd.f32 0.0, %v3736
      %v3738 = vpop.f32.mrf.mxu0
      %v3739 = vpop.f32.mrf.mxu0
      %v3740 = vadd.f32 0.0, %v3739
      %v3741 = vpop.f32.mrf.mxu0
      %3742 = vmatprep.mubr.bf16.mxu0 %v3451
      %3743 = vmatmul.mubr.bf16.gmra.mxu0 %v3450
      %v3744 = vpop.f32.mrf.mxu0
      %v3745 = vadd.f32 0.0, %v3744
      %v3746 = vpop.f32.mrf.mxu0
      %v3747 = vpop.f32.mrf.mxu0
      %v3748 = vadd.f32 0.0, %v3747
      %v3749 = vpop.f32.mrf.mxu0
      %3750 = vmatprep.mubr.bf16.mxu0 %v3454
      %3751 = vmatmul.mubr.bf16.gmra.mxu0 %v3453
      %v3752 = vpop.f32.mrf.mxu0
      %v3753 = vadd.f32 0.0, %v3752
      %v3754 = vpop.f32.mrf.mxu0
      %v3755 = vpop.f32.mrf.mxu0
      %v3756 = vadd.f32 0.0, %v3755
      %v3757 = vpop.f32.mrf.mxu0
      %3758 = vmatprep.mubr.bf16.mxu0 %v3457
      %3759 = vmatmul.mubr.bf16.gmra.mxu0 %v3456
      %v3760 = vpop.f32.mrf.mxu0
      %v3761 = vadd.f32 0.0, %v3760
      %v3762 = vpop.f32.mrf.mxu0
      %v3763 = vpop.f32.mrf.mxu0
      %v3764 = vadd.f32 0.0, %v3763
      %v3765 = vpop.f32.mrf.mxu0
      %3766 = vmatprep.mubr.bf16.mxu0 %v3460
      %3767 = vmatmul.mubr.bf16.gmra.mxu0 %v3459
      %v3768 = vpop.f32.mrf.mxu0
      %v3769 = vadd.f32 0.0, %v3768
      %v3770 = vpop.f32.mrf.mxu0
      %v3771 = vpop.f32.mrf.mxu0
      %v3772 = vadd.f32 0.0, %v3771
      %v3773 = vpop.f32.mrf.mxu0
      %3774 = vmatprep.mubr.bf16.mxu0 %v3463
      %3775 = vmatmul.mubr.bf16.gmra.mxu0 %v3462
      %v3776 = vpop.f32.mrf.mxu0
      %v3777 = vadd.f32 0.0, %v3776
      %v3778 = vpop.f32.mrf.mxu0
      %v3779 = vpop.f32.mrf.mxu0
      %v3780 = vadd.f32 0.0, %v3779
      %v3781 = vpop.f32.mrf.mxu0
      %3782 = vmatprep.mubr.bf16.mxu0 %v3466
      %3783 = vmatmul.mubr.bf16.gmra.mxu0 %v3465
      %v3784 = vpop.f32.mrf.mxu0
      %v3785 = vadd.f32 0.0, %v3784
      %v3786 = vpop.f32.mrf.mxu0
      %v3787 = vpop.f32.mrf.mxu0
      %v3788 = vadd.f32 0.0, %v3787
      %v3789 = vpop.f32.mrf.mxu0
      %3790 = vmatprep.mubr.bf16.mxu0 %v3469
      %3791 = vmatmul.mubr.bf16.gmra.mxu0 %v3468
      %v3792 = vpop.f32.mrf.mxu0
      %v3793 = vadd.f32 0.0, %v3792
      %v3794 = vpop.f32.mrf.mxu0
      %v3795 = vpop.f32.mrf.mxu0
      %v3796 = vadd.f32 0.0, %v3795
      %v3797 = vpop.f32.mrf.mxu0
      %3798 = vmatprep.mubr.bf16.mxu0 %v3472
      %3799 = vmatmul.mubr.bf16.gmra.mxu0 %v3471
      %v3800 = vpop.f32.mrf.mxu0
      %v3801 = vadd.f32 0.0, %v3800
      %v3802 = vpop.f32.mrf.mxu0
      %v3803 = vpop.f32.mrf.mxu0
      %v3804 = vadd.f32 0.0, %v3803
      %v3805 = vpop.f32.mrf.mxu0
      %3806 = vmatprep.mubr.bf16.mxu0 %v3475
      %3807 = vmatmul.mubr.bf16.gmra.mxu0 %v3474
      %v3808 = vpop.f32.mrf.mxu0
      %v3809 = vadd.f32 0.0, %v3808
      %v3810 = vpop.f32.mrf.mxu0
      %v3811 = vpop.f32.mrf.mxu0
      %v3812 = vadd.f32 0.0, %v3811
      %v3813 = vpop.f32.mrf.mxu0
      %3814 = vmatprep.mubr.bf16.mxu0 %v3478
      %3815 = vmatmul.mubr.bf16.gmra.mxu0 %v3477
      %v3816 = vpop.f32.mrf.mxu0
      %v3817 = vadd.f32 0.0, %v3816
      %v3818 = vpop.f32.mrf.mxu0
      %v3819 = vpop.f32.mrf.mxu0
      %v3820 = vadd.f32 0.0, %v3819
      %v3821 = vpop.f32.mrf.mxu0
      %3822 = vmatprep.mubr.bf16.mxu0 %v3481
      %3823 = vmatmul.mubr.bf16.gmra.mxu0 %v3480
      %v3824 = vpop.f32.mrf.mxu0
      %v3825 = vadd.f32 0.0, %v3824
      %v3826 = vpop.f32.mrf.mxu0
      %v3827 = vpop.f32.mrf.mxu0
      %v3828 = vadd.f32 0.0, %v3827
      %v3829 = vpop.f32.mrf.mxu0
      %3830 = vmatprep.mubr.bf16.mxu0 %v3484
      %3831 = vmatmul.mubr.bf16.gmra.mxu0 %v3483
      %v3832 = vpop.f32.mrf.mxu0
      %v3833 = vadd.f32 0.0, %v3832
      %v3834 = vpop.f32.mrf.mxu0
      %v3835 = vpop.f32.mrf.mxu0
      %v3836 = vadd.f32 0.0, %v3835
      %v3837 = vpop.f32.mrf.mxu0
      %3838 = vdwg.mxu0
      %3839 = vmatprep.subr.bf16.mxu0 0
      %3840 = vmatpush1.bf16.msra.mxu0 %v3653
      %3841 = vmatprep.subr.bf16.mxu0 0
      %3842 = vmatpush1.bf16.msra.mxu0 %v3652
      %3843 = vmatprep.subr.bf16.mxu0 0
      %3844 = vmatpush1.bf16.msra.mxu0 %v3651
      %3845 = vmatprep.subr.bf16.mxu0 0
      %3846 = vmatpush1.bf16.msra.mxu0 %v3650
      %3847 = vmatprep.subr.bf16.mxu0 0
      %3848 = vmatpush1.bf16.msra.mxu0 %v3649
      %3849 = vmatprep.subr.bf16.mxu0 0
      %3850 = vmatpush1.bf16.msra.mxu0 %v3648
      %3851 = vmatprep.subr.bf16.mxu0 0
      %3852 = vmatpush1.bf16.msra.mxu0 %v3647
      %3853 = vmatprep.subr.bf16.mxu0 0
      %3854 = vmatpush1.bf16.msra.mxu0 %v3646
      %3855 = vmatprep.subr.bf16.mxu0 0
      %3856 = vmatpush2.bf16.msra.mxu0 0
      %3857 = vmatprep.subr.bf16.mxu0 0
      %3858 = vmatpush2.bf16.msra.mxu0 0
      %3859 = vmatprep.subr.bf16.mxu0 0
      %3860 = vmatpush2.bf16.msra.mxu0 0
      %3861 = vmatprep.subr.bf16.mxu0 0
      %3862 = vmatpush2.bf16.msra.mxu0 0
      %3863 = vmatprep.subr.bf16.mxu0 0
      %3864 = vmatpush2.bf16.msra.mxu0 0
      %3865 = vmatprep.subr.bf16.mxu0 0
      %3866 = vmatpush2.bf16.msra.mxu0 0
      %3867 = vmatprep.subr.bf16.mxu0 0
      %3868 = vmatpush2.bf16.msra.mxu0 0
      %3869 = vmatprep.subr.bf16.mxu0 0
      %3870 = vmatpush2.bf16.msra.mxu0 0
      %3871 = vmatprep.mubr.bf16.mxu0 0
      %3872 = vmatmul.mubr.bf16.gmra.mxu0 %v3440
      %v3873 = vpop.f32.mrf.mxu0
      %v3874 = vadd.f32 %v3713, %v3873
      %v3875 = vpop.f32.mrf.mxu0
      %v3876 = vpop.f32.mrf.mxu0
      %v3877 = vadd.f32 %v3716, %v3876
      %v3878 = vpop.f32.mrf.mxu0
      %3879 = vmatprep.mubr.bf16.mxu0 0
      %3880 = vmatmul.mubr.bf16.gmra.mxu0 %v3443
      %v3881 = vpop.f32.mrf.mxu0
      %v3882 = vadd.f32 %v3721, %v3881
      %v3883 = vpop.f32.mrf.mxu0
      %v3884 = vpop.f32.mrf.mxu0
      %v3885 = vadd.f32 %v3724, %v3884
      %v3886 = vpop.f32.mrf.mxu0
      %3887 = vmatprep.mubr.bf16.mxu0 0
      %3888 = vmatmul.mubr.bf16.gmra.mxu0 %v3446
      %v3889 = vpop.f32.mrf.mxu0
      %v3890 = vadd.f32 %v3729, %v3889
      %v3891 = vpop.f32.mrf.mxu0
      %v3892 = vpop.f32.mrf.mxu0
      %v3893 = vadd.f32 %v3732, %v3892
      %v3894 = vpop.f32.mrf.mxu0
      %3895 = vmatprep.mubr.bf16.mxu0 0
      %3896 = vmatmul.mubr.bf16.gmra.mxu0 %v3449
      %v3897 = vpop.f32.mrf.mxu0
      %v3898 = vadd.f32 %v3737, %v3897
      %v3899 = vpop.f32.mrf.mxu0
      %v3900 = vpop.f32.mrf.mxu0
      %v3901 = vadd.f32 %v3740, %v3900
      %v3902 = vpop.f32.mrf.mxu0
      %3903 = vmatprep.mubr.bf16.mxu0 0
      %3904 = vmatmul.mubr.bf16.gmra.mxu0 %v3452
      %v3905 = vpop.f32.mrf.mxu0
      %v3906 = vadd.f32 %v3745, %v3905
      %v3907 = vpop.f32.mrf.mxu0
      %v3908 = vpop.f32.mrf.mxu0
      %v3909 = vadd.f32 %v3748, %v3908
      %v3910 = vpop.f32.mrf.mxu0
      %3911 = vmatprep.mubr.bf16.mxu0 0
      %3912 = vmatmul.mubr.bf16.gmra.mxu0 %v3455
      %v3913 = vpop.f32.mrf.mxu0
      %v3914 = vadd.f32 %v3753, %v3913
      %v3915 = vpop.f32.mrf.mxu0
      %v3916 = vpop.f32.mrf.mxu0
      %v3917 = vadd.f32 %v3756, %v3916
      %v3918 = vpop.f32.mrf.mxu0
      %3919 = vmatprep.mubr.bf16.mxu0 0
      %3920 = vmatmul.mubr.bf16.gmra.mxu0 %v3458
      %v3921 = vpop.f32.mrf.mxu0
      %v3922 = vadd.f32 %v3761, %v3921
      %v3923 = vpop.f32.mrf.mxu0
      %v3924 = vpop.f32.mrf.mxu0
      %v3925 = vadd.f32 %v3764, %v3924
      %v3926 = vpop.f32.mrf.mxu0
      %3927 = vmatprep.mubr.bf16.mxu0 0
      %3928 = vmatmul.mubr.bf16.gmra.mxu0 %v3461
      %v3929 = vpop.f32.mrf.mxu0
      %v3930 = vadd.f32 %v3769, %v3929
      %v3931 = vpop.f32.mrf.mxu0
      %v3932 = vpop.f32.mrf.mxu0
      %v3933 = vadd.f32 %v3772, %v3932
      %v3934 = vpop.f32.mrf.mxu0
      %3935 = vmatprep.mubr.bf16.mxu0 0
      %3936 = vmatmul.mubr.bf16.gmra.mxu0 %v3464
      %v3937 = vpop.f32.mrf.mxu0
      %v3938 = vadd.f32 %v3777, %v3937
      %v3939 = vpop.f32.mrf.mxu0
      %v3940 = vpop.f32.mrf.mxu0
      %v3941 = vadd.f32 %v3780, %v3940
      %v3942 = vpop.f32.mrf.mxu0
      %3943 = vmatprep.mubr.bf16.mxu0 0
      %3944 = vmatmul.mubr.bf16.gmra.mxu0 %v3467
      %v3945 = vpop.f32.mrf.mxu0
      %v3946 = vadd.f32 %v3785, %v3945
      %v3947 = vpop.f32.mrf.mxu0
      %v3948 = vpop.f32.mrf.mxu0
      %v3949 = vadd.f32 %v3788, %v3948
      %v3950 = vpop.f32.mrf.mxu0
      %3951 = vmatprep.mubr.bf16.mxu0 0
      %3952 = vmatmul.mubr.bf16.gmra.mxu0 %v3470
      %v3953 = vpop.f32.mrf.mxu0
      %v3954 = vadd.f32 %v3793, %v3953
      %v3955 = vpop.f32.mrf.mxu0
      %v3956 = vpop.f32.mrf.mxu0
      %v3957 = vadd.f32 %v3796, %v3956
      %v3958 = vpop.f32.mrf.mxu0
      %3959 = vmatprep.mubr.bf16.mxu0 0
      %3960 = vmatmul.mubr.bf16.gmra.mxu0 %v3473
      %v3961 = vpop.f32.mrf.mxu0
      %v3962 = vadd.f32 %v3801, %v3961
      %v3963 = vpop.f32.mrf.mxu0
      %v3964 = vpop.f32.mrf.mxu0
      %v3965 = vadd.f32 %v3804, %v3964
      %v3966 = vpop.f32.mrf.mxu0
      %3967 = vmatprep.mubr.bf16.mxu0 0
      %3968 = vmatmul.mubr.bf16.gmra.mxu0 %v3476
      %v3969 = vpop.f32.mrf.mxu0
      %v3970 = vadd.f32 %v3809, %v3969
      %v3971 = vpop.f32.mrf.mxu0
      %v3972 = vpop.f32.mrf.mxu0
      %v3973 = vadd.f32 %v3812, %v3972
      %v3974 = vpop.f32.mrf.mxu0
      %3975 = vmatprep.mubr.bf16.mxu0 0
      %3976 = vmatmul.mubr.bf16.gmra.mxu0 %v3479
      %v3977 = vpop.f32.mrf.mxu0
      %v3978 = vadd.f32 %v3817, %v3977
      %v3979 = vpop.f32.mrf.mxu0
      %v3980 = vpop.f32.mrf.mxu0
      %v3981 = vadd.f32 %v3820, %v3980
      %v3982 = vpop.f32.mrf.mxu0
      %3983 = vmatprep.mubr.bf16.mxu0 0
      %3984 = vmatmul.mubr.bf16.gmra.mxu0 %v3482
      %v3985 = vpop.f32.mrf.mxu0
      %v3986 = vadd.f32 %v3825, %v3985
      %v3987 = vpop.f32.mrf.mxu0
      %v3988 = vpop.f32.mrf.mxu0
      %v3989 = vadd.f32 %v3828, %v3988
      %v3990 = vpop.f32.mrf.mxu0
      %3991 = vmatprep.mubr.bf16.mxu0 0
      %3992 = vmatmul.mubr.bf16.gmra.mxu0 %v3485
      %v3993 = vpop.f32.mrf.mxu0
      %v3994 = vadd.f32 %v3833, %v3993
      %v3995 = vpop.f32.mrf.mxu0
      %v3996 = vpop.f32.mrf.mxu0
      %v3997 = vadd.f32 %v3836, %v3996
      %v3998 = vpop.f32.mrf.mxu0
      %3999 = vdwg.mxu0
      %v4064 = vunpack.c.l.b16 %v2222
      %v4065 = vunpack.c.h.b16 %v2222
      %v4066 = vunpack.c.l.b16 %v2223
      %v4067 = vunpack.c.l.b16 %v2224
      %v4068 = vunpack.c.h.b16 %v2224
      %v4069 = vunpack.c.l.b16 %v2225
      %v4070 = vunpack.c.l.b16 %v2226
      %v4071 = vunpack.c.h.b16 %v2226
      %v4072 = vunpack.c.l.b16 %v2227
      %v4073 = vunpack.c.l.b16 %v2228
      %v4074 = vunpack.c.h.b16 %v2228
      %v4075 = vunpack.c.l.b16 %v2229
      %v4076 = vunpack.c.l.b16 %v2230
      %v4077 = vunpack.c.h.b16 %v2230
      %v4078 = vunpack.c.l.b16 %v2231
      %v4079 = vunpack.c.l.b16 %v2232
      %v4080 = vunpack.c.h.b16 %v2232
      %v4081 = vunpack.c.l.b16 %v2233
      %v4082 = vunpack.c.l.b16 %v2234
      %v4083 = vunpack.c.h.b16 %v2234
      %v4084 = vunpack.c.l.b16 %v2235
      %v4085 = vunpack.c.l.b16 %v2236
      %v4086 = vunpack.c.h.b16 %v2236
      %v4087 = vunpack.c.l.b16 %v2237
      %v4088 = vunpack.c.l.b16 %v2238
      %v4089 = vunpack.c.h.b16 %v2238
      %v4090 = vunpack.c.l.b16 %v2239
      %v4091 = vunpack.c.l.b16 %v2240
      %v4092 = vunpack.c.h.b16 %v2240
      %v4093 = vunpack.c.l.b16 %v2241
      %v4094 = vunpack.c.l.b16 %v2242
      %v4095 = vunpack.c.h.b16 %v2242
      %v4096 = vunpack.c.l.b16 %v2243
      %v4097 = vunpack.c.l.b16 %v2244
      %v4098 = vunpack.c.h.b16 %v2244
      %v4099 = vunpack.c.l.b16 %v2245
      %v4100 = vunpack.c.l.b16 %v2246
      %v4101 = vunpack.c.h.b16 %v2246
      %v4102 = vunpack.c.l.b16 %v2247
      %v4103 = vunpack.c.l.b16 %v2248
      %v4104 = vunpack.c.h.b16 %v2248
      %v4105 = vunpack.c.l.b16 %v2249
      %v4106 = vunpack.c.l.b16 %v2250
      %v4107 = vunpack.c.h.b16 %v2250
      %v4108 = vunpack.c.l.b16 %v2251
      %v4109 = vunpack.c.l.b16 %v2252
      %v4110 = vunpack.c.h.b16 %v2252
      %v4111 = vunpack.c.l.b16 %v2253
      %v4112 = vunpack.c.l.b16 %v2254
      %v4113 = vunpack.c.h.b16 %v2254
      %v4114 = vunpack.c.l.b16 %v2255
      %v4115 = vunpack.c.l.b16 %v2256
      %v4116 = vunpack.c.h.b16 %v2256
      %v4117 = vunpack.c.l.b16 %v2257
      %v4118 = vunpack.c.l.b16 %v2258
      %v4119 = vunpack.c.h.b16 %v2258
      %v4120 = vunpack.c.l.b16 %v2259
      %v4121 = vunpack.c.l.b16 %v2260
      %v4122 = vunpack.c.h.b16 %v2260
      %v4123 = vunpack.c.l.b16 %v2261
      %v4124 = vunpack.c.l.b16 %v2262
      %v4125 = vunpack.c.h.b16 %v2262
      %v4126 = vunpack.c.l.b16 %v2263
      %v4127 = vunpack.c.l.b16 %v2264
      %v4128 = vunpack.c.h.b16 %v2264
      %v4129 = vunpack.c.l.b16 %v2265
      %v4130 = vunpack.c.l.b16 %v2266
      %v4131 = vunpack.c.h.b16 %v2266
      %v4132 = vunpack.c.l.b16 %v2267
      %v4133 = vunpack.c.l.b16 %v2268
      %v4134 = vunpack.c.h.b16 %v2268
      %v4135 = vunpack.c.l.b16 %v2269
      %v4136 = vunpack.c.l.b16 %v2270
      %v4137 = vunpack.c.h.b16 %v2270
      %v4138 = vunpack.c.l.b16 %v2271
      %v4139 = vunpack.c.l.b16 %v2272
      %v4140 = vunpack.c.h.b16 %v2272
      %v4141 = vunpack.c.l.b16 %v2273
      %v4142 = vunpack.c.l.b16 %v2274
      %v4143 = vunpack.c.h.b16 %v2274
      %v4144 = vunpack.c.l.b16 %v2275
      %v4145 = vunpack.c.l.b16 %v2276
      %v4146 = vunpack.c.h.b16 %v2276
      %v4147 = vunpack.c.l.b16 %v2277
      %v4148 = vunpack.c.l.b16 %v2278
      %v4149 = vunpack.c.h.b16 %v2278
      %v4150 = vunpack.c.l.b16 %v2279
      %v4151 = vunpack.c.l.b16 %v2280
      %v4152 = vunpack.c.h.b16 %v2280
      %v4153 = vunpack.c.l.b16 %v2281
      %v4154 = vunpack.c.l.b16 %v2282
      %v4155 = vunpack.c.h.b16 %v2282
      %v4156 = vunpack.c.l.b16 %v2283
      %v4157 = vunpack.c.l.b16 %v2284
      %v4158 = vunpack.c.h.b16 %v2284
      %v4159 = vunpack.c.l.b16 %v2285
      %v4160 = vpack.c.b16 %v4067, %v4064
      %v4161 = vpack.c.b16 %v4068, %v4065
      %v4162 = vpack.c.b16 %v4069, %v4066
      %v4163 = vpack.c.b16 %v4073, %v4070
      %v4164 = vpack.c.b16 %v4074, %v4071
      %v4165 = vpack.c.b16 %v4075, %v4072
      %v4166 = vpack.c.b16 %v4079, %v4076
      %v4167 = vpack.c.b16 %v4080, %v4077
      %v4168 = vpack.c.b16 %v4081, %v4078
      %v4169 = vpack.c.b16 %v4085, %v4082
      %v4170 = vpack.c.b16 %v4086, %v4083
      %v4171 = vpack.c.b16 %v4087, %v4084
      %v4172 = vpack.c.b16 %v4091, %v4088
      %v4173 = vpack.c.b16 %v4092, %v4089
      %v4174 = vpack.c.b16 %v4093, %v4090
      %v4175 = vpack.c.b16 %v4097, %v4094
      %v4176 = vpack.c.b16 %v4098, %v4095
      %v4177 = vpack.c.b16 %v4099, %v4096
      %v4178 = vpack.c.b16 %v4103, %v4100
      %v4179 = vpack.c.b16 %v4104, %v4101
      %v4180 = vpack.c.b16 %v4105, %v4102
      %v4181 = vpack.c.b16 %v4109, %v4106
      %v4182 = vpack.c.b16 %v4110, %v4107
      %v4183 = vpack.c.b16 %v4111, %v4108
      %v4184 = vpack.c.b16 %v4115, %v4112
      %v4185 = vpack.c.b16 %v4116, %v4113
      %v4186 = vpack.c.b16 %v4117, %v4114
      %v4187 = vpack.c.b16 %v4121, %v4118
      %v4188 = vpack.c.b16 %v4122, %v4119
      %v4189 = vpack.c.b16 %v4123, %v4120
      %v4190 = vpack.c.b16 %v4127, %v4124
      %v4191 = vpack.c.b16 %v4128, %v4125
      %v4192 = vpack.c.b16 %v4129, %v4126
      %v4193 = vpack.c.b16 %v4133, %v4130
      %v4194 = vpack.c.b16 %v4134, %v4131
      %v4195 = vpack.c.b16 %v4135, %v4132
      %v4196 = vpack.c.b16 %v4139, %v4136
      %v4197 = vpack.c.b16 %v4140, %v4137
      %v4198 = vpack.c.b16 %v4141, %v4138
      %v4199 = vpack.c.b16 %v4145, %v4142
      %v4200 = vpack.c.b16 %v4146, %v4143
      %v4201 = vpack.c.b16 %v4147, %v4144
      %v4202 = vpack.c.b16 %v4151, %v4148
      %v4203 = vpack.c.b16 %v4152, %v4149
      %v4204 = vpack.c.b16 %v4153, %v4150
      %v4205 = vpack.c.b16 %v4157, %v4154
      %v4206 = vpack.c.b16 %v4158, %v4155
      %v4207 = vpack.c.b16 %v4159, %v4156
      %v4304 = vunpack.c.l.b16 %v2286
      %v4305 = vunpack.c.l.b16 %v2287
      %v4306 = vunpack.c.l.b16 %v2288
      %v4307 = vunpack.c.l.b16 %v2289
      %v4308 = vunpack.c.l.b16 %v2290
      %v4309 = vunpack.c.l.b16 %v2291
      %v4310 = vunpack.c.l.b16 %v2292
      %v4311 = vunpack.c.l.b16 %v2293
      %v4312 = vunpack.c.l.b16 %v2294
      %v4313 = vunpack.c.l.b16 %v2295
      %v4314 = vunpack.c.l.b16 %v2296
      %v4315 = vunpack.c.l.b16 %v2297
      %v4316 = vunpack.c.l.b16 %v2298
      %v4317 = vunpack.c.l.b16 %v2299
      %v4318 = vunpack.c.l.b16 %v2300
      %v4319 = vunpack.c.l.b16 %v2301
      %v4320 = vunpack.c.l.b16 %v2302
      %v4321 = vunpack.c.l.b16 %v2303
      %v4322 = vunpack.c.l.b16 %v2304
      %v4323 = vunpack.c.l.b16 %v2305
      %v4324 = vunpack.c.l.b16 %v2306
      %v4325 = vunpack.c.l.b16 %v2307
      %v4326 = vunpack.c.l.b16 %v2308
      %v4327 = vunpack.c.l.b16 %v2309
      %v4328 = vunpack.c.l.b16 %v2310
      %v4329 = vunpack.c.l.b16 %v2311
      %v4330 = vunpack.c.l.b16 %v2312
      %v4331 = vunpack.c.l.b16 %v2313
      %v4332 = vunpack.c.l.b16 %v2314
      %v4333 = vunpack.c.l.b16 %v2315
      %v4334 = vunpack.c.l.b16 %v2316
      %v4335 = vunpack.c.l.b16 %v2317
      %v4336 = vunpack.c.l.b16 %v2318
      %v4337 = vunpack.c.l.b16 %v2319
      %v4338 = vunpack.c.l.b16 %v2320
      %v4339 = vunpack.c.l.b16 %v2321
      %v4340 = vunpack.c.l.b16 %v2322
      %v4341 = vunpack.c.l.b16 %v2323
      %v4342 = vunpack.c.l.b16 %v2324
      %v4343 = vunpack.c.l.b16 %v2325
      %v4344 = vunpack.c.l.b16 %v2326
      %v4345 = vunpack.c.l.b16 %v2327
      %v4346 = vunpack.c.l.b16 %v2328
      %v4347 = vunpack.c.l.b16 %v2329
      %v4348 = vunpack.c.l.b16 %v2330
      %v4349 = vunpack.c.l.b16 %v2331
      %v4350 = vunpack.c.l.b16 %v2332
      %v4351 = vunpack.c.l.b16 %v2333
      %v4352 = vpack.c.b16 %v4305, %v4304
      %v4353 = vpack.c.b16 %v4307, %v4306
      %v4354 = vpack.c.b16 %v4309, %v4308
      %v4355 = vpack.c.b16 %v4311, %v4310
      %v4356 = vpack.c.b16 %v4313, %v4312
      %v4357 = vpack.c.b16 %v4315, %v4314
      %v4358 = vpack.c.b16 %v4317, %v4316
      %v4359 = vpack.c.b16 %v4319, %v4318
      %v4360 = vpack.c.b16 %v4321, %v4320
      %v4361 = vpack.c.b16 %v4323, %v4322
      %v4362 = vpack.c.b16 %v4325, %v4324
      %v4363 = vpack.c.b16 %v4327, %v4326
      %v4364 = vpack.c.b16 %v4329, %v4328
      %v4365 = vpack.c.b16 %v4331, %v4330
      %v4366 = vpack.c.b16 %v4333, %v4332
      %v4367 = vpack.c.b16 %v4335, %v4334
      %v4368 = vpack.c.b16 %v4337, %v4336
      %v4369 = vpack.c.b16 %v4339, %v4338
      %v4370 = vpack.c.b16 %v4341, %v4340
      %v4371 = vpack.c.b16 %v4343, %v4342
      %v4372 = vpack.c.b16 %v4345, %v4344
      %v4373 = vpack.c.b16 %v4347, %v4346
      %v4374 = vpack.c.b16 %v4349, %v4348
      %v4375 = vpack.c.b16 %v4351, %v4350
      %4400 = vmatprep.subr.bf16.mxu0 0
      %4401 = vmatpush1.bf16.msra.mxu0 %v4359
      %4402 = vmatprep.subr.bf16.mxu0 0
      %4403 = vmatpush1.bf16.msra.mxu0 %v4358
      %4404 = vmatprep.subr.bf16.mxu0 0
      %4405 = vmatpush1.bf16.msra.mxu0 %v4357
      %4406 = vmatprep.subr.bf16.mxu0 0
      %4407 = vmatpush1.bf16.msra.mxu0 %v4356
      %4408 = vmatprep.subr.bf16.mxu0 0
      %4409 = vmatpush1.bf16.msra.mxu0 %v4355
      %4410 = vmatprep.subr.bf16.mxu0 0
      %4411 = vmatpush1.bf16.msra.mxu0 %v4354
      %4412 = vmatprep.subr.bf16.mxu0 0
      %4413 = vmatpush1.bf16.msra.mxu0 %v4353
      %4414 = vmatprep.subr.bf16.mxu0 0
      %4415 = vmatpush1.bf16.msra.mxu0 %v4352
      %4416 = vmatprep.subr.bf16.mxu0 0
      %4417 = vmatpush2.bf16.msra.mxu0 %v4367
      %4418 = vmatprep.subr.bf16.mxu0 0
      %4419 = vmatpush2.bf16.msra.mxu0 %v4366
      %4420 = vmatprep.subr.bf16.mxu0 0
      %4421 = vmatpush2.bf16.msra.mxu0 %v4365
      %4422 = vmatprep.subr.bf16.mxu0 0
      %4423 = vmatpush2.bf16.msra.mxu0 %v4364
      %4424 = vmatprep.subr.bf16.mxu0 0
      %4425 = vmatpush2.bf16.msra.mxu0 %v4363
      %4426 = vmatprep.subr.bf16.mxu0 0
      %4427 = vmatpush2.bf16.msra.mxu0 %v4362
      %4428 = vmatprep.subr.bf16.mxu0 0
      %4429 = vmatpush2.bf16.msra.mxu0 %v4361
      %4430 = vmatprep.subr.bf16.mxu0 0
      %4431 = vmatpush2.bf16.msra.mxu0 %v4360
      %4432 = vmatprep.mubr.bf16.mxu0 %v4161
      %4433 = vmatmul.mubr.bf16.gmra.mxu0 %v4160
      %v4434 = vpop.f32.mrf.mxu0
      %v4435 = vadd.f32 %v3874, %v4434
      %v4436 = vpop.f32.mrf.mxu0
      %v4437 = vpop.f32.mrf.mxu0
      %v4438 = vadd.f32 %v3877, %v4437
      %v4439 = vpop.f32.mrf.mxu0
      %4440 = vmatprep.mubr.bf16.mxu0 %v4164
      %4441 = vmatmul.mubr.bf16.gmra.mxu0 %v4163
      %v4442 = vpop.f32.mrf.mxu0
      %v4443 = vadd.f32 %v3882, %v4442
      %v4444 = vpop.f32.mrf.mxu0
      %v4445 = vpop.f32.mrf.mxu0
      %v4446 = vadd.f32 %v3885, %v4445
      %v4447 = vpop.f32.mrf.mxu0
      %4448 = vmatprep.mubr.bf16.mxu0 %v4167
      %4449 = vmatmul.mubr.bf16.gmra.mxu0 %v4166
      %v4450 = vpop.f32.mrf.mxu0
      %v4451 = vadd.f32 %v3890, %v4450
      %v4452 = vpop.f32.mrf.mxu0
      %v4453 = vpop.f32.mrf.mxu0
      %v4454 = vadd.f32 %v3893, %v4453
      %v4455 = vpop.f32.mrf.mxu0
      %4456 = vmatprep.mubr.bf16.mxu0 %v4170
      %4457 = vmatmul.mubr.bf16.gmra.mxu0 %v4169
      %v4458 = vpop.f32.mrf.mxu0
      %v4459 = vadd.f32 %v3898, %v4458
      %v4460 = vpop.f32.mrf.mxu0
      %v4461 = vpop.f32.mrf.mxu0
      %v4462 = vadd.f32 %v3901, %v4461
      %v4463 = vpop.f32.mrf.mxu0
      %4464 = vmatprep.mubr.bf16.mxu0 %v4173
      %4465 = vmatmul.mubr.bf16.gmra.mxu0 %v4172
      %v4466 = vpop.f32.mrf.mxu0
      %v4467 = vadd.f32 %v3906, %v4466
      %v4468 = vpop.f32.mrf.mxu0
      %v4469 = vpop.f32.mrf.mxu0
      %v4470 = vadd.f32 %v3909, %v4469
      %v4471 = vpop.f32.mrf.mxu0
      %4472 = vmatprep.mubr.bf16.mxu0 %v4176
      %4473 = vmatmul.mubr.bf16.gmra.mxu0 %v4175
      %v4474 = vpop.f32.mrf.mxu0
      %v4475 = vadd.f32 %v3914, %v4474
      %v4476 = vpop.f32.mrf.mxu0
      %v4477 = vpop.f32.mrf.mxu0
      %v4478 = vadd.f32 %v3917, %v4477
      %v4479 = vpop.f32.mrf.mxu0
      %4480 = vmatprep.mubr.bf16.mxu0 %v4179
      %4481 = vmatmul.mubr.bf16.gmra.mxu0 %v4178
      %v4482 = vpop.f32.mrf.mxu0
      %v4483 = vadd.f32 %v3922, %v4482
      %v4484 = vpop.f32.mrf.mxu0
      %v4485 = vpop.f32.mrf.mxu0
      %v4486 = vadd.f32 %v3925, %v4485
      %v4487 = vpop.f32.mrf.mxu0
      %4488 = vmatprep.mubr.bf16.mxu0 %v4182
      %4489 = vmatmul.mubr.bf16.gmra.mxu0 %v4181
      %v4490 = vpop.f32.mrf.mxu0
      %v4491 = vadd.f32 %v3930, %v4490
      %v4492 = vpop.f32.mrf.mxu0
      %v4493 = vpop.f32.mrf.mxu0
      %v4494 = vadd.f32 %v3933, %v4493
      %v4495 = vpop.f32.mrf.mxu0
      %4496 = vmatprep.mubr.bf16.mxu0 %v4185
      %4497 = vmatmul.mubr.bf16.gmra.mxu0 %v4184
      %v4498 = vpop.f32.mrf.mxu0
      %v4499 = vadd.f32 %v3938, %v4498
      %v4500 = vpop.f32.mrf.mxu0
      %v4501 = vpop.f32.mrf.mxu0
      %v4502 = vadd.f32 %v3941, %v4501
      %v4503 = vpop.f32.mrf.mxu0
      %4504 = vmatprep.mubr.bf16.mxu0 %v4188
      %4505 = vmatmul.mubr.bf16.gmra.mxu0 %v4187
      %v4506 = vpop.f32.mrf.mxu0
      %v4507 = vadd.f32 %v3946, %v4506
      %v4508 = vpop.f32.mrf.mxu0
      %v4509 = vpop.f32.mrf.mxu0
      %v4510 = vadd.f32 %v3949, %v4509
      %v4511 = vpop.f32.mrf.mxu0
      %4512 = vmatprep.mubr.bf16.mxu0 %v4191
      %4513 = vmatmul.mubr.bf16.gmra.mxu0 %v4190
      %v4514 = vpop.f32.mrf.mxu0
      %v4515 = vadd.f32 %v3954, %v4514
      %v4516 = vpop.f32.mrf.mxu0
      %v4517 = vpop.f32.mrf.mxu0
      %v4518 = vadd.f32 %v3957, %v4517
      %v4519 = vpop.f32.mrf.mxu0
      %4520 = vmatprep.mubr.bf16.mxu0 %v4194
      %4521 = vmatmul.mubr.bf16.gmra.mxu0 %v4193
      %v4522 = vpop.f32.mrf.mxu0
      %v4523 = vadd.f32 %v3962, %v4522
      %v4524 = vpop.f32.mrf.mxu0
      %v4525 = vpop.f32.mrf.mxu0
      %v4526 = vadd.f32 %v3965, %v4525
      %v4527 = vpop.f32.mrf.mxu0
      %4528 = vmatprep.mubr.bf16.mxu0 %v4197
      %4529 = vmatmul.mubr.bf16.gmra.mxu0 %v4196
      %v4530 = vpop.f32.mrf.mxu0
      %v4531 = vadd.f32 %v3970, %v4530
      %v4532 = vpop.f32.mrf.mxu0
      %v4533 = vpop.f32.mrf.mxu0
      %v4534 = vadd.f32 %v3973, %v4533
      %v4535 = vpop.f32.mrf.mxu0
      %4536 = vmatprep.mubr.bf16.mxu0 %v4200
      %4537 = vmatmul.mubr.bf16.gmra.mxu0 %v4199
      %v4538 = vpop.f32.mrf.mxu0
      %v4539 = vadd.f32 %v3978, %v4538
      %v4540 = vpop.f32.mrf.mxu0
      %v4541 = vpop.f32.mrf.mxu0
      %v4542 = vadd.f32 %v3981, %v4541
      %v4543 = vpop.f32.mrf.mxu0
      %4544 = vmatprep.mubr.bf16.mxu0 %v4203
      %4545 = vmatmul.mubr.bf16.gmra.mxu0 %v4202
      %v4546 = vpop.f32.mrf.mxu0
      %v4547 = vadd.f32 %v3986, %v4546
      %v4548 = vpop.f32.mrf.mxu0
      %v4549 = vpop.f32.mrf.mxu0
      %v4550 = vadd.f32 %v3989, %v4549
      %v4551 = vpop.f32.mrf.mxu0
      %4552 = vmatprep.mubr.bf16.mxu0 %v4206
      %4553 = vmatmul.mubr.bf16.gmra.mxu0 %v4205
      %v4554 = vpop.f32.mrf.mxu0
      %v4555 = vadd.f32 %v3994, %v4554
      %v4556 = vpop.f32.mrf.mxu0
      %v4557 = vpop.f32.mrf.mxu0
      %v4558 = vadd.f32 %v3997, %v4557
      %v4559 = vpop.f32.mrf.mxu0
      %4560 = vdwg.mxu0
      %4561 = vmatprep.subr.bf16.mxu0 0
      %4562 = vmatpush1.bf16.msra.mxu0 %v4375
      %4563 = vmatprep.subr.bf16.mxu0 0
      %4564 = vmatpush1.bf16.msra.mxu0 %v4374
      %4565 = vmatprep.subr.bf16.mxu0 0
      %4566 = vmatpush1.bf16.msra.mxu0 %v4373
      %4567 = vmatprep.subr.bf16.mxu0 0
      %4568 = vmatpush1.bf16.msra.mxu0 %v4372
      %4569 = vmatprep.subr.bf16.mxu0 0
      %4570 = vmatpush1.bf16.msra.mxu0 %v4371
      %4571 = vmatprep.subr.bf16.mxu0 0
      %4572 = vmatpush1.bf16.msra.mxu0 %v4370
      %4573 = vmatprep.subr.bf16.mxu0 0
      %4574 = vmatpush1.bf16.msra.mxu0 %v4369
      %4575 = vmatprep.subr.bf16.mxu0 0
      %4576 = vmatpush1.bf16.msra.mxu0 %v4368
      %4577 = vmatprep.subr.bf16.mxu0 0
      %4578 = vmatpush2.bf16.msra.mxu0 0
      %4579 = vmatprep.subr.bf16.mxu0 0
      %4580 = vmatpush2.bf16.msra.mxu0 0
      %4581 = vmatprep.subr.bf16.mxu0 0
      %4582 = vmatpush2.bf16.msra.mxu0 0
      %4583 = vmatprep.subr.bf16.mxu0 0
      %4584 = vmatpush2.bf16.msra.mxu0 0
      %4585 = vmatprep.subr.bf16.mxu0 0
      %4586 = vmatpush2.bf16.msra.mxu0 0
      %4587 = vmatprep.subr.bf16.mxu0 0
      %4588 = vmatpush2.bf16.msra.mxu0 0
      %4589 = vmatprep.subr.bf16.mxu0 0
      %4590 = vmatpush2.bf16.msra.mxu0 0
      %4591 = vmatprep.subr.bf16.mxu0 0
      %4592 = vmatpush2.bf16.msra.mxu0 0
      %4593 = vmatprep.mubr.bf16.mxu0 0
      %4594 = vmatmul.mubr.bf16.gmra.mxu0 %v4162
      %v4595 = vpop.f32.mrf.mxu0
      %v4596 = vadd.f32 %v4435, %v4595
      %v4597 = vpop.f32.mrf.mxu0
      %v4598 = vpop.f32.mrf.mxu0
      %v4599 = vadd.f32 %v4438, %v4598
      %v4600 = vpop.f32.mrf.mxu0
      %4601 = vmatprep.mubr.bf16.mxu0 0
      %4602 = vmatmul.mubr.bf16.gmra.mxu0 %v4165
      %v4603 = vpop.f32.mrf.mxu0
      %v4604 = vadd.f32 %v4443, %v4603
      %v4605 = vpop.f32.mrf.mxu0
      %v4606 = vpop.f32.mrf.mxu0
      %v4607 = vadd.f32 %v4446, %v4606
      %v4608 = vpop.f32.mrf.mxu0
      %4609 = vmatprep.mubr.bf16.mxu0 0
      %4610 = vmatmul.mubr.bf16.gmra.mxu0 %v4168
      %v4611 = vpop.f32.mrf.mxu0
      %v4612 = vadd.f32 %v4451, %v4611
      %v4613 = vpop.f32.mrf.mxu0
      %v4614 = vpop.f32.mrf.mxu0
      %v4615 = vadd.f32 %v4454, %v4614
      %v4616 = vpop.f32.mrf.mxu0
      %4617 = vmatprep.mubr.bf16.mxu0 0
      %4618 = vmatmul.mubr.bf16.gmra.mxu0 %v4171
      %v4619 = vpop.f32.mrf.mxu0
      %v4620 = vadd.f32 %v4459, %v4619
      %v4621 = vpop.f32.mrf.mxu0
      %v4622 = vpop.f32.mrf.mxu0
      %v4623 = vadd.f32 %v4462, %v4622
      %v4624 = vpop.f32.mrf.mxu0
      %4625 = vmatprep.mubr.bf16.mxu0 0
      %4626 = vmatmul.mubr.bf16.gmra.mxu0 %v4174
      %v4627 = vpop.f32.mrf.mxu0
      %v4628 = vadd.f32 %v4467, %v4627
      %v4629 = vpop.f32.mrf.mxu0
      %v4630 = vpop.f32.mrf.mxu0
      %v4631 = vadd.f32 %v4470, %v4630
      %v4632 = vpop.f32.mrf.mxu0
      %4633 = vmatprep.mubr.bf16.mxu0 0
      %4634 = vmatmul.mubr.bf16.gmra.mxu0 %v4177
      %v4635 = vpop.f32.mrf.mxu0
      %v4636 = vadd.f32 %v4475, %v4635
      %v4637 = vpop.f32.mrf.mxu0
      %v4638 = vpop.f32.mrf.mxu0
      %v4639 = vadd.f32 %v4478, %v4638
      %v4640 = vpop.f32.mrf.mxu0
      %4641 = vmatprep.mubr.bf16.mxu0 0
      %4642 = vmatmul.mubr.bf16.gmra.mxu0 %v4180
      %v4643 = vpop.f32.mrf.mxu0
      %v4644 = vadd.f32 %v4483, %v4643
      %v4645 = vpop.f32.mrf.mxu0
      %v4646 = vpop.f32.mrf.mxu0
      %v4647 = vadd.f32 %v4486, %v4646
      %v4648 = vpop.f32.mrf.mxu0
      %4649 = vmatprep.mubr.bf16.mxu0 0
      %4650 = vmatmul.mubr.bf16.gmra.mxu0 %v4183
      %v4651 = vpop.f32.mrf.mxu0
      %v4652 = vadd.f32 %v4491, %v4651
      %v4653 = vpop.f32.mrf.mxu0
      %v4654 = vpop.f32.mrf.mxu0
      %v4655 = vadd.f32 %v4494, %v4654
      %v4656 = vpop.f32.mrf.mxu0
      %4657 = vmatprep.mubr.bf16.mxu0 0
      %4658 = vmatmul.mubr.bf16.gmra.mxu0 %v4186
      %v4659 = vpop.f32.mrf.mxu0
      %v4660 = vadd.f32 %v4499, %v4659
      %v4661 = vpop.f32.mrf.mxu0
      %v4662 = vpop.f32.mrf.mxu0
      %v4663 = vadd.f32 %v4502, %v4662
      %v4664 = vpop.f32.mrf.mxu0
      %4665 = vmatprep.mubr.bf16.mxu0 0
      %4666 = vmatmul.mubr.bf16.gmra.mxu0 %v4189
      %v4667 = vpop.f32.mrf.mxu0
      %v4668 = vadd.f32 %v4507, %v4667
      %v4669 = vpop.f32.mrf.mxu0
      %v4670 = vpop.f32.mrf.mxu0
      %v4671 = vadd.f32 %v4510, %v4670
      %v4672 = vpop.f32.mrf.mxu0
      %4673 = vmatprep.mubr.bf16.mxu0 0
      %4674 = vmatmul.mubr.bf16.gmra.mxu0 %v4192
      %v4675 = vpop.f32.mrf.mxu0
      %v4676 = vadd.f32 %v4515, %v4675
      %v4677 = vpop.f32.mrf.mxu0
      %v4678 = vpop.f32.mrf.mxu0
      %v4679 = vadd.f32 %v4518, %v4678
      %v4680 = vpop.f32.mrf.mxu0
      %4681 = vmatprep.mubr.bf16.mxu0 0
      %4682 = vmatmul.mubr.bf16.gmra.mxu0 %v4195
      %v4683 = vpop.f32.mrf.mxu0
      %v4684 = vadd.f32 %v4523, %v4683
      %v4685 = vpop.f32.mrf.mxu0
      %v4686 = vpop.f32.mrf.mxu0
      %v4687 = vadd.f32 %v4526, %v4686
      %v4688 = vpop.f32.mrf.mxu0
      %4689 = vmatprep.mubr.bf16.mxu0 0
      %4690 = vmatmul.mubr.bf16.gmra.mxu0 %v4198
      %v4691 = vpop.f32.mrf.mxu0
      %v4692 = vadd.f32 %v4531, %v4691
      %v4693 = vpop.f32.mrf.mxu0
      %v4694 = vpop.f32.mrf.mxu0
      %v4695 = vadd.f32 %v4534, %v4694
      %v4696 = vpop.f32.mrf.mxu0
      %4697 = vmatprep.mubr.bf16.mxu0 0
      %4698 = vmatmul.mubr.bf16.gmra.mxu0 %v4201
      %v4699 = vpop.f32.mrf.mxu0
      %v4700 = vadd.f32 %v4539, %v4699
      %v4701 = vpop.f32.mrf.mxu0
      %v4702 = vpop.f32.mrf.mxu0
      %v4703 = vadd.f32 %v4542, %v4702
      %v4704 = vpop.f32.mrf.mxu0
      %4705 = vmatprep.mubr.bf16.mxu0 0
      %4706 = vmatmul.mubr.bf16.gmra.mxu0 %v4204
      %v4707 = vpop.f32.mrf.mxu0
      %v4708 = vadd.f32 %v4547, %v4707
      %v4709 = vpop.f32.mrf.mxu0
      %v4710 = vpop.f32.mrf.mxu0
      %v4711 = vadd.f32 %v4550, %v4710
      %v4712 = vpop.f32.mrf.mxu0
      %4713 = vmatprep.mubr.bf16.mxu0 0
      %4714 = vmatmul.mubr.bf16.gmra.mxu0 %v4207
      %v4715 = vpop.f32.mrf.mxu0
      %v4716 = vadd.f32 %v4555, %v4715
      %v4717 = vpop.f32.mrf.mxu0
      %v4718 = vpop.f32.mrf.mxu0
      %v4719 = vadd.f32 %v4558, %v4718
      %v4720 = vpop.f32.mrf.mxu0
      %4721 = vdwg.mxu0
      %s4722 = scalar_lea.vmem [#allocation2], 24
      %v4723 = vld [vmem:[%s4722] sm:$0xf]
      %v4724 = vld [vmem:[%s4722 + $0x4] sm:$0xf]
      %v4725 = vld [vmem:[%s4722 + $0xc] sm:$0xf]
      %v4726 = vld [vmem:[%s4722 + $0x10] sm:$0xf]
      %v4727 = vld [vmem:[%s4722 + $0x18] sm:$0xf]
      %v4728 = vld [vmem:[%s4722 + $0x1c] sm:$0xf]
      %v4729 = vld [vmem:[%s4722 + $0x24] sm:$0xf]
      %v4730 = vld [vmem:[%s4722 + $0x28] sm:$0xf]
      %v4731 = vld [vmem:[%s4722 + $0x30] sm:$0xf]
      %v4732 = vld [vmem:[%s4722 + $0x34] sm:$0xf]
      %v4733 = vld [vmem:[%s4722 + $0x3c] sm:$0xf]
      %v4734 = vld [vmem:[%s4722 + $0x40] sm:$0xf]
      %v4735 = vld [vmem:[%s4722 + $0x48] sm:$0xf]
      %v4736 = vld [vmem:[%s4722 + $0x4c] sm:$0xf]
      %v4737 = vld [vmem:[%s4722 + $0x54] sm:$0xf]
      %v4738 = vld [vmem:[%s4722 + $0x58] sm:$0xf]
      %v4739 = vld [vmem:[%s4722 + $0x60] sm:$0xf]
      %v4740 = vld [vmem:[%s4722 + $0x64] sm:$0xf]
      %v4741 = vld [vmem:[%s4722 + $0x6c] sm:$0xf]
      %v4742 = vld [vmem:[%s4722 + $0x70] sm:$0xf]
      %v4743 = vld [vmem:[%s4722 + $0x78] sm:$0xf]
      %v4744 = vld [vmem:[%s4722 + $0x7c] sm:$0xf]
      %v4745 = vld [vmem:[%s4722 + $0x84] sm:$0xf]
      %v4746 = vld [vmem:[%s4722 + $0x88] sm:$0xf]
      %v4747 = vld [vmem:[%s4722 + $0x90] sm:$0xf]
      %v4748 = vld [vmem:[%s4722 + $0x94] sm:$0xf]
      %v4749 = vld [vmem:[%s4722 + $0x9c] sm:$0xf]
      %v4750 = vld [vmem:[%s4722 + $0xa0] sm:$0xf]
      %v4751 = vld [vmem:[%s4722 + $0xa8] sm:$0xf]
      %v4752 = vld [vmem:[%s4722 + $0xac] sm:$0xf]
      %v4753 = vld [vmem:[%s4722 + $0xb4] sm:$0xf]
      %v4754 = vld [vmem:[%s4722 + $0xb8] sm:$0xf]
      %4755 = vst [vmem:[#allocation3] sm:$0xf] %v4723
      %4756 = vst [vmem:[#allocation3 + $0xc] sm:$0xf] %v4724
      %4757 = vst [vmem:[#allocation3 + $0x18] sm:$0xf] %v4725
      %4758 = vst [vmem:[#allocation3 + $0x24] sm:$0xf] %v4726
      %4759 = vst [vmem:[#allocation3 + $0x30] sm:$0xf] %v4727
      %4760 = vst [vmem:[#allocation3 + $0x3c] sm:$0xf] %v4728
      %4761 = vst [vmem:[#allocation3 + $0x48] sm:$0xf] %v4729
      %4762 = vst [vmem:[#allocation3 + $0x54] sm:$0xf] %v4730
      %4763 = vst [vmem:[#allocation3 + $0x60] sm:$0xf] %v4731
      %4764 = vst [vmem:[#allocation3 + $0x6c] sm:$0xf] %v4732
      %4765 = vst [vmem:[#allocation3 + $0x78] sm:$0xf] %v4733
      %4766 = vst [vmem:[#allocation3 + $0x84] sm:$0xf] %v4734
      %4767 = vst [vmem:[#allocation3 + $0x90] sm:$0xf] %v4735
      %4768 = vst [vmem:[#allocation3 + $0x9c] sm:$0xf] %v4736
      %4769 = vst [vmem:[#allocation3 + $0xa8] sm:$0xf] %v4737
      %4770 = vst [vmem:[#allocation3 + $0xb4] sm:$0xf] %v4738
      %4771 = vst [vmem:[#allocation3 + $0xc0] sm:$0xf] %v4739
      %4772 = vst [vmem:[#allocation3 + $0xcc] sm:$0xf] %v4740
      %4773 = vst [vmem:[#allocation3 + $0xd8] sm:$0xf] %v4741
      %4774 = vst [vmem:[#allocation3 + $0xe4] sm:$0xf] %v4742
      %4775 = vst [vmem:[#allocation3 + $0xf0] sm:$0xf] %v4743
      %4776 = vst [vmem:[#allocation3 + $0xfc] sm:$0xf] %v4744
      %4777 = vst [vmem:[#allocation3 + $0x108] sm:$0xf] %v4745
      %4778 = vst [vmem:[#allocation3 + $0x114] sm:$0xf] %v4746
      %4779 = vst [vmem:[#allocation3 + $0x120] sm:$0xf] %v4747
      %4780 = vst [vmem:[#allocation3 + $0x12c] sm:$0xf] %v4748
      %4781 = vst [vmem:[#allocation3 + $0x138] sm:$0xf] %v4749
      %4782 = vst [vmem:[#allocation3 + $0x144] sm:$0xf] %v4750
      %4783 = vst [vmem:[#allocation3 + $0x150] sm:$0xf] %v4751
      %4784 = vst [vmem:[#allocation3 + $0x15c] sm:$0xf] %v4752
      %4785 = vst [vmem:[#allocation3 + $0x168] sm:$0xf] %v4753
      %4786 = vst [vmem:[#allocation3 + $0x174] sm:$0xf] %v4754
      %v4787 = vld [vmem:[%s4722] sm:$0xf]
      %v4788 = vld [vmem:[%s4722 + $0x4] sm:$0xf]
      %v4789 = vld [vmem:[%s4722 + $0x8] sm:$0x1]
      %v4790 = vld [vmem:[%s4722 + $0xc] sm:$0xf]
      %v4791 = vld [vmem:[%s4722 + $0x10] sm:$0xf]
      %v4792 = vld [vmem:[%s4722 + $0x14] sm:$0x1]
      %v4793 = vld [vmem:[%s4722 + $0x18] sm:$0xf]
      %v4794 = vld [vmem:[%s4722 + $0x1c] sm:$0xf]
      %v4795 = vld [vmem:[%s4722 + $0x20] sm:$0x1]
      %v4796 = vld [vmem:[%s4722 + $0x24] sm:$0xf]
      %v4797 = vld [vmem:[%s4722 + $0x28] sm:$0xf]
      %v4798 = vld [vmem:[%s4722 + $0x2c] sm:$0x1]
      %v4799 = vld [vmem:[%s4722 + $0x30] sm:$0xf]
      %v4800 = vld [vmem:[%s4722 + $0x34] sm:$0xf]
      %v4801 = vld [vmem:[%s4722 + $0x38] sm:$0x1]
      %v4802 = vld [vmem:[%s4722 + $0x3c] sm:$0xf]
      %v4803 = vld [vmem:[%s4722 + $0x40] sm:$0xf]
      %v4804 = vld [vmem:[%s4722 + $0x44] sm:$0x1]
      %v4805 = vld [vmem:[%s4722 + $0x48] sm:$0xf]
      %v4806 = vld [vmem:[%s4722 + $0x4c] sm:$0xf]
      %v4807 = vld [vmem:[%s4722 + $0x50] sm:$0x1]
      %v4808 = vld [vmem:[%s4722 + $0x54] sm:$0xf]
      %v4809 = vld [vmem:[%s4722 + $0x58] sm:$0xf]
      %v4810 = vld [vmem:[%s4722 + $0x5c] sm:$0x1]
      %v4811 = vld [vmem:[%s4722 + $0x60] sm:$0xf]
      %v4812 = vld [vmem:[%s4722 + $0x64] sm:$0xf]
      %v4813 = vld [vmem:[%s4722 + $0x68] sm:$0x1]
      %v4814 = vld [vmem:[%s4722 + $0x6c] sm:$0xf]
      %v4815 = vld [vmem:[%s4722 + $0x70] sm:$0xf]
      %v4816 = vld [vmem:[%s4722 + $0x74] sm:$0x1]
      %v4817 = vld [vmem:[%s4722 + $0x78] sm:$0xf]
      %v4818 = vld [vmem:[%s4722 + $0x7c] sm:$0xf]
      %v4819 = vld [vmem:[%s4722 + $0x80] sm:$0x1]
      %v4820 = vld [vmem:[%s4722 + $0x84] sm:$0xf]
      %v4821 = vld [vmem:[%s4722 + $0x88] sm:$0xf]
      %v4822 = vld [vmem:[%s4722 + $0x8c] sm:$0x1]
      %v4823 = vld [vmem:[%s4722 + $0x90] sm:$0xf]
      %v4824 = vld [vmem:[%s4722 + $0x94] sm:$0xf]
      %v4825 = vld [vmem:[%s4722 + $0x98] sm:$0x1]
      %v4826 = vld [vmem:[%s4722 + $0x9c] sm:$0xf]
      %v4827 = vld [vmem:[%s4722 + $0xa0] sm:$0xf]
      %v4828 = vld [vmem:[%s4722 + $0xa4] sm:$0x1]
      %v4829 = vld [vmem:[%s4722 + $0xa8] sm:$0xf]
      %v4830 = vld [vmem:[%s4722 + $0xac] sm:$0xf]
      %v4831 = vld [vmem:[%s4722 + $0xb0] sm:$0x1]
      %v4832 = vld [vmem:[%s4722 + $0xb4] sm:$0xf]
      %v4833 = vld [vmem:[%s4722 + $0xb8] sm:$0xf]
      %v4834 = vld [vmem:[%s4722 + $0xbc] sm:$0x1]
      %v4836 = vshrl.u32 %v4787, 16
      %v4838 = vrot.slane %v4836, 4
      %v4839 = vshll.u32 %v4787, 16
      %v4841 = vrot.slane %v4839, 5
      %v4842 = vor.u32 %v4838, %v4841
      %v4843 = vrot.slane %v4842, 4
      %v4845 = vshll.u32 %v4788, 16
      %v4847 = vrot.slane %v4845, 5
      %v4848 = vsel %vm1498, %v4843, %v4847
      %v4849 = vshrl.u32 %v4788, 16
      %v4851 = vrot.slane %v4849, 4
      %v4852 = vor.u32 %v4851, %v4847
      %v4853 = vrot.slane %v4852, 4
      %v4855 = vshll.u32 %v4789, 16
      %v4857 = vrot.slane %v4855, 5
      %v4858 = vsel %vm1498, %v4853, %v4857
      %v4860 = vshrl.u32 %v4790, 16
      %v4862 = vrot.slane %v4860, 4
      %v4863 = vshll.u32 %v4790, 16
      %v4865 = vrot.slane %v4863, 5
      %v4866 = vor.u32 %v4862, %v4865
      %v4867 = vrot.slane %v4866, 4
      %v4869 = vshll.u32 %v4791, 16
      %v4871 = vrot.slane %v4869, 5
      %v4872 = vsel %vm1498, %v4867, %v4871
      %v4873 = vshrl.u32 %v4791, 16
      %v4875 = vrot.slane %v4873, 4
      %v4876 = vor.u32 %v4875, %v4871
      %v4877 = vrot.slane %v4876, 4
      %v4879 = vshll.u32 %v4792, 16
      %v4881 = vrot.slane %v4879, 5
      %v4882 = vsel %vm1498, %v4877, %v4881
      %v4884 = vshrl.u32 %v4793, 16
      %v4886 = vrot.slane %v4884, 4
      %v4887 = vshll.u32 %v4793, 16
      %v4889 = vrot.slane %v4887, 5
      %v4890 = vor.u32 %v4886, %v4889
      %v4891 = vrot.slane %v4890, 4
      %v4893 = vshll.u32 %v4794, 16
      %v4895 = vrot.slane %v4893, 5
      %v4896 = vsel %vm1498, %v4891, %v4895
      %v4897 = vshrl.u32 %v4794, 16
      %v4899 = vrot.slane %v4897, 4
      %v4900 = vor.u32 %v4899, %v4895
      %v4901 = vrot.slane %v4900, 4
      %v4903 = vshll.u32 %v4795, 16
      %v4905 = vrot.slane %v4903, 5
      %v4906 = vsel %vm1498, %v4901, %v4905
      %v4908 = vshrl.u32 %v4796, 16
      %v4910 = vrot.slane %v4908, 4
      %v4911 = vshll.u32 %v4796, 16
      %v4913 = vrot.slane %v4911, 5
      %v4914 = vor.u32 %v4910, %v4913
      %v4915 = vrot.slane %v4914, 4
      %v4917 = vshll.u32 %v4797, 16
      %v4919 = vrot.slane %v4917, 5
      %v4920 = vsel %vm1498, %v4915, %v4919
      %v4921 = vshrl.u32 %v4797, 16
      %v4923 = vrot.slane %v4921, 4
      %v4924 = vor.u32 %v4923, %v4919
      %v4925 = vrot.slane %v4924, 4
      %v4927 = vshll.u32 %v4798, 16
      %v4929 = vrot.slane %v4927, 5
      %v4930 = vsel %vm1498, %v4925, %v4929
      %v4932 = vshrl.u32 %v4799, 16
      %v4934 = vrot.slane %v4932, 4
      %v4935 = vshll.u32 %v4799, 16
      %v4937 = vrot.slane %v4935, 5
      %v4938 = vor.u32 %v4934, %v4937
      %v4939 = vrot.slane %v4938, 4
      %v4941 = vshll.u32 %v4800, 16
      %v4943 = vrot.slane %v4941, 5
      %v4944 = vsel %vm1498, %v4939, %v4943
      %v4945 = vshrl.u32 %v4800, 16
      %v4947 = vrot.slane %v4945, 4
      %v4948 = vor.u32 %v4947, %v4943
      %v4949 = vrot.slane %v4948, 4
      %v4951 = vshll.u32 %v4801, 16
      %v4953 = vrot.slane %v4951, 5
      %v4954 = vsel %vm1498, %v4949, %v4953
      %v4956 = vshrl.u32 %v4802, 16
      %v4958 = vrot.slane %v4956, 4
      %v4959 = vshll.u32 %v4802, 16
      %v4961 = vrot.slane %v4959, 5
      %v4962 = vor.u32 %v4958, %v4961
      %v4963 = vrot.slane %v4962, 4
      %v4965 = vshll.u32 %v4803, 16
      %v4967 = vrot.slane %v4965, 5
      %v4968 = vsel %vm1498, %v4963, %v4967
      %v4969 = vshrl.u32 %v4803, 16
      %v4971 = vrot.slane %v4969, 4
      %v4972 = vor.u32 %v4971, %v4967
      %v4973 = vrot.slane %v4972, 4
      %v4975 = vshll.u32 %v4804, 16
      %v4977 = vrot.slane %v4975, 5
      %v4978 = vsel %vm1498, %v4973, %v4977
      %v4980 = vshrl.u32 %v4805, 16
      %v4982 = vrot.slane %v4980, 4
      %v4983 = vshll.u32 %v4805, 16
      %v4985 = vrot.slane %v4983, 5
      %v4986 = vor.u32 %v4982, %v4985
      %v4987 = vrot.slane %v4986, 4
      %v4989 = vshll.u32 %v4806, 16
      %v4991 = vrot.slane %v4989, 5
      %v4992 = vsel %vm1498, %v4987, %v4991
      %v4993 = vshrl.u32 %v4806, 16
      %v4995 = vrot.slane %v4993, 4
      %v4996 = vor.u32 %v4995, %v4991
      %v4997 = vrot.slane %v4996, 4
      %v4999 = vshll.u32 %v4807, 16
      %v5001 = vrot.slane %v4999, 5
      %v5002 = vsel %vm1498, %v4997, %v5001
      %v5004 = vshrl.u32 %v4808, 16
      %v5006 = vrot.slane %v5004, 4
      %v5007 = vshll.u32 %v4808, 16
      %v5009 = vrot.slane %v5007, 5
      %v5010 = vor.u32 %v5006, %v5009
      %v5011 = vrot.slane %v5010, 4
      %v5013 = vshll.u32 %v4809, 16
      %v5015 = vrot.slane %v5013, 5
      %v5016 = vsel %vm1498, %v5011, %v5015
      %v5017 = vshrl.u32 %v4809, 16
      %v5019 = vrot.slane %v5017, 4
      %v5020 = vor.u32 %v5019, %v5015
      %v5021 = vrot.slane %v5020, 4
      %v5023 = vshll.u32 %v4810, 16
      %v5025 = vrot.slane %v5023, 5
      %v5026 = vsel %vm1498, %v5021, %v5025
      %v5028 = vshrl.u32 %v4811, 16
      %v5030 = vrot.slane %v5028, 4
      %v5031 = vshll.u32 %v4811, 16
      %v5033 = vrot.slane %v5031, 5
      %v5034 = vor.u32 %v5030, %v5033
      %v5035 = vrot.slane %v5034, 4
      %v5037 = vshll.u32 %v4812, 16
      %v5039 = vrot.slane %v5037, 5
      %v5040 = vsel %vm1498, %v5035, %v5039
      %v5041 = vshrl.u32 %v4812, 16
      %v5043 = vrot.slane %v5041, 4
      %v5044 = vor.u32 %v5043, %v5039
      %v5045 = vrot.slane %v5044, 4
      %v5047 = vshll.u32 %v4813, 16
      %v5049 = vrot.slane %v5047, 5
      %v5050 = vsel %vm1498, %v5045, %v5049
      %v5052 = vshrl.u32 %v4814, 16
      %v5054 = vrot.slane %v5052, 4
      %v5055 = vshll.u32 %v4814, 16
      %v5057 = vrot.slane %v5055, 5
      %v5058 = vor.u32 %v5054, %v5057
      %v5059 = vrot.slane %v5058, 4
      %v5061 = vshll.u32 %v4815, 16
      %v5063 = vrot.slane %v5061, 5
      %v5064 = vsel %vm1498, %v5059, %v5063
      %v5065 = vshrl.u32 %v4815, 16
      %v5067 = vrot.slane %v5065, 4
      %v5068 = vor.u32 %v5067, %v5063
      %v5069 = vrot.slane %v5068, 4
      %v5071 = vshll.u32 %v4816, 16
      %v5073 = vrot.slane %v5071, 5
      %v5074 = vsel %vm1498, %v5069, %v5073
      %v5076 = vshrl.u32 %v4817, 16
      %v5078 = vrot.slane %v5076, 4
      %v5079 = vshll.u32 %v4817, 16
      %v5081 = vrot.slane %v5079, 5
      %v5082 = vor.u32 %v5078, %v5081
      %v5083 = vrot.slane %v5082, 4
      %v5085 = vshll.u32 %v4818, 16
      %v5087 = vrot.slane %v5085, 5
      %v5088 = vsel %vm1498, %v5083, %v5087
      %v5089 = vshrl.u32 %v4818, 16
      %v5091 = vrot.slane %v5089, 4
      %v5092 = vor.u32 %v5091, %v5087
      %v5093 = vrot.slane %v5092, 4
      %v5095 = vshll.u32 %v4819, 16
      %v5097 = vrot.slane %v5095, 5
      %v5098 = vsel %vm1498, %v5093, %v5097
      %v5100 = vshrl.u32 %v4820, 16
      %v5102 = vrot.slane %v5100, 4
      %v5103 = vshll.u32 %v4820, 16
      %v5105 = vrot.slane %v5103, 5
      %v5106 = vor.u32 %v5102, %v5105
      %v5107 = vrot.slane %v5106, 4
      %v5109 = vshll.u32 %v4821, 16
      %v5111 = vrot.slane %v5109, 5
      %v5112 = vsel %vm1498, %v5107, %v5111
      %v5113 = vshrl.u32 %v4821, 16
      %v5115 = vrot.slane %v5113, 4
      %v5116 = vor.u32 %v5115, %v5111
      %v5117 = vrot.slane %v5116, 4
      %v5119 = vshll.u32 %v4822, 16
      %v5121 = vrot.slane %v5119, 5
      %v5122 = vsel %vm1498, %v5117, %v5121
      %v5124 = vshrl.u32 %v4823, 16
      %v5126 = vrot.slane %v5124, 4
      %v5127 = vshll.u32 %v4823, 16
      %v5129 = vrot.slane %v5127, 5
      %v5130 = vor.u32 %v5126, %v5129
      %v5131 = vrot.slane %v5130, 4
      %v5133 = vshll.u32 %v4824, 16
      %v5135 = vrot.slane %v5133, 5
      %v5136 = vsel %vm1498, %v5131, %v5135
      %v5137 = vshrl.u32 %v4824, 16
      %v5139 = vrot.slane %v5137, 4
      %v5140 = vor.u32 %v5139, %v5135
      %v5141 = vrot.slane %v5140, 4
      %v5143 = vshll.u32 %v4825, 16
      %v5145 = vrot.slane %v5143, 5
      %v5146 = vsel %vm1498, %v5141, %v5145
      %v5148 = vshrl.u32 %v4826, 16
      %v5150 = vrot.slane %v5148, 4
      %v5151 = vshll.u32 %v4826, 16
      %v5153 = vrot.slane %v5151, 5
      %v5154 = vor.u32 %v5150, %v5153
      %v5155 = vrot.slane %v5154, 4
      %v5157 = vshll.u32 %v4827, 16
      %v5159 = vrot.slane %v5157, 5
      %v5160 = vsel %vm1498, %v5155, %v5159
      %v5161 = vshrl.u32 %v4827, 16
      %v5163 = vrot.slane %v5161, 4
      %v5164 = vor.u32 %v5163, %v5159
      %v5165 = vrot.slane %v5164, 4
      %v5167 = vshll.u32 %v4828, 16
      %v5169 = vrot.slane %v5167, 5
      %v5170 = vsel %vm1498, %v5165, %v5169
      %v5172 = vshrl.u32 %v4829, 16
      %v5174 = vrot.slane %v5172, 4
      %v5175 = vshll.u32 %v4829, 16
      %v5177 = vrot.slane %v5175, 5
      %v5178 = vor.u32 %v5174, %v5177
      %v5179 = vrot.slane %v5178, 4
      %v5181 = vshll.u32 %v4830, 16
      %v5183 = vrot.slane %v5181, 5
      %v5184 = vsel %vm1498, %v5179, %v5183
      %v5185 = vshrl.u32 %v4830, 16
      %v5187 = vrot.slane %v5185, 4
      %v5188 = vor.u32 %v5187, %v5183
      %v5189 = vrot.slane %v5188, 4
      %v5191 = vshll.u32 %v4831, 16
      %v5193 = vrot.slane %v5191, 5
      %v5194 = vsel %vm1498, %v5189, %v5193
      %v5196 = vshrl.u32 %v4832, 16
      %v5198 = vrot.slane %v5196, 4
      %v5199 = vshll.u32 %v4832, 16
      %v5201 = vrot.slane %v5199, 5
      %v5202 = vor.u32 %v5198, %v5201
      %v5203 = vrot.slane %v5202, 4
      %v5205 = vshll.u32 %v4833, 16
      %v5207 = vrot.slane %v5205, 5
      %v5208 = vsel %vm1498, %v5203, %v5207
      %v5209 = vshrl.u32 %v4833, 16
      %v5211 = vrot.slane %v5209, 4
      %v5212 = vor.u32 %v5211, %v5207
      %v5213 = vrot.slane %v5212, 4
      %v5215 = vshll.u32 %v4834, 16
      %v5217 = vrot.slane %v5215, 5
      %v5218 = vsel %vm1498, %v5213, %v5217
      %5251 = vst [vmem:[#allocation3 + $0x4] sm:$0xf] %v4848
      %5252 = vst [vmem:[#allocation3 + $0x10] sm:$0xf] %v4858
      %5253 = vst [vmem:[#allocation3 + $0x1c] sm:$0xf] %v4872
      %5254 = vst [vmem:[#allocation3 + $0x28] sm:$0xf] %v4882
      %5255 = vst [vmem:[#allocation3 + $0x34] sm:$0xf] %v4896
      %5256 = vst [vmem:[#allocation3 + $0x40] sm:$0xf] %v4906
      %5257 = vst [vmem:[#allocation3 + $0x4c] sm:$0xf] %v4920
      %5258 = vst [vmem:[#allocation3 + $0x58] sm:$0xf] %v4930
      %5259 = vst [vmem:[#allocation3 + $0x64] sm:$0xf] %v4944
      %5260 = vst [vmem:[#allocation3 + $0x70] sm:$0xf] %v4954
      %5261 = vst [vmem:[#allocation3 + $0x7c] sm:$0xf] %v4968
      %5262 = vst [vmem:[#allocation3 + $0x88] sm:$0xf] %v4978
      %5263 = vst [vmem:[#allocation3 + $0x94] sm:$0xf] %v4992
      %5264 = vst [vmem:[#allocation3 + $0xa0] sm:$0xf] %v5002
      %5265 = vst [vmem:[#allocation3 + $0xac] sm:$0xf] %v5016
      %5266 = vst [vmem:[#allocation3 + $0xb8] sm:$0xf] %v5026
      %5267 = vst [vmem:[#allocation3 + $0xc4] sm:$0xf] %v5040
      %5268 = vst [vmem:[#allocation3 + $0xd0] sm:$0xf] %v5050
      %5269 = vst [vmem:[#allocation3 + $0xdc] sm:$0xf] %v5064
      %5270 = vst [vmem:[#allocation3 + $0xe8] sm:$0xf] %v5074
      %5271 = vst [vmem:[#allocation3 + $0xf4] sm:$0xf] %v5088
      %5272 = vst [vmem:[#allocation3 + $0x100] sm:$0xf] %v5098
      %5273 = vst [vmem:[#allocation3 + $0x10c] sm:$0xf] %v5112
      %5274 = vst [vmem:[#allocation3 + $0x118] sm:$0xf] %v5122
      %5275 = vst [vmem:[#allocation3 + $0x124] sm:$0xf] %v5136
      %5276 = vst [vmem:[#allocation3 + $0x130] sm:$0xf] %v5146
      %5277 = vst [vmem:[#allocation3 + $0x13c] sm:$0xf] %v5160
      %5278 = vst [vmem:[#allocation3 + $0x148] sm:$0xf] %v5170
      %5279 = vst [vmem:[#allocation3 + $0x154] sm:$0xf] %v5184
      %5280 = vst [vmem:[#allocation3 + $0x160] sm:$0xf] %v5194
      %5281 = vst [vmem:[#allocation3 + $0x16c] sm:$0xf] %v5208
      %5282 = vst [vmem:[#allocation3 + $0x178] sm:$0xf] %v5218
      %v5283 = vld [vmem:[%s4722] sm:$0xe]
      %v5284 = vld [vmem:[%s4722 + $0x4] sm:$0xf]
      %v5285 = vld [vmem:[%s4722 + $0x8] sm:$0x1]
      %v5286 = vld [vmem:[%s4722 + $0xc] sm:$0xe]
      %v5287 = vld [vmem:[%s4722 + $0x10] sm:$0xf]
      %v5288 = vld [vmem:[%s4722 + $0x14] sm:$0x1]
      %v5289 = vld [vmem:[%s4722 + $0x18] sm:$0xe]
      %v5290 = vld [vmem:[%s4722 + $0x1c] sm:$0xf]
      %v5291 = vld [vmem:[%s4722 + $0x20] sm:$0x1]
      %v5292 = vld [vmem:[%s4722 + $0x24] sm:$0xe]
      %v5293 = vld [vmem:[%s4722 + $0x28] sm:$0xf]
      %v5294 = vld [vmem:[%s4722 + $0x2c] sm:$0x1]
      %v5295 = vld [vmem:[%s4722 + $0x30] sm:$0xe]
      %v5296 = vld [vmem:[%s4722 + $0x34] sm:$0xf]
      %v5297 = vld [vmem:[%s4722 + $0x38] sm:$0x1]
      %v5298 = vld [vmem:[%s4722 + $0x3c] sm:$0xe]
      %v5299 = vld [vmem:[%s4722 + $0x40] sm:$0xf]
      %v5300 = vld [vmem:[%s4722 + $0x44] sm:$0x1]
      %v5301 = vld [vmem:[%s4722 + $0x48] sm:$0xe]
      %v5302 = vld [vmem:[%s4722 + $0x4c] sm:$0xf]
      %v5303 = vld [vmem:[%s4722 + $0x50] sm:$0x1]
      %v5304 = vld [vmem:[%s4722 + $0x54] sm:$0xe]
      %v5305 = vld [vmem:[%s4722 + $0x58] sm:$0xf]
      %v5306 = vld [vmem:[%s4722 + $0x5c] sm:$0x1]
      %v5307 = vld [vmem:[%s4722 + $0x60] sm:$0xe]
      %v5308 = vld [vmem:[%s4722 + $0x64] sm:$0xf]
      %v5309 = vld [vmem:[%s4722 + $0x68] sm:$0x1]
      %v5310 = vld [vmem:[%s4722 + $0x6c] sm:$0xe]
      %v5311 = vld [vmem:[%s4722 + $0x70] sm:$0xf]
      %v5312 = vld [vmem:[%s4722 + $0x74] sm:$0x1]
      %v5313 = vld [vmem:[%s4722 + $0x78] sm:$0xe]
      %v5314 = vld [vmem:[%s4722 + $0x7c] sm:$0xf]
      %v5315 = vld [vmem:[%s4722 + $0x80] sm:$0x1]
      %v5316 = vld [vmem:[%s4722 + $0x84] sm:$0xe]
      %v5317 = vld [vmem:[%s4722 + $0x88] sm:$0xf]
      %v5318 = vld [vmem:[%s4722 + $0x8c] sm:$0x1]
      %v5319 = vld [vmem:[%s4722 + $0x90] sm:$0xe]
      %v5320 = vld [vmem:[%s4722 + $0x94] sm:$0xf]
      %v5321 = vld [vmem:[%s4722 + $0x98] sm:$0x1]
      %v5322 = vld [vmem:[%s4722 + $0x9c] sm:$0xe]
      %v5323 = vld [vmem:[%s4722 + $0xa0] sm:$0xf]
      %v5324 = vld [vmem:[%s4722 + $0xa4] sm:$0x1]
      %v5325 = vld [vmem:[%s4722 + $0xa8] sm:$0xe]
      %v5326 = vld [vmem:[%s4722 + $0xac] sm:$0xf]
      %v5327 = vld [vmem:[%s4722 + $0xb0] sm:$0x1]
      %v5328 = vld [vmem:[%s4722 + $0xb4] sm:$0xe]
      %v5329 = vld [vmem:[%s4722 + $0xb8] sm:$0xf]
      %v5330 = vld [vmem:[%s4722 + $0xbc] sm:$0x1]
      %v5379 = vrot.slane %v5283, 5
      %v5380 = vrot.slane %v5379, 4
      %v5381 = vrot.slane %v5284, 5
      %v5382 = vsel %vm2045, %v5380, %v5381
      %v5383 = vrot.slane %v5381, 4
      %v5384 = vrot.slane %v5285, 5
      %v5385 = vsel %vm2045, %v5383, %v5384
      %v5386 = vrot.slane %v5286, 5
      %v5387 = vrot.slane %v5386, 4
      %v5388 = vrot.slane %v5287, 5
      %v5389 = vsel %vm2045, %v5387, %v5388
      %v5390 = vrot.slane %v5388, 4
      %v5391 = vrot.slane %v5288, 5
      %v5392 = vsel %vm2045, %v5390, %v5391
      %v5393 = vrot.slane %v5289, 5
      %v5394 = vrot.slane %v5393, 4
      %v5395 = vrot.slane %v5290, 5
      %v5396 = vsel %vm2045, %v5394, %v5395
      %v5397 = vrot.slane %v5395, 4
      %v5398 = vrot.slane %v5291, 5
      %v5399 = vsel %vm2045, %v5397, %v5398
      %v5400 = vrot.slane %v5292, 5
      %v5401 = vrot.slane %v5400, 4
      %v5402 = vrot.slane %v5293, 5
      %v5403 = vsel %vm2045, %v5401, %v5402
      %v5404 = vrot.slane %v5402, 4
      %v5405 = vrot.slane %v5294, 5
      %v5406 = vsel %vm2045, %v5404, %v5405
      %v5407 = vrot.slane %v5295, 5
      %v5408 = vrot.slane %v5407, 4
      %v5409 = vrot.slane %v5296, 5
      %v5410 = vsel %vm2045, %v5408, %v5409
      %v5411 = vrot.slane %v5409, 4
      %v5412 = vrot.slane %v5297, 5
      %v5413 = vsel %vm2045, %v5411, %v5412
      %v5414 = vrot.slane %v5298, 5
      %v5415 = vrot.slane %v5414, 4
      %v5416 = vrot.slane %v5299, 5
      %v5417 = vsel %vm2045, %v5415, %v5416
      %v5418 = vrot.slane %v5416, 4
      %v5419 = vrot.slane %v5300, 5
      %v5420 = vsel %vm2045, %v5418, %v5419
      %v5421 = vrot.slane %v5301, 5
      %v5422 = vrot.slane %v5421, 4
      %v5423 = vrot.slane %v5302, 5
      %v5424 = vsel %vm2045, %v5422, %v5423
      %v5425 = vrot.slane %v5423, 4
      %v5426 = vrot.slane %v5303, 5
      %v5427 = vsel %vm2045, %v5425, %v5426
      %v5428 = vrot.slane %v5304, 5
      %v5429 = vrot.slane %v5428, 4
      %v5430 = vrot.slane %v5305, 5
      %v5431 = vsel %vm2045, %v5429, %v5430
      %v5432 = vrot.slane %v5430, 4
      %v5433 = vrot.slane %v5306, 5
      %v5434 = vsel %vm2045, %v5432, %v5433
      %v5435 = vrot.slane %v5307, 5
      %v5436 = vrot.slane %v5435, 4
      %v5437 = vrot.slane %v5308, 5
      %v5438 = vsel %vm2045, %v5436, %v5437
      %v5439 = vrot.slane %v5437, 4
      %v5440 = vrot.slane %v5309, 5
      %v5441 = vsel %vm2045, %v5439, %v5440
      %v5442 = vrot.slane %v5310, 5
      %v5443 = vrot.slane %v5442, 4
      %v5444 = vrot.slane %v5311, 5
      %v5445 = vsel %vm2045, %v5443, %v5444
      %v5446 = vrot.slane %v5444, 4
      %v5447 = vrot.slane %v5312, 5
      %v5448 = vsel %vm2045, %v5446, %v5447
      %v5449 = vrot.slane %v5313, 5
      %v5450 = vrot.slane %v5449, 4
      %v5451 = vrot.slane %v5314, 5
      %v5452 = vsel %vm2045, %v5450, %v5451
      %v5453 = vrot.slane %v5451, 4
      %v5454 = vrot.slane %v5315, 5
      %v5455 = vsel %vm2045, %v5453, %v5454
      %v5456 = vrot.slane %v5316, 5
      %v5457 = vrot.slane %v5456, 4
      %v5458 = vrot.slane %v5317, 5
      %v5459 = vsel %vm2045, %v5457, %v5458
      %v5460 = vrot.slane %v5458, 4
      %v5461 = vrot.slane %v5318, 5
      %v5462 = vsel %vm2045, %v5460, %v5461
      %v5463 = vrot.slane %v5319, 5
      %v5464 = vrot.slane %v5463, 4
      %v5465 = vrot.slane %v5320, 5
      %v5466 = vsel %vm2045, %v5464, %v5465
      %v5467 = vrot.slane %v5465, 4
      %v5468 = vrot.slane %v5321, 5
      %v5469 = vsel %vm2045, %v5467, %v5468
      %v5470 = vrot.slane %v5322, 5
      %v5471 = vrot.slane %v5470, 4
      %v5472 = vrot.slane %v5323, 5
      %v5473 = vsel %vm2045, %v5471, %v5472
      %v5474 = vrot.slane %v5472, 4
      %v5475 = vrot.slane %v5324, 5
      %v5476 = vsel %vm2045, %v5474, %v5475
      %v5477 = vrot.slane %v5325, 5
      %v5478 = vrot.slane %v5477, 4
      %v5479 = vrot.slane %v5326, 5
      %v5480 = vsel %vm2045, %v5478, %v5479
      %v5481 = vrot.slane %v5479, 4
      %v5482 = vrot.slane %v5327, 5
      %v5483 = vsel %vm2045, %v5481, %v5482
      %v5484 = vrot.slane %v5328, 5
      %v5485 = vrot.slane %v5484, 4
      %v5486 = vrot.slane %v5329, 5
      %v5487 = vsel %vm2045, %v5485, %v5486
      %v5488 = vrot.slane %v5486, 4
      %v5489 = vrot.slane %v5330, 5
      %v5490 = vsel %vm2045, %v5488, %v5489
      %5523 = vst [vmem:[#allocation3 + $0x8] sm:$0xf] %v5382
      %5524 = vst [vmem:[#allocation3 + $0x14] sm:$0xf] %v5385
      %5525 = vst [vmem:[#allocation3 + $0x20] sm:$0xf] %v5389
      %5526 = vst [vmem:[#allocation3 + $0x2c] sm:$0xf] %v5392
      %5527 = vst [vmem:[#allocation3 + $0x38] sm:$0xf] %v5396
      %5528 = vst [vmem:[#allocation3 + $0x44] sm:$0xf] %v5399
      %5529 = vst [vmem:[#allocation3 + $0x50] sm:$0xf] %v5403
      %5530 = vst [vmem:[#allocation3 + $0x5c] sm:$0xf] %v5406
      %5531 = vst [vmem:[#allocation3 + $0x68] sm:$0xf] %v5410
      %5532 = vst [vmem:[#allocation3 + $0x74] sm:$0xf] %v5413
      %5533 = vst [vmem:[#allocation3 + $0x80] sm:$0xf] %v5417
      %5534 = vst [vmem:[#allocation3 + $0x8c] sm:$0xf] %v5420
      %5535 = vst [vmem:[#allocation3 + $0x98] sm:$0xf] %v5424
      %5536 = vst [vmem:[#allocation3 + $0xa4] sm:$0xf] %v5427
      %5537 = vst [vmem:[#allocation3 + $0xb0] sm:$0xf] %v5431
      %5538 = vst [vmem:[#allocation3 + $0xbc] sm:$0xf] %v5434
      %5539 = vst [vmem:[#allocation3 + $0xc8] sm:$0xf] %v5438
      %5540 = vst [vmem:[#allocation3 + $0xd4] sm:$0xf] %v5441
      %5541 = vst [vmem:[#allocation3 + $0xe0] sm:$0xf] %v5445
      %5542 = vst [vmem:[#allocation3 + $0xec] sm:$0xf] %v5448
      %5543 = vst [vmem:[#allocation3 + $0xf8] sm:$0xf] %v5452
      %5544 = vst [vmem:[#allocation3 + $0x104] sm:$0xf] %v5455
      %5545 = vst [vmem:[#allocation3 + $0x110] sm:$0xf] %v5459
      %5546 = vst [vmem:[#allocation3 + $0x11c] sm:$0xf] %v5462
      %5547 = vst [vmem:[#allocation3 + $0x128] sm:$0xf] %v5466
      %5548 = vst [vmem:[#allocation3 + $0x134] sm:$0xf] %v5469
      %5549 = vst [vmem:[#allocation3 + $0x140] sm:$0xf] %v5473
      %5550 = vst [vmem:[#allocation3 + $0x14c] sm:$0xf] %v5476
      %5551 = vst [vmem:[#allocation3 + $0x158] sm:$0xf] %v5480
      %5552 = vst [vmem:[#allocation3 + $0x164] sm:$0xf] %v5483
      %5553 = vst [vmem:[#allocation3 + $0x170] sm:$0xf] %v5487
      %5554 = vst [vmem:[#allocation3 + $0x17c] sm:$0xf] %v5490
      %v5555 = vld [vmem:[#allocation3] sm:$0xff]
      %v5556 = vld [vmem:[#allocation3 + $0x8] sm:$0xf]
      %v5557 = vld [vmem:[#allocation3 + $0xc] sm:$0xff]
      %v5558 = vld [vmem:[#allocation3 + $0x14] sm:$0xf]
      %v5559 = vld [vmem:[#allocation3 + $0x18] sm:$0xff]
      %v5560 = vld [vmem:[#allocation3 + $0x20] sm:$0xf]
      %v5561 = vld [vmem:[#allocation3 + $0x24] sm:$0xff]
      %v5562 = vld [vmem:[#allocation3 + $0x2c] sm:$0xf]
      %v5563 = vld [vmem:[#allocation3 + $0x30] sm:$0xff]
      %v5564 = vld [vmem:[#allocation3 + $0x38] sm:$0xf]
      %v5565 = vld [vmem:[#allocation3 + $0x3c] sm:$0xff]
      %v5566 = vld [vmem:[#allocation3 + $0x44] sm:$0xf]
      %v5567 = vld [vmem:[#allocation3 + $0x48] sm:$0xff]
      %v5568 = vld [vmem:[#allocation3 + $0x50] sm:$0xf]
      %v5569 = vld [vmem:[#allocation3 + $0x54] sm:$0xff]
      %v5570 = vld [vmem:[#allocation3 + $0x5c] sm:$0xf]
      %v5571 = vld [vmem:[#allocation3 + $0x60] sm:$0xff]
      %v5572 = vld [vmem:[#allocation3 + $0x68] sm:$0xf]
      %v5573 = vld [vmem:[#allocation3 + $0x6c] sm:$0xff]
      %v5574 = vld [vmem:[#allocation3 + $0x74] sm:$0xf]
      %v5575 = vld [vmem:[#allocation3 + $0x78] sm:$0xff]
      %v5576 = vld [vmem:[#allocation3 + $0x80] sm:$0xf]
      %v5577 = vld [vmem:[#allocation3 + $0x84] sm:$0xff]
      %v5578 = vld [vmem:[#allocation3 + $0x8c] sm:$0xf]
      %v5579 = vld [vmem:[#allocation3 + $0x90] sm:$0xff]
      %v5580 = vld [vmem:[#allocation3 + $0x98] sm:$0xf]
      %v5581 = vld [vmem:[#allocation3 + $0x9c] sm:$0xff]
      %v5582 = vld [vmem:[#allocation3 + $0xa4] sm:$0xf]
      %v5583 = vld [vmem:[#allocation3 + $0xa8] sm:$0xff]
      %v5584 = vld [vmem:[#allocation3 + $0xb0] sm:$0xf]
      %v5585 = vld [vmem:[#allocation3 + $0xb4] sm:$0xff]
      %v5586 = vld [vmem:[#allocation3 + $0xbc] sm:$0xf]
      %v5587 = vld [vmem:[#allocation3 + $0xc0] sm:$0xff]
      %v5588 = vld [vmem:[#allocation3 + $0xc8] sm:$0xf]
      %v5589 = vld [vmem:[#allocation3 + $0xcc] sm:$0xff]
      %v5590 = vld [vmem:[#allocation3 + $0xd4] sm:$0xf]
      %v5591 = vld [vmem:[#allocation3 + $0xd8] sm:$0xff]
      %v5592 = vld [vmem:[#allocation3 + $0xe0] sm:$0xf]
      %v5593 = vld [vmem:[#allocation3 + $0xe4] sm:$0xff]
      %v5594 = vld [vmem:[#allocation3 + $0xec] sm:$0xf]
      %v5595 = vld [vmem:[#allocation3 + $0xf0] sm:$0xff]
      %v5596 = vld [vmem:[#allocation3 + $0xf8] sm:$0xf]
      %v5597 = vld [vmem:[#allocation3 + $0xfc] sm:$0xff]
      %v5598 = vld [vmem:[#allocation3 + $0x104] sm:$0xf]
      %v5599 = vld [vmem:[#allocation3 + $0x108] sm:$0xff]
      %v5600 = vld [vmem:[#allocation3 + $0x110] sm:$0xf]
      %v5601 = vld [vmem:[#allocation3 + $0x114] sm:$0xff]
      %v5602 = vld [vmem:[#allocation3 + $0x11c] sm:$0xf]
      %v5603 = vld [vmem:[#allocation3 + $0x120] sm:$0xff]
      %v5604 = vld [vmem:[#allocation3 + $0x128] sm:$0xf]
      %v5605 = vld [vmem:[#allocation3 + $0x12c] sm:$0xff]
      %v5606 = vld [vmem:[#allocation3 + $0x134] sm:$0xf]
      %v5607 = vld [vmem:[#allocation3 + $0x138] sm:$0xff]
      %v5608 = vld [vmem:[#allocation3 + $0x140] sm:$0xf]
      %v5609 = vld [vmem:[#allocation3 + $0x144] sm:$0xff]
      %v5610 = vld [vmem:[#allocation3 + $0x14c] sm:$0xf]
      %v5611 = vld [vmem:[#allocation3 + $0x150] sm:$0xff]
      %v5612 = vld [vmem:[#allocation3 + $0x158] sm:$0xf]
      %v5613 = vld [vmem:[#allocation3 + $0x15c] sm:$0xff]
      %v5614 = vld [vmem:[#allocation3 + $0x164] sm:$0xf]
      %v5615 = vld [vmem:[#allocation3 + $0x168] sm:$0xff]
      %v5616 = vld [vmem:[#allocation3 + $0x170] sm:$0xf]
      %v5617 = vld [vmem:[#allocation3 + $0x174] sm:$0xff]
      %v5618 = vld [vmem:[#allocation3 + $0x17c] sm:$0xf]
      %v5619 = vld [vmem:[%s4 + $0x180] sm:$0xf]
      %v5620 = vld [vmem:[%s4 + $0x184] sm:$0xf]
      %v5621 = vld [vmem:[%s4 + $0x188] sm:$0xf]
      %v5622 = vld [vmem:[%s4 + $0x18c] sm:$0xf]
      %v5623 = vld [vmem:[%s4 + $0x190] sm:$0xf]
      %v5624 = vld [vmem:[%s4 + $0x194] sm:$0xf]
      %v5625 = vld [vmem:[%s4 + $0x198] sm:$0xf]
      %v5626 = vld [vmem:[%s4 + $0x19c] sm:$0xf]
      %v5627 = vld [vmem:[%s4 + $0x1a0] sm:$0xf]
      %v5628 = vld [vmem:[%s4 + $0x1a4] sm:$0xf]
      %v5629 = vld [vmem:[%s4 + $0x1a8] sm:$0xf]
      %v5630 = vld [vmem:[%s4 + $0x1ac] sm:$0xf]
      %v5631 = vld [vmem:[%s4 + $0x1b0] sm:$0xf]
      %v5632 = vld [vmem:[%s4 + $0x1b4] sm:$0xf]
      %v5633 = vld [vmem:[%s4 + $0x1b8] sm:$0xf]
      %v5634 = vld [vmem:[%s4 + $0x1bc] sm:$0xf]
      %v5635 = vld [vmem:[%s4 + $0x1c0] sm:$0xf]
      %v5636 = vld [vmem:[%s4 + $0x1c4] sm:$0xf]
      %v5637 = vld [vmem:[%s4 + $0x1c8] sm:$0xf]
      %v5638 = vld [vmem:[%s4 + $0x1cc] sm:$0xf]
      %v5639 = vld [vmem:[%s4 + $0x1d0] sm:$0xf]
      %v5640 = vld [vmem:[%s4 + $0x1d4] sm:$0xf]
      %v5641 = vld [vmem:[%s4 + $0x1d8] sm:$0xf]
      %v5642 = vld [vmem:[%s4 + $0x1dc] sm:$0xf]
      %v5643 = vld [vmem:[%s4 + $0x1e0] sm:$0xf]
      %v5644 = vld [vmem:[%s4 + $0x1e4] sm:$0xf]
      %v5645 = vld [vmem:[%s4 + $0x1e8] sm:$0xf]
      %v5646 = vld [vmem:[%s4 + $0x1ec] sm:$0xf]
      %v5647 = vld [vmem:[%s4 + $0x1f0] sm:$0xf]
      %v5648 = vld [vmem:[%s4 + $0x1f4] sm:$0xf]
      %v5649 = vld [vmem:[%s4 + $0x1f8] sm:$0xf]
      %v5650 = vld [vmem:[%s4 + $0x1fc] sm:$0xf]
      %v5651 = vld [vmem:[%s4 + $0x200] sm:$0xf]
      %v5652 = vld [vmem:[%s4 + $0x204] sm:$0xf]
      %v5653 = vld [vmem:[%s4 + $0x208] sm:$0xf]
      %v5654 = vld [vmem:[%s4 + $0x20c] sm:$0xf]
      %v5655 = vld [vmem:[%s4 + $0x210] sm:$0xf]
      %v5656 = vld [vmem:[%s4 + $0x214] sm:$0xf]
      %v5657 = vld [vmem:[%s4 + $0x218] sm:$0xf]
      %v5658 = vld [vmem:[%s4 + $0x21c] sm:$0xf]
      %v5659 = vld [vmem:[%s4 + $0x220] sm:$0xf]
      %v5660 = vld [vmem:[%s4 + $0x224] sm:$0xf]
      %v5661 = vld [vmem:[%s4 + $0x228] sm:$0xf]
      %v5662 = vld [vmem:[%s4 + $0x22c] sm:$0xf]
      %v5663 = vld [vmem:[%s4 + $0x230] sm:$0xf]
      %v5664 = vld [vmem:[%s4 + $0x234] sm:$0xf]
      %v5665 = vld [vmem:[%s4 + $0x238] sm:$0xf]
      %v5666 = vld [vmem:[%s4 + $0x23c] sm:$0xf]
      %v5731 = vunpack.c.l.b16 %v5555
      %v5732 = vunpack.c.h.b16 %v5555
      %v5733 = vunpack.c.l.b16 %v5556
      %v5734 = vunpack.c.l.b16 %v5557
      %v5735 = vunpack.c.h.b16 %v5557
      %v5736 = vunpack.c.l.b16 %v5558
      %v5737 = vunpack.c.l.b16 %v5559
      %v5738 = vunpack.c.h.b16 %v5559
      %v5739 = vunpack.c.l.b16 %v5560
      %v5740 = vunpack.c.l.b16 %v5561
      %v5741 = vunpack.c.h.b16 %v5561
      %v5742 = vunpack.c.l.b16 %v5562
      %v5743 = vunpack.c.l.b16 %v5563
      %v5744 = vunpack.c.h.b16 %v5563
      %v5745 = vunpack.c.l.b16 %v5564
      %v5746 = vunpack.c.l.b16 %v5565
      %v5747 = vunpack.c.h.b16 %v5565
      %v5748 = vunpack.c.l.b16 %v5566
      %v5749 = vunpack.c.l.b16 %v5567
      %v5750 = vunpack.c.h.b16 %v5567
      %v5751 = vunpack.c.l.b16 %v5568
      %v5752 = vunpack.c.l.b16 %v5569
      %v5753 = vunpack.c.h.b16 %v5569
      %v5754 = vunpack.c.l.b16 %v5570
      %v5755 = vunpack.c.l.b16 %v5571
      %v5756 = vunpack.c.h.b16 %v5571
      %v5757 = vunpack.c.l.b16 %v5572
      %v5758 = vunpack.c.l.b16 %v5573
      %v5759 = vunpack.c.h.b16 %v5573
      %v5760 = vunpack.c.l.b16 %v5574
      %v5761 = vunpack.c.l.b16 %v5575
      %v5762 = vunpack.c.h.b16 %v5575
      %v5763 = vunpack.c.l.b16 %v5576
      %v5764 = vunpack.c.l.b16 %v5577
      %v5765 = vunpack.c.h.b16 %v5577
      %v5766 = vunpack.c.l.b16 %v5578
      %v5767 = vunpack.c.l.b16 %v5579
      %v5768 = vunpack.c.h.b16 %v5579
      %v5769 = vunpack.c.l.b16 %v5580
      %v5770 = vunpack.c.l.b16 %v5581
      %v5771 = vunpack.c.h.b16 %v5581
      %v5772 = vunpack.c.l.b16 %v5582
      %v5773 = vunpack.c.l.b16 %v5583
      %v5774 = vunpack.c.h.b16 %v5583
      %v5775 = vunpack.c.l.b16 %v5584
      %v5776 = vunpack.c.l.b16 %v5585
      %v5777 = vunpack.c.h.b16 %v5585
      %v5778 = vunpack.c.l.b16 %v5586
      %v5779 = vunpack.c.l.b16 %v5587
      %v5780 = vunpack.c.h.b16 %v5587
      %v5781 = vunpack.c.l.b16 %v5588
      %v5782 = vunpack.c.l.b16 %v5589
      %v5783 = vunpack.c.h.b16 %v5589
      %v5784 = vunpack.c.l.b16 %v5590
      %v5785 = vunpack.c.l.b16 %v5591
      %v5786 = vunpack.c.h.b16 %v5591
      %v5787 = vunpack.c.l.b16 %v5592
      %v5788 = vunpack.c.l.b16 %v5593
      %v5789 = vunpack.c.h.b16 %v5593
      %v5790 = vunpack.c.l.b16 %v5594
      %v5791 = vunpack.c.l.b16 %v5595
      %v5792 = vunpack.c.h.b16 %v5595
      %v5793 = vunpack.c.l.b16 %v5596
      %v5794 = vunpack.c.l.b16 %v5597
      %v5795 = vunpack.c.h.b16 %v5597
      %v5796 = vunpack.c.l.b16 %v5598
      %v5797 = vunpack.c.l.b16 %v5599
      %v5798 = vunpack.c.h.b16 %v5599
      %v5799 = vunpack.c.l.b16 %v5600
      %v5800 = vunpack.c.l.b16 %v5601
      %v5801 = vunpack.c.h.b16 %v5601
      %v5802 = vunpack.c.l.b16 %v5602
      %v5803 = vunpack.c.l.b16 %v5603
      %v5804 = vunpack.c.h.b16 %v5603
      %v5805 = vunpack.c.l.b16 %v5604
      %v5806 = vunpack.c.l.b16 %v5605
      %v5807 = vunpack.c.h.b16 %v5605
      %v5808 = vunpack.c.l.b16 %v5606
      %v5809 = vunpack.c.l.b16 %v5607
      %v5810 = vunpack.c.h.b16 %v5607
      %v5811 = vunpack.c.l.b16 %v5608
      %v5812 = vunpack.c.l.b16 %v5609
      %v5813 = vunpack.c.h.b16 %v5609
      %v5814 = vunpack.c.l.b16 %v5610
      %v5815 = vunpack.c.l.b16 %v5611
      %v5816 = vunpack.c.h.b16 %v5611
      %v5817 = vunpack.c.l.b16 %v5612
      %v5818 = vunpack.c.l.b16 %v5613
      %v5819 = vunpack.c.h.b16 %v5613
      %v5820 = vunpack.c.l.b16 %v5614
      %v5821 = vunpack.c.l.b16 %v5615
      %v5822 = vunpack.c.h.b16 %v5615
      %v5823 = vunpack.c.l.b16 %v5616
      %v5824 = vunpack.c.l.b16 %v5617
      %v5825 = vunpack.c.h.b16 %v5617
      %v5826 = vunpack.c.l.b16 %v5618
      %v5827 = vpack.c.b16 %v5734, %v5731
      %v5828 = vpack.c.b16 %v5735, %v5732
      %v5829 = vpack.c.b16 %v5736, %v5733
      %v5830 = vpack.c.b16 %v5740, %v5737
      %v5831 = vpack.c.b16 %v5741, %v5738
      %v5832 = vpack.c.b16 %v5742, %v5739
      %v5833 = vpack.c.b16 %v5746, %v5743
      %v5834 = vpack.c.b16 %v5747, %v5744
      %v5835 = vpack.c.b16 %v5748, %v5745
      %v5836 = vpack.c.b16 %v5752, %v5749
      %v5837 = vpack.c.b16 %v5753, %v5750
      %v5838 = vpack.c.b16 %v5754, %v5751
      %v5839 = vpack.c.b16 %v5758, %v5755
      %v5840 = vpack.c.b16 %v5759, %v5756
      %v5841 = vpack.c.b16 %v5760, %v5757
      %v5842 = vpack.c.b16 %v5764, %v5761
      %v5843 = vpack.c.b16 %v5765, %v5762
      %v5844 = vpack.c.b16 %v5766, %v5763
      %v5845 = vpack.c.b16 %v5770, %v5767
      %v5846 = vpack.c.b16 %v5771, %v5768
      %v5847 = vpack.c.b16 %v5772, %v5769
      %v5848 = vpack.c.b16 %v5776, %v5773
      %v5849 = vpack.c.b16 %v5777, %v5774
      %v5850 = vpack.c.b16 %v5778, %v5775
      %v5851 = vpack.c.b16 %v5782, %v5779
      %v5852 = vpack.c.b16 %v5783, %v5780
      %v5853 = vpack.c.b16 %v5784, %v5781
      %v5854 = vpack.c.b16 %v5788, %v5785
      %v5855 = vpack.c.b16 %v5789, %v5786
      %v5856 = vpack.c.b16 %v5790, %v5787
      %v5857 = vpack.c.b16 %v5794, %v5791
      %v5858 = vpack.c.b16 %v5795, %v5792
      %v5859 = vpack.c.b16 %v5796, %v5793
      %v5860 = vpack.c.b16 %v5800, %v5797
      %v5861 = vpack.c.b16 %v5801, %v5798
      %v5862 = vpack.c.b16 %v5802, %v5799
      %v5863 = vpack.c.b16 %v5806, %v5803
      %v5864 = vpack.c.b16 %v5807, %v5804
      %v5865 = vpack.c.b16 %v5808, %v5805
      %v5866 = vpack.c.b16 %v5812, %v5809
      %v5867 = vpack.c.b16 %v5813, %v5810
      %v5868 = vpack.c.b16 %v5814, %v5811
      %v5869 = vpack.c.b16 %v5818, %v5815
      %v5870 = vpack.c.b16 %v5819, %v5816
      %v5871 = vpack.c.b16 %v5820, %v5817
      %v5872 = vpack.c.b16 %v5824, %v5821
      %v5873 = vpack.c.b16 %v5825, %v5822
      %v5874 = vpack.c.b16 %v5826, %v5823
      %v5971 = vunpack.c.l.b16 %v5619
      %v5972 = vunpack.c.l.b16 %v5620
      %v5973 = vunpack.c.l.b16 %v5621
      %v5974 = vunpack.c.l.b16 %v5622
      %v5975 = vunpack.c.l.b16 %v5623
      %v5976 = vunpack.c.l.b16 %v5624
      %v5977 = vunpack.c.l.b16 %v5625
      %v5978 = vunpack.c.l.b16 %v5626
      %v5979 = vunpack.c.l.b16 %v5627
      %v5980 = vunpack.c.l.b16 %v5628
      %v5981 = vunpack.c.l.b16 %v5629
      %v5982 = vunpack.c.l.b16 %v5630
      %v5983 = vunpack.c.l.b16 %v5631
      %v5984 = vunpack.c.l.b16 %v5632
      %v5985 = vunpack.c.l.b16 %v5633
      %v5986 = vunpack.c.l.b16 %v5634
      %v5987 = vunpack.c.l.b16 %v5635
      %v5988 = vunpack.c.l.b16 %v5636
      %v5989 = vunpack.c.l.b16 %v5637
      %v5990 = vunpack.c.l.b16 %v5638
      %v5991 = vunpack.c.l.b16 %v5639
      %v5992 = vunpack.c.l.b16 %v5640
      %v5993 = vunpack.c.l.b16 %v5641
      %v5994 = vunpack.c.l.b16 %v5642
      %v5995 = vunpack.c.l.b16 %v5643
      %v5996 = vunpack.c.l.b16 %v5644
      %v5997 = vunpack.c.l.b16 %v5645
      %v5998 = vunpack.c.l.b16 %v5646
      %v5999 = vunpack.c.l.b16 %v5647
      %v6000 = vunpack.c.l.b16 %v5648
      %v6001 = vunpack.c.l.b16 %v5649
      %v6002 = vunpack.c.l.b16 %v5650
      %v6003 = vunpack.c.l.b16 %v5651
      %v6004 = vunpack.c.l.b16 %v5652
      %v6005 = vunpack.c.l.b16 %v5653
      %v6006 = vunpack.c.l.b16 %v5654
      %v6007 = vunpack.c.l.b16 %v5655
      %v6008 = vunpack.c.l.b16 %v5656
      %v6009 = vunpack.c.l.b16 %v5657
      %v6010 = vunpack.c.l.b16 %v5658
      %v6011 = vunpack.c.l.b16 %v5659
      %v6012 = vunpack.c.l.b16 %v5660
      %v6013 = vunpack.c.l.b16 %v5661
      %v6014 = vunpack.c.l.b16 %v5662
      %v6015 = vunpack.c.l.b16 %v5663
      %v6016 = vunpack.c.l.b16 %v5664
      %v6017 = vunpack.c.l.b16 %v5665
      %v6018 = vunpack.c.l.b16 %v5666
      %v6019 = vpack.c.b16 %v5972, %v5971
      %v6020 = vpack.c.b16 %v5974, %v5973
      %v6021 = vpack.c.b16 %v5976, %v5975
      %v6022 = vpack.c.b16 %v5978, %v5977
      %v6023 = vpack.c.b16 %v5980, %v5979
      %v6024 = vpack.c.b16 %v5982, %v5981
      %v6025 = vpack.c.b16 %v5984, %v5983
      %v6026 = vpack.c.b16 %v5986, %v5985
      %v6027 = vpack.c.b16 %v5988, %v5987
      %v6028 = vpack.c.b16 %v5990, %v5989
      %v6029 = vpack.c.b16 %v5992, %v5991
      %v6030 = vpack.c.b16 %v5994, %v5993
      %v6031 = vpack.c.b16 %v5996, %v5995
      %v6032 = vpack.c.b16 %v5998, %v5997
      %v6033 = vpack.c.b16 %v6000, %v5999
      %v6034 = vpack.c.b16 %v6002, %v6001
      %v6035 = vpack.c.b16 %v6004, %v6003
      %v6036 = vpack.c.b16 %v6006, %v6005
      %v6037 = vpack.c.b16 %v6008, %v6007
      %v6038 = vpack.c.b16 %v6010, %v6009
      %v6039 = vpack.c.b16 %v6012, %v6011
      %v6040 = vpack.c.b16 %v6014, %v6013
      %v6041 = vpack.c.b16 %v6016, %v6015
      %v6042 = vpack.c.b16 %v6018, %v6017
      %6067 = vmatprep.subr.bf16.mxu0 0
      %6068 = vmatpush1.bf16.msra.mxu0 %v6026
      %6069 = vmatprep.subr.bf16.mxu0 0
      %6070 = vmatpush1.bf16.msra.mxu0 %v6025
      %6071 = vmatprep.subr.bf16.mxu0 0
      %6072 = vmatpush1.bf16.msra.mxu0 %v6024
      %6073 = vmatprep.subr.bf16.mxu0 0
      %6074 = vmatpush1.bf16.msra.mxu0 %v6023
      %6075 = vmatprep.subr.bf16.mxu0 0
      %6076 = vmatpush1.bf16.msra.mxu0 %v6022
      %6077 = vmatprep.subr.bf16.mxu0 0
      %6078 = vmatpush1.bf16.msra.mxu0 %v6021
      %6079 = vmatprep.subr.bf16.mxu0 0
      %6080 = vmatpush1.bf16.msra.mxu0 %v6020
      %6081 = vmatprep.subr.bf16.mxu0 0
      %6082 = vmatpush1.bf16.msra.mxu0 %v6019
      %6083 = vmatprep.subr.bf16.mxu0 0
      %6084 = vmatpush2.bf16.msra.mxu0 %v6034
      %6085 = vmatprep.subr.bf16.mxu0 0
      %6086 = vmatpush2.bf16.msra.mxu0 %v6033
      %6087 = vmatprep.subr.bf16.mxu0 0
      %6088 = vmatpush2.bf16.msra.mxu0 %v6032
      %6089 = vmatprep.subr.bf16.mxu0 0
      %6090 = vmatpush2.bf16.msra.mxu0 %v6031
      %6091 = vmatprep.subr.bf16.mxu0 0
      %6092 = vmatpush2.bf16.msra.mxu0 %v6030
      %6093 = vmatprep.subr.bf16.mxu0 0
      %6094 = vmatpush2.bf16.msra.mxu0 %v6029
      %6095 = vmatprep.subr.bf16.mxu0 0
      %6096 = vmatpush2.bf16.msra.mxu0 %v6028
      %6097 = vmatprep.subr.bf16.mxu0 0
      %6098 = vmatpush2.bf16.msra.mxu0 %v6027
      %6099 = vmatprep.mubr.bf16.mxu0 %v5828
      %6100 = vmatmul.mubr.bf16.gmra.mxu0 %v5827
      %v6101 = vpop.f32.mrf.mxu0
      %v6102 = vadd.f32 0.0, %v6101
      %v6103 = vpop.f32.mrf.mxu0
      %v6104 = vpop.f32.mrf.mxu0
      %v6105 = vadd.f32 0.0, %v6104
      %v6106 = vpop.f32.mrf.mxu0
      %6107 = vmatprep.mubr.bf16.mxu0 %v5831
      %6108 = vmatmul.mubr.bf16.gmra.mxu0 %v5830
      %v6109 = vpop.f32.mrf.mxu0
      %v6110 = vadd.f32 0.0, %v6109
      %v6111 = vpop.f32.mrf.mxu0
      %v6112 = vpop.f32.mrf.mxu0
      %v6113 = vadd.f32 0.0, %v6112
      %v6114 = vpop.f32.mrf.mxu0
      %6115 = vmatprep.mubr.bf16.mxu0 %v5834
      %6116 = vmatmul.mubr.bf16.gmra.mxu0 %v5833
      %v6117 = vpop.f32.mrf.mxu0
      %v6118 = vadd.f32 0.0, %v6117
      %v6119 = vpop.f32.mrf.mxu0
      %v6120 = vpop.f32.mrf.mxu0
      %v6121 = vadd.f32 0.0, %v6120
      %v6122 = vpop.f32.mrf.mxu0
      %6123 = vmatprep.mubr.bf16.mxu0 %v5837
      %6124 = vmatmul.mubr.bf16.gmra.mxu0 %v5836
      %v6125 = vpop.f32.mrf.mxu0
      %v6126 = vadd.f32 0.0, %v6125
      %v6127 = vpop.f32.mrf.mxu0
      %v6128 = vpop.f32.mrf.mxu0
      %v6129 = vadd.f32 0.0, %v6128
      %v6130 = vpop.f32.mrf.mxu0
      %6131 = vmatprep.mubr.bf16.mxu0 %v5840
      %6132 = vmatmul.mubr.bf16.gmra.mxu0 %v5839
      %v6133 = vpop.f32.mrf.mxu0
      %v6134 = vadd.f32 0.0, %v6133
      %v6135 = vpop.f32.mrf.mxu0
      %v6136 = vpop.f32.mrf.mxu0
      %v6137 = vadd.f32 0.0, %v6136
      %v6138 = vpop.f32.mrf.mxu0
      %6139 = vmatprep.mubr.bf16.mxu0 %v5843
      %6140 = vmatmul.mubr.bf16.gmra.mxu0 %v5842
      %v6141 = vpop.f32.mrf.mxu0
      %v6142 = vadd.f32 0.0, %v6141
      %v6143 = vpop.f32.mrf.mxu0
      %v6144 = vpop.f32.mrf.mxu0
      %v6145 = vadd.f32 0.0, %v6144
      %v6146 = vpop.f32.mrf.mxu0
      %6147 = vmatprep.mubr.bf16.mxu0 %v5846
      %6148 = vmatmul.mubr.bf16.gmra.mxu0 %v5845
      %v6149 = vpop.f32.mrf.mxu0
      %v6150 = vadd.f32 0.0, %v6149
      %v6151 = vpop.f32.mrf.mxu0
      %v6152 = vpop.f32.mrf.mxu0
      %v6153 = vadd.f32 0.0, %v6152
      %v6154 = vpop.f32.mrf.mxu0
      %6155 = vmatprep.mubr.bf16.mxu0 %v5849
      %6156 = vmatmul.mubr.bf16.gmra.mxu0 %v5848
      %v6157 = vpop.f32.mrf.mxu0
      %v6158 = vadd.f32 0.0, %v6157
      %v6159 = vpop.f32.mrf.mxu0
      %v6160 = vpop.f32.mrf.mxu0
      %v6161 = vadd.f32 0.0, %v6160
      %v6162 = vpop.f32.mrf.mxu0
      %6163 = vmatprep.mubr.bf16.mxu0 %v5852
      %6164 = vmatmul.mubr.bf16.gmra.mxu0 %v5851
      %v6165 = vpop.f32.mrf.mxu0
      %v6166 = vadd.f32 0.0, %v6165
      %v6167 = vpop.f32.mrf.mxu0
      %v6168 = vpop.f32.mrf.mxu0
      %v6169 = vadd.f32 0.0, %v6168
      %v6170 = vpop.f32.mrf.mxu0
      %6171 = vmatprep.mubr.bf16.mxu0 %v5855
      %6172 = vmatmul.mubr.bf16.gmra.mxu0 %v5854
      %v6173 = vpop.f32.mrf.mxu0
      %v6174 = vadd.f32 0.0, %v6173
      %v6175 = vpop.f32.mrf.mxu0
      %v6176 = vpop.f32.mrf.mxu0
      %v6177 = vadd.f32 0.0, %v6176
      %v6178 = vpop.f32.mrf.mxu0
      %6179 = vmatprep.mubr.bf16.mxu0 %v5858
      %6180 = vmatmul.mubr.bf16.gmra.mxu0 %v5857
      %v6181 = vpop.f32.mrf.mxu0
      %v6182 = vadd.f32 0.0, %v6181
      %v6183 = vpop.f32.mrf.mxu0
      %v6184 = vpop.f32.mrf.mxu0
      %v6185 = vadd.f32 0.0, %v6184
      %v6186 = vpop.f32.mrf.mxu0
      %6187 = vmatprep.mubr.bf16.mxu0 %v5861
      %6188 = vmatmul.mubr.bf16.gmra.mxu0 %v5860
      %v6189 = vpop.f32.mrf.mxu0
      %v6190 = vadd.f32 0.0, %v6189
      %v6191 = vpop.f32.mrf.mxu0
      %v6192 = vpop.f32.mrf.mxu0
      %v6193 = vadd.f32 0.0, %v6192
      %v6194 = vpop.f32.mrf.mxu0
      %6195 = vmatprep.mubr.bf16.mxu0 %v5864
      %6196 = vmatmul.mubr.bf16.gmra.mxu0 %v5863
      %v6197 = vpop.f32.mrf.mxu0
      %v6198 = vadd.f32 0.0, %v6197
      %v6199 = vpop.f32.mrf.mxu0
      %v6200 = vpop.f32.mrf.mxu0
      %v6201 = vadd.f32 0.0, %v6200
      %v6202 = vpop.f32.mrf.mxu0
      %6203 = vmatprep.mubr.bf16.mxu0 %v5867
      %6204 = vmatmul.mubr.bf16.gmra.mxu0 %v5866
      %v6205 = vpop.f32.mrf.mxu0
      %v6206 = vadd.f32 0.0, %v6205
      %v6207 = vpop.f32.mrf.mxu0
      %v6208 = vpop.f32.mrf.mxu0
      %v6209 = vadd.f32 0.0, %v6208
      %v6210 = vpop.f32.mrf.mxu0
      %6211 = vmatprep.mubr.bf16.mxu0 %v5870
      %6212 = vmatmul.mubr.bf16.gmra.mxu0 %v5869
      %v6213 = vpop.f32.mrf.mxu0
      %v6214 = vadd.f32 0.0, %v6213
      %v6215 = vpop.f32.mrf.mxu0
      %v6216 = vpop.f32.mrf.mxu0
      %v6217 = vadd.f32 0.0, %v6216
      %v6218 = vpop.f32.mrf.mxu0
      %6219 = vmatprep.mubr.bf16.mxu0 %v5873
      %6220 = vmatmul.mubr.bf16.gmra.mxu0 %v5872
      %v6221 = vpop.f32.mrf.mxu0
      %v6222 = vadd.f32 0.0, %v6221
      %v6223 = vpop.f32.mrf.mxu0
      %v6224 = vpop.f32.mrf.mxu0
      %v6225 = vadd.f32 0.0, %v6224
      %v6226 = vpop.f32.mrf.mxu0
      %6227 = vdwg.mxu0
      %6228 = vmatprep.subr.bf16.mxu0 0
      %6229 = vmatpush1.bf16.msra.mxu0 %v6042
      %6230 = vmatprep.subr.bf16.mxu0 0
      %6231 = vmatpush1.bf16.msra.mxu0 %v6041
      %6232 = vmatprep.subr.bf16.mxu0 0
      %6233 = vmatpush1.bf16.msra.mxu0 %v6040
      %6234 = vmatprep.subr.bf16.mxu0 0
      %6235 = vmatpush1.bf16.msra.mxu0 %v6039
      %6236 = vmatprep.subr.bf16.mxu0 0
      %6237 = vmatpush1.bf16.msra.mxu0 %v6038
      %6238 = vmatprep.subr.bf16.mxu0 0
      %6239 = vmatpush1.bf16.msra.mxu0 %v6037
      %6240 = vmatprep.subr.bf16.mxu0 0
      %6241 = vmatpush1.bf16.msra.mxu0 %v6036
      %6242 = vmatprep.subr.bf16.mxu0 0
      %6243 = vmatpush1.bf16.msra.mxu0 %v6035
      %6244 = vmatprep.subr.bf16.mxu0 0
      %6245 = vmatpush2.bf16.msra.mxu0 0
      %6246 = vmatprep.subr.bf16.mxu0 0
      %6247 = vmatpush2.bf16.msra.mxu0 0
      %6248 = vmatprep.subr.bf16.mxu0 0
      %6249 = vmatpush2.bf16.msra.mxu0 0
      %6250 = vmatprep.subr.bf16.mxu0 0
      %6251 = vmatpush2.bf16.msra.mxu0 0
      %6252 = vmatprep.subr.bf16.mxu0 0
      %6253 = vmatpush2.bf16.msra.mxu0 0
      %6254 = vmatprep.subr.bf16.mxu0 0
      %6255 = vmatpush2.bf16.msra.mxu0 0
      %6256 = vmatprep.subr.bf16.mxu0 0
      %6257 = vmatpush2.bf16.msra.mxu0 0
      %6258 = vmatprep.subr.bf16.mxu0 0
      %6259 = vmatpush2.bf16.msra.mxu0 0
      %6260 = vmatprep.mubr.bf16.mxu0 0
      %6261 = vmatmul.mubr.bf16.gmra.mxu0 %v5829
      %v6262 = vpop.f32.mrf.mxu0
      %v6263 = vadd.f32 %v6102, %v6262
      %v6264 = vpop.f32.mrf.mxu0
      %v6265 = vpop.f32.mrf.mxu0
      %v6266 = vadd.f32 %v6105, %v6265
      %v6267 = vpop.f32.mrf.mxu0
      %6268 = vmatprep.mubr.bf16.mxu0 0
      %6269 = vmatmul.mubr.bf16.gmra.mxu0 %v5832
      %v6270 = vpop.f32.mrf.mxu0
      %v6271 = vadd.f32 %v6110, %v6270
      %v6272 = vpop.f32.mrf.mxu0
      %v6273 = vpop.f32.mrf.mxu0
      %v6274 = vadd.f32 %v6113, %v6273
      %v6275 = vpop.f32.mrf.mxu0
      %6276 = vmatprep.mubr.bf16.mxu0 0
      %6277 = vmatmul.mubr.bf16.gmra.mxu0 %v5835
      %v6278 = vpop.f32.mrf.mxu0
      %v6279 = vadd.f32 %v6118, %v6278
      %v6280 = vpop.f32.mrf.mxu0
      %v6281 = vpop.f32.mrf.mxu0
      %v6282 = vadd.f32 %v6121, %v6281
      %v6283 = vpop.f32.mrf.mxu0
      %6284 = vmatprep.mubr.bf16.mxu0 0
      %6285 = vmatmul.mubr.bf16.gmra.mxu0 %v5838
      %v6286 = vpop.f32.mrf.mxu0
      %v6287 = vadd.f32 %v6126, %v6286
      %v6288 = vpop.f32.mrf.mxu0
      %v6289 = vpop.f32.mrf.mxu0
      %v6290 = vadd.f32 %v6129, %v6289
      %v6291 = vpop.f32.mrf.mxu0
      %6292 = vmatprep.mubr.bf16.mxu0 0
      %6293 = vmatmul.mubr.bf16.gmra.mxu0 %v5841
      %v6294 = vpop.f32.mrf.mxu0
      %v6295 = vadd.f32 %v6134, %v6294
      %v6296 = vpop.f32.mrf.mxu0
      %v6297 = vpop.f32.mrf.mxu0
      %v6298 = vadd.f32 %v6137, %v6297
      %v6299 = vpop.f32.mrf.mxu0
      %6300 = vmatprep.mubr.bf16.mxu0 0
      %6301 = vmatmul.mubr.bf16.gmra.mxu0 %v5844
      %v6302 = vpop.f32.mrf.mxu0
      %v6303 = vadd.f32 %v6142, %v6302
      %v6304 = vpop.f32.mrf.mxu0
      %v6305 = vpop.f32.mrf.mxu0
      %v6306 = vadd.f32 %v6145, %v6305
      %v6307 = vpop.f32.mrf.mxu0
      %6308 = vmatprep.mubr.bf16.mxu0 0
      %6309 = vmatmul.mubr.bf16.gmra.mxu0 %v5847
      %v6310 = vpop.f32.mrf.mxu0
      %v6311 = vadd.f32 %v6150, %v6310
      %v6312 = vpop.f32.mrf.mxu0
      %v6313 = vpop.f32.mrf.mxu0
      %v6314 = vadd.f32 %v6153, %v6313
      %v6315 = vpop.f32.mrf.mxu0
      %6316 = vmatprep.mubr.bf16.mxu0 0
      %6317 = vmatmul.mubr.bf16.gmra.mxu0 %v5850
      %v6318 = vpop.f32.mrf.mxu0
      %v6319 = vadd.f32 %v6158, %v6318
      %v6320 = vpop.f32.mrf.mxu0
      %v6321 = vpop.f32.mrf.mxu0
      %v6322 = vadd.f32 %v6161, %v6321
      %v6323 = vpop.f32.mrf.mxu0
      %6324 = vmatprep.mubr.bf16.mxu0 0
      %6325 = vmatmul.mubr.bf16.gmra.mxu0 %v5853
      %v6326 = vpop.f32.mrf.mxu0
      %v6327 = vadd.f32 %v6166, %v6326
      %v6328 = vpop.f32.mrf.mxu0
      %v6329 = vpop.f32.mrf.mxu0
      %v6330 = vadd.f32 %v6169, %v6329
      %v6331 = vpop.f32.mrf.mxu0
      %6332 = vmatprep.mubr.bf16.mxu0 0
      %6333 = vmatmul.mubr.bf16.gmra.mxu0 %v5856
      %v6334 = vpop.f32.mrf.mxu0
      %v6335 = vadd.f32 %v6174, %v6334
      %v6336 = vpop.f32.mrf.mxu0
      %v6337 = vpop.f32.mrf.mxu0
      %v6338 = vadd.f32 %v6177, %v6337
      %v6339 = vpop.f32.mrf.mxu0
      %6340 = vmatprep.mubr.bf16.mxu0 0
      %6341 = vmatmul.mubr.bf16.gmra.mxu0 %v5859
      %v6342 = vpop.f32.mrf.mxu0
      %v6343 = vadd.f32 %v6182, %v6342
      %v6344 = vpop.f32.mrf.mxu0
      %v6345 = vpop.f32.mrf.mxu0
      %v6346 = vadd.f32 %v6185, %v6345
      %v6347 = vpop.f32.mrf.mxu0
      %6348 = vmatprep.mubr.bf16.mxu0 0
      %6349 = vmatmul.mubr.bf16.gmra.mxu0 %v5862
      %v6350 = vpop.f32.mrf.mxu0
      %v6351 = vadd.f32 %v6190, %v6350
      %v6352 = vpop.f32.mrf.mxu0
      %v6353 = vpop.f32.mrf.mxu0
      %v6354 = vadd.f32 %v6193, %v6353
      %v6355 = vpop.f32.mrf.mxu0
      %6356 = vmatprep.mubr.bf16.mxu0 0
      %6357 = vmatmul.mubr.bf16.gmra.mxu0 %v5865
      %v6358 = vpop.f32.mrf.mxu0
      %v6359 = vadd.f32 %v6198, %v6358
      %v6360 = vpop.f32.mrf.mxu0
      %v6361 = vpop.f32.mrf.mxu0
      %v6362 = vadd.f32 %v6201, %v6361
      %v6363 = vpop.f32.mrf.mxu0
      %6364 = vmatprep.mubr.bf16.mxu0 0
      %6365 = vmatmul.mubr.bf16.gmra.mxu0 %v5868
      %v6366 = vpop.f32.mrf.mxu0
      %v6367 = vadd.f32 %v6206, %v6366
      %v6368 = vpop.f32.mrf.mxu0
      %v6369 = vpop.f32.mrf.mxu0
      %v6370 = vadd.f32 %v6209, %v6369
      %v6371 = vpop.f32.mrf.mxu0
      %6372 = vmatprep.mubr.bf16.mxu0 0
      %6373 = vmatmul.mubr.bf16.gmra.mxu0 %v5871
      %v6374 = vpop.f32.mrf.mxu0
      %v6375 = vadd.f32 %v6214, %v6374
      %v6376 = vpop.f32.mrf.mxu0
      %v6377 = vpop.f32.mrf.mxu0
      %v6378 = vadd.f32 %v6217, %v6377
      %v6379 = vpop.f32.mrf.mxu0
      %6380 = vmatprep.mubr.bf16.mxu0 0
      %6381 = vmatmul.mubr.bf16.gmra.mxu0 %v5874
      %v6382 = vpop.f32.mrf.mxu0
      %v6383 = vadd.f32 %v6222, %v6382
      %v6384 = vpop.f32.mrf.mxu0
      %v6385 = vpop.f32.mrf.mxu0
      %v6386 = vadd.f32 %v6225, %v6385
      %v6387 = vpop.f32.mrf.mxu0
      %6388 = vdwg.mxu0
      %v6389 = vadd.f32 %v4596, %v6263
      %v6390 = vadd.f32 %v4599, %v6266
      %v6391 = vadd.f32 %v4604, %v6271
      %v6392 = vadd.f32 %v4607, %v6274
      %v6393 = vadd.f32 %v4612, %v6279
      %v6394 = vadd.f32 %v4615, %v6282
      %v6395 = vadd.f32 %v4620, %v6287
      %v6396 = vadd.f32 %v4623, %v6290
      %v6397 = vadd.f32 %v4628, %v6295
      %v6398 = vadd.f32 %v4631, %v6298
      %v6399 = vadd.f32 %v4636, %v6303
      %v6400 = vadd.f32 %v4639, %v6306
      %v6401 = vadd.f32 %v4644, %v6311
      %v6402 = vadd.f32 %v4647, %v6314
      %v6403 = vadd.f32 %v4652, %v6319
      %v6404 = vadd.f32 %v4655, %v6322
      %v6405 = vadd.f32 %v4660, %v6327
      %v6406 = vadd.f32 %v4663, %v6330
      %v6407 = vadd.f32 %v4668, %v6335
      %v6408 = vadd.f32 %v4671, %v6338
      %v6409 = vadd.f32 %v4676, %v6343
      %v6410 = vadd.f32 %v4679, %v6346
      %v6411 = vadd.f32 %v4684, %v6351
      %v6412 = vadd.f32 %v4687, %v6354
      %v6413 = vadd.f32 %v4692, %v6359
      %v6414 = vadd.f32 %v4695, %v6362
      %v6415 = vadd.f32 %v4700, %v6367
      %v6416 = vadd.f32 %v4703, %v6370
      %v6417 = vadd.f32 %v4708, %v6375
      %v6418 = vadd.f32 %v4711, %v6378
      %v6419 = vadd.f32 %v4716, %v6383
      %v6420 = vadd.f32 %v4719, %v6386
      %v6421 = vld [vmem:[%s5] sm:$0x1]
      %v6423 = vlaneseq
      %v6424 = vshrl.u32 %v6423, 7
      %v6425 = vsub.s32 0, %v6424
      %v6426 = vrot.slane %v6421, %v6425
      %v6428 = vmul.f32 %v6389, %v6426
      %v6429 = vmul.f32 %v6390, %v6426
      %v6430 = vmul.f32 %v6391, %v6426
      %v6431 = vmul.f32 %v6392, %v6426
      %v6432 = vmul.f32 %v6393, %v6426
      %v6433 = vmul.f32 %v6394, %v6426
      %v6434 = vmul.f32 %v6395, %v6426
      %v6435 = vmul.f32 %v6396, %v6426
      %v6436 = vmul.f32 %v6397, %v6426
      %v6437 = vmul.f32 %v6398, %v6426
      %v6438 = vmul.f32 %v6399, %v6426
      %v6439 = vmul.f32 %v6400, %v6426
      %v6440 = vmul.f32 %v6401, %v6426
      %v6441 = vmul.f32 %v6402, %v6426
      %v6442 = vmul.f32 %v6403, %v6426
      %v6443 = vmul.f32 %v6404, %v6426
      %v6444 = vmul.f32 %v6405, %v6426
      %v6445 = vmul.f32 %v6406, %v6426
      %v6446 = vmul.f32 %v6407, %v6426
      %v6447 = vmul.f32 %v6408, %v6426
      %v6448 = vmul.f32 %v6409, %v6426
      %v6449 = vmul.f32 %v6410, %v6426
      %v6450 = vmul.f32 %v6411, %v6426
      %v6451 = vmul.f32 %v6412, %v6426
      %v6452 = vmul.f32 %v6413, %v6426
      %v6453 = vmul.f32 %v6414, %v6426
      %v6454 = vmul.f32 %v6415, %v6426
      %v6455 = vmul.f32 %v6416, %v6426
      %v6456 = vmul.f32 %v6417, %v6426
      %v6457 = vmul.f32 %v6418, %v6426
      %v6458 = vmul.f32 %v6419, %v6426
      %v6459 = vmul.f32 %v6420, %v6426
      %v6460 = vld [vmem:[%s6] sm:$0x1]
      %v6462 = vlaneseq
      %v6463 = vshrl.u32 %v6462, 7
      %v6464 = vsub.s32 0, %v6463
      %v6465 = vrot.slane %v6460, %v6464
      %v6467 = vadd.f32 %v6428, %v6465
      %v6468 = vadd.f32 %v6429, %v6465
      %v6469 = vadd.f32 %v6430, %v6465
      %v6470 = vadd.f32 %v6431, %v6465
      %v6471 = vadd.f32 %v6432, %v6465
      %v6472 = vadd.f32 %v6433, %v6465
      %v6473 = vadd.f32 %v6434, %v6465
      %v6474 = vadd.f32 %v6435, %v6465
      %v6475 = vadd.f32 %v6436, %v6465
      %v6476 = vadd.f32 %v6437, %v6465
      %v6477 = vadd.f32 %v6438, %v6465
      %v6478 = vadd.f32 %v6439, %v6465
      %v6479 = vadd.f32 %v6440, %v6465
      %v6480 = vadd.f32 %v6441, %v6465
      %v6481 = vadd.f32 %v6442, %v6465
      %v6482 = vadd.f32 %v6443, %v6465
      %v6483 = vadd.f32 %v6444, %v6465
      %v6484 = vadd.f32 %v6445, %v6465
      %v6485 = vadd.f32 %v6446, %v6465
      %v6486 = vadd.f32 %v6447, %v6465
      %v6487 = vadd.f32 %v6448, %v6465
      %v6488 = vadd.f32 %v6449, %v6465
      %v6489 = vadd.f32 %v6450, %v6465
      %v6490 = vadd.f32 %v6451, %v6465
      %v6491 = vadd.f32 %v6452, %v6465
      %v6492 = vadd.f32 %v6453, %v6465
      %v6493 = vadd.f32 %v6454, %v6465
      %v6494 = vadd.f32 %v6455, %v6465
      %v6495 = vadd.f32 %v6456, %v6465
      %v6496 = vadd.f32 %v6457, %v6465
      %v6497 = vadd.f32 %v6458, %v6465
      %v6498 = vadd.f32 %v6459, %v6465
      %v6499 = vmax.f32 %v6467, 0.0
      %v6500 = vmax.f32 %v6468, 0.0
      %v6501 = vmax.f32 %v6469, 0.0
      %v6502 = vmax.f32 %v6470, 0.0
      %v6503 = vmax.f32 %v6471, 0.0
      %v6504 = vmax.f32 %v6472, 0.0
      %v6505 = vmax.f32 %v6473, 0.0
      %v6506 = vmax.f32 %v6474, 0.0
      %v6507 = vmax.f32 %v6475, 0.0
      %v6508 = vmax.f32 %v6476, 0.0
      %v6509 = vmax.f32 %v6477, 0.0
      %v6510 = vmax.f32 %v6478, 0.0
      %v6511 = vmax.f32 %v6479, 0.0
      %v6512 = vmax.f32 %v6480, 0.0
      %v6513 = vmax.f32 %v6481, 0.0
      %v6514 = vmax.f32 %v6482, 0.0
      %v6515 = vmax.f32 %v6483, 0.0
      %v6516 = vmax.f32 %v6484, 0.0
      %v6517 = vmax.f32 %v6485, 0.0
      %v6518 = vmax.f32 %v6486, 0.0
      %v6519 = vmax.f32 %v6487, 0.0
      %v6520 = vmax.f32 %v6488, 0.0
      %v6521 = vmax.f32 %v6489, 0.0
      %v6522 = vmax.f32 %v6490, 0.0
      %v6523 = vmax.f32 %v6491, 0.0
      %v6524 = vmax.f32 %v6492, 0.0
      %v6525 = vmax.f32 %v6493, 0.0
      %v6526 = vmax.f32 %v6494, 0.0
      %v6527 = vmax.f32 %v6495, 0.0
      %v6528 = vmax.f32 %v6496, 0.0
      %v6529 = vmax.f32 %v6497, 0.0
      %v6530 = vmax.f32 %v6498, 0.0
      %6531 = vxpose.xlu0.b32.start [1/16] %v6499, 128
      %6532 = vxpose.xlu0.b32.cont [2/16] %v6500, 128
      %6533 = vxpose.xlu0.b32.cont [3/16] %v6501, 128
      %6534 = vxpose.xlu0.b32.cont [4/16] %v6502, 128
      %6535 = vxpose.xlu0.b32.cont [5/16] %v6503, 128
      %6536 = vxpose.xlu0.b32.cont [6/16] %v6504, 128
      %6537 = vxpose.xlu0.b32.cont [7/16] %v6505, 128
      %6538 = vxpose.xlu0.b32.cont [8/16] %v6506, 128
      %6539 = vxpose.xlu0.b32.cont [9/16] %v6507, 128
      %6540 = vxpose.xlu0.b32.cont [10/16] %v6508, 128
      %6541 = vxpose.xlu0.b32.cont [11/16] %v6509, 128
      %6542 = vxpose.xlu0.b32.cont [12/16] %v6510, 128
      %6543 = vxpose.xlu0.b32.cont [13/16] %v6511, 128
      %6544 = vxpose.xlu0.b32.cont [14/16] %v6512, 128
      %6545 = vxpose.xlu0.b32.cont [15/16] %v6513, 128
      %6546 = vxpose.xlu0.b32.end [16/16] %v6514, 128
      %v6547 = vpop.trf.xlu0
      %v6548 = vpop.trf.xlu0
      %v6549 = vpop.trf.xlu0
      %v6550 = vpop.trf.xlu0
      %v6551 = vpop.trf.xlu0
      %v6552 = vpop.trf.xlu0
      %v6553 = vpop.trf.xlu0
      %v6554 = vpop.trf.xlu0
      %v6555 = vpop.trf.xlu0
      %v6556 = vpop.trf.xlu0
      %v6557 = vpop.trf.xlu0
      %v6558 = vpop.trf.xlu0
      %v6559 = vpop.trf.xlu0
      %v6560 = vpop.trf.xlu0
      %v6561 = vpop.trf.xlu0
      %v6562 = vpop.trf.xlu0
      %6563 = vxpose.xlu0.b32.start [1/16] %v6515, 128
      %6564 = vxpose.xlu0.b32.cont [2/16] %v6516, 128
      %6565 = vxpose.xlu0.b32.cont [3/16] %v6517, 128
      %6566 = vxpose.xlu0.b32.cont [4/16] %v6518, 128
      %6567 = vxpose.xlu0.b32.cont [5/16] %v6519, 128
      %6568 = vxpose.xlu0.b32.cont [6/16] %v6520, 128
      %6569 = vxpose.xlu0.b32.cont [7/16] %v6521, 128
      %6570 = vxpose.xlu0.b32.cont [8/16] %v6522, 128
      %6571 = vxpose.xlu0.b32.cont [9/16] %v6523, 128
      %6572 = vxpose.xlu0.b32.cont [10/16] %v6524, 128
      %6573 = vxpose.xlu0.b32.cont [11/16] %v6525, 128
      %6574 = vxpose.xlu0.b32.cont [12/16] %v6526, 128
      %6575 = vxpose.xlu0.b32.cont [13/16] %v6527, 128
      %6576 = vxpose.xlu0.b32.cont [14/16] %v6528, 128
      %6577 = vxpose.xlu0.b32.cont [15/16] %v6529, 128
      %6578 = vxpose.xlu0.b32.end [16/16] %v6530, 128
      %v6579 = vpop.trf.xlu0
      %v6580 = vpop.trf.xlu0
      %v6581 = vpop.trf.xlu0
      %v6582 = vpop.trf.xlu0
      %v6583 = vpop.trf.xlu0
      %v6584 = vpop.trf.xlu0
      %v6585 = vpop.trf.xlu0
      %v6586 = vpop.trf.xlu0
      %v6587 = vpop.trf.xlu0
      %v6588 = vpop.trf.xlu0
      %v6589 = vpop.trf.xlu0
      %v6590 = vpop.trf.xlu0
      %v6591 = vpop.trf.xlu0
      %v6592 = vpop.trf.xlu0
      %v6593 = vpop.trf.xlu0
      %v6594 = vpop.trf.xlu0
      %6595 = vst [vmem:[%s278] sm:$0xff] %v6547
      %6596 = vst [vmem:[%s278 + $0x8] sm:$0xff] %v6579
      %p6597 = scmp.lt.s32.totalorder %s18, 1
      %s6598 = scalar_select %p6597, %s18, 1
      %s6599 = smul.addr %s6598, 2
      %s6600 = smul.addr %s6599, 8
      %s6601 = scalar_lea.vmem %s7, %s6600
      // Predicated region
      $region49: #{inconv_forward.1} parent=47 // pred_check
        %p6602 = pneg %p188
      $region50: #{inconv_forward.1} parent=47 // pred_check_branch
        %6604 = sbr.rel (%p6602) target = $region52
      $region51: #{inconv_forward.1} parent=47 // pred_region
        _
      $region52: #{inconv_forward.1} parent=47 // pred_fallthru
        _
    $region48: #{inconv_forward.1} parent=5 // pred_fallthru
      _
    %p6605 = scmp.le.s32.totalorder 2, %s13
    // Predicated region
    $region53: #{inconv_forward.1} parent=5 // pred_check
      %p6606 = pneg %p6605
    $region54: #{inconv_forward.1} parent=5 // pred_check_branch
      %6608 = sbr.rel (%p6606) target = $region56
    $region55: #{inconv_forward.1} parent=5 // pred_region
      %s6609 = ssub.s32 %s13, 2
      // Predicated region
      $region57: #{inconv_forward.1} parent=55 // pred_check
        %p6610 = pneg %p194
      $region58: #{inconv_forward.1} parent=55 // pred_check_branch
        %6612 = sbr.rel (%p6610) target = $region60
      $region59: #{inconv_forward.1} parent=55 // pred_region
        %p6613 = scmp.lt.s32.totalorder %s19, 1
        %s6614 = scalar_select %p6613, %s19, 1
        %s6615 = smul.addr %s6614, 2
        %s6616 = smul.addr %s6615, 8
        %s6617 = scalar_lea.vmem %s7, %s6616
      $region60: #{inconv_forward.1} parent=55 // pred_fallthru
        _
    $region56: #{inconv_forward.1} parent=5 // pred_fallthru
      _
  $region6: #{inconv_forward.1} parent=0 // loop_footer
    %s17 = sadd.s32 1, %s13
  $region7: #{inconv_forward.1} parent=0 // loop_footer_branch
    %12 = sbr.rel target = $region3
  $region8: #{inconv_forward.1} parent=0 // loop_exit
    _

</llo_original>
